<compile_context>
chip_gen: v7x
topology: tpu7x:2x2x1
jax: 0.10.0
libtpu: 0.0.40
codegen_flags: <defaults>
</compile_context>

<pallas_src>
import functools

import jax
import jax.numpy as jnp
from jax import lax
from jax.experimental import pallas as pl
from jax.experimental.pallas import tpu as pltpu


# ----------------------------------------------------------------------------
# KxK conv: wrapper pads the raw (bf16) image, kernel builds the
# (F*HW, K*K*Cin) im2col matrix in a VMEM scratch and runs one MXU matmul
# (+bias, optional LeakyReLU(0.1)).  F frames share one grid step so the
# matmul M dim can be F*HW.
# ----------------------------------------------------------------------------
def _conv_kernel(xp_ref, w_ref, b_ref, o_ref, col_ref, *,
                 F, H, W, Cin, K, dil, act):
    HW = H * W
    for f in range(F):
        for kh in range(K):
            for kw in range(K):
                j = (kh * K + kw) * Cin
                col_ref[f * HW:(f + 1) * HW, j:j + Cin] = (
                    xp_ref[0, f, kh * dil:kh * dil + H,
                           kw * dil:kw * dil + W, :].reshape(HW, Cin))
    acc = jnp.dot(col_ref[...], w_ref[...],
                  preferred_element_type=jnp.float32)
    acc = acc + b_ref[...]
    if act:
        acc = jnp.where(acc >= 0, acc, 0.1 * acc)        # LeakyReLU(0.1)
    o_ref[0] = acc


def conv2d(x, w, b, *, dilation=1, act=False):
    """x: (N,F,H,W,Cin)  w: (K,K,Cin,Cout) HWIO  b: (Cout,) -> (N,F*H*W,Cout)."""
    N, F, H, W, Cin = x.shape
    K = w.shape[0]
    Cout = w.shape[-1]
    pad = (K // 2) * dilation
    xp = jnp.pad(x.astype(jnp.bfloat16),
                 ((0, 0), (0, 0), (pad, pad), (pad, pad), (0, 0)))
    Hp, Wp = H + 2 * pad, W + 2 * pad
    KKC = K * K * Cin
    w2 = w.reshape(KKC, Cout).astype(jnp.bfloat16)
    b2 = b.reshape(1, Cout).astype(jnp.float32)
    kern = functools.partial(_conv_kernel, F=F, H=H, W=W, Cin=Cin, K=K,
                             dil=dilation, act=act)
    return pl.pallas_call(
        kern,
        out_shape=jax.ShapeDtypeStruct((N, F * H * W, Cout), jnp.float32),
        grid=(N,),
        in_specs=[
            pl.BlockSpec((1, F, Hp, Wp, Cin), lambda n: (n, 0, 0, 0, 0)),
            pl.BlockSpec((KKC, Cout), lambda n: (0, 0)),
            pl.BlockSpec((1, Cout), lambda n: (0, 0)),
        ],
        out_specs=pl.BlockSpec((1, F * H * W, Cout), lambda n: (n, 0, 0)),
        scratch_shapes=[pltpu.VMEM((F * H * W, KKC), jnp.bfloat16)],
        compiler_params=pltpu.CompilerParams(
            dimension_semantics=("parallel",)),
    )(xp, w2, b2)


# ----------------------------------------------------------------------------
# Multi-scale deformable attention core (the MSDA CUDA op).  Grid = (N, NH):
# each step handles one head of one image.  Bilinear grid-sampling
# (MSDA convention: p = loc*size - 0.5, zero padding) is a separable one-hot:
# per point, ox (W, HW) contracts the value tile (DH*H, W) on the MXU, then
# oy (H, HW) (pre-scaled by the attention weight) multiplies and reduces on
# the VPU.  Out-of-range corners match no column -> zero padding for free.
# ----------------------------------------------------------------------------
def _msda_kernel(val_ref, samp_ref, o_ref, *, L, P, H, W, DH):
    HW = H * W
    LP = L * P
    colW = lax.broadcasted_iota(jnp.int32, (W, HW), 0)
    colH = lax.broadcasted_iota(jnp.int32, (H, HW), 0)

    acc = jnp.zeros((DH, HW), jnp.float32)
    for l in range(L):
        vT = val_ref[0, l]                                 # (DH*H, W) bf16

        def point_body(p, a_cc, _l=l, _vT=vT):
            lp = _l * P + p
            x = samp_ref[0, 0, pl.ds(lp, 1), :]                   # (1, HW)
            y = samp_ref[0, 0, pl.ds(LP + lp, 1), :]              # (1, HW)
            aw = samp_ref[0, 0, pl.ds(2 * LP + lp, 1), :]         # (1, HW)
            x0f = jnp.floor(x)
            y0f = jnp.floor(y)
            x0 = x0f.astype(jnp.int32)
            y0 = y0f.astype(jnp.int32)
            wx1 = x - x0f
            wx0 = 1.0 - wx1
            wy1 = y - y0f
            wy0 = 1.0 - wy1
            ox = (jnp.where(colW == x0, wx0, 0.0)
                  + jnp.where(colW == x0 + 1, wx1, 0.0))          # (W, HW)
            oy = (jnp.where(colH == y0, wy0 * aw, 0.0)
                  + jnp.where(colH == y0 + 1, wy1 * aw, 0.0))     # (H, HW)
            tmp = jnp.dot(_vT, ox.astype(jnp.bfloat16),
                          preferred_element_type=jnp.float32)     # (DH*H, HW)
            tmp = tmp.reshape(DH, H, HW) * oy[None, :, :]
            return a_cc + tmp.sum(axis=1)

        acc = lax.fori_loop(0, P, point_body, acc)
    o_ref[0] = acc


def ms_deform_attn(value, samp, *, H, W, NH, DH, L, P):
    """value: (N, L, C*H, W) bf16   samp: (N, NH, 3*L*P, HW) f32 -> (N, C, HW)."""
    N = value.shape[0]
    C = NH * DH
    HW = H * W
    kern = functools.partial(_msda_kernel, L=L, P=P, H=H, W=W, DH=DH)
    return pl.pallas_call(
        kern,
        out_shape=jax.ShapeDtypeStruct((N, C, HW), jnp.float32),
        grid=(N, NH),
        in_specs=[
            pl.BlockSpec((1, L, DH * H, W), lambda n, hd: (n, 0, hd, 0)),
            pl.BlockSpec((1, 1, 3 * L * P, HW), lambda n, hd: (n, hd, 0, 0)),
        ],
        out_specs=pl.BlockSpec((1, DH, HW), lambda n, hd: (n, hd, 0)),
        compiler_params=pltpu.CompilerParams(
            dimension_semantics=("parallel", "parallel")),
    )(value, samp)


# ----------------------------------------------------------------------------
# Fused post-attention tail: output_proj -> feed_forward -> +frame[:,1] ->
# ff0 (3x3, dil=2) + LeakyReLU -> ff2 -> +residual -> 1x1 fusion + LeakyReLU.
# One pallas_call; intermediates never leave VMEM; each conv is one fat-K
# matmul over a VMEM im2col scratch; output stored lane-dense as (C, HW).
# ----------------------------------------------------------------------------
def _tail_kernel(attn_ref, frame1_ref, src1_ref,
                 w_op_ref, b_op_ref, w_ff_ref, b_ff_ref,
                 w_f0_ref, b_f0_ref, w_f2_ref, b_f2_ref,
                 w_fu_ref, b_fu_ref,
                 o_ref, pad_c, pad_2c, col_c, col_2c, *, H, W, C):
    HW = H * W

    def lrelu(v):
        return jnp.where(v >= 0, v, 0.1 * v)

    def zero_border(pad_ref, p):
        hp, wp, cc = pad_ref.shape
        z_row = jnp.zeros((p, wp, cc), pad_ref.dtype)
        z_col = jnp.zeros((hp, p, cc), pad_ref.dtype)
        pad_ref[0:p, :, :] = z_row
        pad_ref[hp - p:hp, :, :] = z_row
        pad_ref[:, 0:p, :] = z_col
        pad_ref[:, wp - p:wp, :] = z_col

    # Interiors are fully rewritten every stage; only the thin borders need
    # to be (re)zeroed each step (safe for any core assignment of the grid).
    zero_border(pad_c, 1)
    zero_border(pad_2c, 2)

    def conv3(pad_ref, col_ref, cin, w_ref, b_ref, dil):
        for kh in range(3):
            for kw in range(3):
                j = (kh * 3 + kw) * cin
                col_ref[:, j:j + cin] = (
                    pad_ref[kh * dil:kh * dil + H,
                            kw * dil:kw * dil + W, :].reshape(HW, cin))
        return jnp.dot(col_ref[...], w_ref[...],
                       preferred_element_type=jnp.float32) + b_ref[...]

    # stage 1: output_proj (attention output arrives as (C, HW))
    a_hwc = attn_ref[0].T.reshape(H, W, C)
    pad_c[1:1 + H, 1:1 + W, :] = a_hwc.astype(jnp.bfloat16)
    x1 = conv3(pad_c, col_c, C, w_op_ref, b_op_ref, 1)            # (HW, C)

    # stage 2: feed_forward
    pad_c[1:1 + H, 1:1 + W, :] = x1.reshape(H, W, C).astype(jnp.bfloat16)
    x2 = conv3(pad_c, col_c, C, w_ff_ref, b_ff_ref, 1)

    # stage 3: residual with centre frame
    out = x2 + frame1_ref[0].reshape(HW, C)

    # stage 4: feedforward[0] - dilation-2 conv over concat(out, src centre)
    pad_2c[2:2 + H, 2:2 + W, :] = jnp.concatenate(
        [out.reshape(H, W, C), src1_ref[0]], axis=-1).astype(jnp.bfloat16)
    y = lrelu(conv3(pad_2c, col_2c, 2 * C, w_f0_ref, b_f0_ref, 2))

    # stage 5: feedforward[2]
    pad_c[1:1 + H, 1:1 + W, :] = y.reshape(H, W, C).astype(jnp.bfloat16)
    y2 = conv3(pad_c, col_c, C, w_f2_ref, b_f2_ref, 1)

    # stage 6: residual
    out2 = out + y2

    # stage 7: fusion 1x1 + LeakyReLU; store lane-dense (C, HW)
    fin = lrelu(jnp.dot(out2.astype(jnp.bfloat16), w_fu_ref[...],
                        preferred_element_type=jnp.float32) + b_fu_ref[...])
    o_ref[0] = fin.T


def tail_fusion(attn, frame1, src1, params, *, H, W):
    N, C, HW = attn.shape

    def wmat(name, cin):
        wt, bs = params[name]
        return (wt.reshape(9 * cin, C).astype(jnp.bfloat16),
                bs.reshape(1, C).astype(jnp.float32))

    w_op, b_op = wmat("output_proj", C)
    w_ff, b_ff = wmat("feed_forward", C)
    w_f0, b_f0 = wmat("ff0", 2 * C)
    w_f2, b_f2 = wmat("ff2", C)
    w_fu, b_fu = params["fusion"]
    w_fu = w_fu.reshape(C, C).astype(jnp.bfloat16)
    b_fu = b_fu.reshape(1, C).astype(jnp.float32)

    def wspec(rows):
        return pl.BlockSpec((rows, C), lambda n: (0, 0))

    kern = functools.partial(_tail_kernel, H=H, W=W, C=C)
    return pl.pallas_call(
        kern,
        out_shape=jax.ShapeDtypeStruct((N, C, HW), jnp.float32),
        grid=(N,),
        in_specs=[
            pl.BlockSpec((1, C, HW), lambda n: (n, 0, 0)),
            pl.BlockSpec((1, H, W, C), lambda n: (n, 0, 0, 0)),
            pl.BlockSpec((1, H, W, C), lambda n: (n, 0, 0, 0)),
            wspec(9 * C), wspec(1),
            wspec(9 * C), wspec(1),
            wspec(18 * C), wspec(1),
            wspec(9 * C), wspec(1),
            wspec(C), wspec(1),
        ],
        out_specs=pl.BlockSpec((1, C, HW), lambda n: (n, 0, 0)),
        scratch_shapes=[
            pltpu.VMEM((H + 2, W + 2, C), jnp.bfloat16),
            pltpu.VMEM((H + 4, W + 4, 2 * C), jnp.bfloat16),
            pltpu.VMEM((H * W, 9 * C), jnp.bfloat16),
            pltpu.VMEM((H * W, 18 * C), jnp.bfloat16),
        ],
        compiler_params=pltpu.CompilerParams(
            dimension_semantics=("parallel",)),
    )(attn, frame1, src1,
      w_op, b_op, w_ff, b_ff, w_f0, b_f0, w_f2, b_f2, w_fu, b_fu)


# ----------------------------------------------------------------------------
# Parameter init (deterministic, synthetic - conv weights stored HWIO).
# ----------------------------------------------------------------------------
def init_params(key, d_model=32, n_heads=4, n_levels=3, n_points=4):
    c = d_model

    def conv_p(k, ks, cin, cout):
        k1, k2 = jax.random.split(k)
        w = jax.random.normal(k1, (ks, ks, cin, cout), jnp.float32) * 0.05
        b = jax.random.normal(k2, (cout,), jnp.float32) * 0.05
        return w, b

    ks = jax.random.split(key, 10)
    p = {}
    p["emb_qk"] = conv_p(ks[0], 3, 3 * c + 4, 3 * c)
    p["emb_v"] = conv_p(ks[1], 3, 3 * c, 3 * c)
    p["value_proj"] = conv_p(ks[2], 3, c, c)
    p["sampling_offsets"] = conv_p(ks[3], 3, 3 * c,
                                   n_heads * n_levels * n_points * 2)
    p["attention_weights"] = conv_p(ks[4], 3, 3 * c,
                                    n_heads * n_levels * n_points)
    p["output_proj"] = conv_p(ks[5], 3, c, c)
    p["feed_forward"] = conv_p(ks[6], 3, c, c)
    p["ff0"] = conv_p(ks[7], 3, 2 * c, c)      # dilation-2 conv
    p["ff2"] = conv_p(ks[8], 3, c, c)
    p["fusion"] = conv_p(ks[9], 1, c, c)
    return p


# ----------------------------------------------------------------------------
# Full DeformableAttnBlock_FUSION forward.
# ----------------------------------------------------------------------------
def deformable_attn_block_fusion(params, frame, srcframe, *,
                                 n_heads=4, n_levels=3, n_points=4):
    b, t, c, h, w = frame.shape
    assert t == 3 and n_levels == 3 and c % n_heads == 0
    hw = h * w
    dh = c // n_heads

    frame_nhwc = jnp.transpose(frame, (0, 1, 3, 4, 2)).astype(jnp.float32)
    src_nhwc = jnp.transpose(srcframe, (0, 1, 3, 4, 2)).astype(jnp.float32)

    # cat(frame[:,0], frame[:,1], frame[:,2], channel dim) -> t-major channels
    frame_cat = jnp.transpose(frame_nhwc, (0, 2, 3, 1, 4)).reshape(
        b, 1, h, w, t * c)

    # ---- fused emb_qk + emb_v (one conv, Cout = 6c), LeakyReLU(0.1) ---------
    # TODO(synk): the reference declares emb_qk with 3c+4 input channels but
    # its forward only ever feeds 3c (the 4 flow channels are never passed);
    # the extra weight columns are dead, so dropping them == zero-padding the
    # input; verify against the real call site if flow maps are ever used.
    w_qk, b_qk = params["emb_qk"]
    w_qk = w_qk[:, :, :t * c, :]
    w_v, b_v = params["emb_v"]
    emb = conv2d(frame_cat,
                 jnp.concatenate([w_qk, w_v], axis=-1),
                 jnp.concatenate([b_qk, b_v], axis=0), act=True)  # (b,hw,6c)
    queries = emb[:, :, :t * c].reshape(b, 1, h, w, t * c)
    value_e = jnp.transpose(emb[:, :, t * c:].reshape(b, h, w, t, c),
                            (0, 3, 1, 2, 4))                      # (b,t,h,w,c)

    # value_proj: all t frames in one grid step per batch (M = t*HW)
    value_p = conv2d(value_e, *params["value_proj"])              # (b,t*hw,c)

    # ---- fused sampling_offsets + attention_weights (one conv, Cout=144) ----
    w_off, b_off = params["sampling_offsets"]
    w_aw, b_aw = params["attention_weights"]
    n_off = n_heads * n_levels * n_points * 2
    oa = conv2d(queries,
                jnp.concatenate([w_off, w_aw], axis=-1),
                jnp.concatenate([b_off, b_aw], axis=0))           # (b,hw,144)
    offs = oa[:, :, :n_off].reshape(b, hw, n_heads, n_levels, n_points, 2)
    attw = oa[:, :, n_off:].reshape(b, hw, n_heads, n_levels * n_points)
    attw = jax.nn.softmax(attw, axis=-1).reshape(b, hw, n_heads,
                                                 n_levels, n_points)

    # reference points (valid_ratios == 1 since masks are all-zero)
    ref_y, ref_x = jnp.meshgrid(
        (jnp.arange(h, dtype=jnp.float32) + 0.5) / h,
        (jnp.arange(w, dtype=jnp.float32) + 0.5) / w,
        indexing="ij")
    ref_x = ref_x.reshape(hw)
    ref_y = ref_y.reshape(hw)

    # MSDA pixel coords (align_corners=False style): p = loc * size - 0.5
    px = (ref_x[None, :, None, None, None] + offs[..., 0] / w) * w - 0.5
    py = (ref_y[None, :, None, None, None] + offs[..., 1] / h) * h - 0.5

    def rearr(z):  # (b, hw, nh, L, P) -> (b, nh, L*P, hw)
        return jnp.transpose(z, (0, 2, 3, 4, 1)).reshape(
            b, n_heads, n_levels * n_points, hw)

    samp = jnp.concatenate([rearr(px), rearr(py), rearr(attw)],
                           axis=2).astype(jnp.float32)       # (b, nh, 3LP, hw)

    # value in (b, L, C*H, W) layout: the kernel's per-head slice is a
    # ready-to-matmul (DH*H, W) tile; bf16 for the MXU.
    val = jnp.transpose(value_p.reshape(b, t, h, w, c),
                        (0, 1, 4, 2, 3)).reshape(b, t, c * h, w)
    val = val.astype(jnp.bfloat16)

    attn = ms_deform_attn(val, samp, H=h, W=w, NH=n_heads, DH=dh,
                          L=n_levels, P=n_points)                 # (b, c, hw)

    # fused tail: output_proj .. fusion, one pallas_call, lane-dense output
    out = tail_fusion(attn, frame_nhwc[:, 1], src_nhwc[:, 1], params,
                      H=h, W=w)                                   # (b, c, hw)
    return out.reshape(b, c, h, w)


if __name__ == "__main__":
    key = jax.random.PRNGKey(0)
    k1, k2, k3 = jax.random.split(key, 3)
    b, t, c, h, w = 2, 3, 32, 16, 16
    frame = jax.random.normal(k1, (b, t, c, h, w), jnp.float32)
    srcframe = jax.random.normal(k2, (b, t, c, h, w), jnp.float32)
    params = init_params(k3, d_model=c, n_heads=4, n_levels=3, n_points=4)

    out = deformable_attn_block_fusion(params, frame, srcframe,
                                       n_heads=4, n_levels=3, n_points=4)
    out = jax.block_until_ready(out)
    assert out.shape == (b, c, h, w)
    assert jnp.all(jnp.isfinite(out))
    print("KERNEL_OK")
</pallas_src>

<mosaic_0001>
module attributes {stable_mosaic.version = 11 : i64} {
  func.func @_conv_kernel(%arg0: i32, %arg1: memref<1x1x18x18x96xbf16, #tpu.memory_space<vmem>>, %arg2: memref<864x192xbf16, #tpu.memory_space<vmem>>, %arg3: memref<1x192xf32, #tpu.memory_space<vmem>>, %arg4: memref<1x256x192xf32, #tpu.memory_space<vmem>>, %arg5: memref<256x864xbf16, #tpu.memory_space<vmem>>) attributes {dimension_semantics = [#tpu.dimension_semantics<parallel>], iteration_bounds = array<i64: 2>, scalar_prefetch = 0 : i64, scratch_operands = 1 : i64, tpu.core_type = #tpu.core_type<tc>, window_params = [{transform_indices = @transform_0, window_bounds = array<i64: 1, 1, 18, 18, 96>}, {pipeline_mode = #tpu.pipeline_mode<synchronous>, transform_indices = @transform_1, window_bounds = array<i64: 864, 192>}, {pipeline_mode = #tpu.pipeline_mode<synchronous>, transform_indices = @transform_2, window_bounds = array<i64: 1, 192>}, {transform_indices = @transform_3, window_bounds = array<i64: 1, 256, 192>}]} {
    %c0 = arith.constant 0 : index
    %c0_0 = arith.constant 0 : index
    %c0_1 = arith.constant 0 : index
    %c0_2 = arith.constant 0 : index
    %c0_3 = arith.constant 0 : index
    %0 = vector.load %arg1[%c0, %c0_0, %c0_1, %c0_2, %c0_3] : memref<1x1x18x18x96xbf16, #tpu.memory_space<vmem>>, vector<1x1x16x16x96xbf16>
    %1 = vector.shape_cast %0 : vector<1x1x16x16x96xbf16> to vector<16x16x96xbf16>
    %2 = vector.shape_cast %1 : vector<16x16x96xbf16> to vector<256x96xbf16>
    %c0_4 = arith.constant 0 : index
    %c0_5 = arith.constant 0 : index
    %3 = vector.load %arg5[%c0_4, %c0_5] : memref<256x864xbf16, #tpu.memory_space<vmem>>, vector<256x96xbf16>
    tpu.vector_store %arg5[%c0_4, %c0_5], %2 {strides = array<i32>} : memref<256x864xbf16, #tpu.memory_space<vmem>>, vector<256x96xbf16>,
    %c0_6 = arith.constant 0 : index
    %c0_7 = arith.constant 0 : index
    %c0_8 = arith.constant 0 : index
    %c1 = arith.constant 1 : index
    %c0_9 = arith.constant 0 : index
    %4 = vector.load %arg1[%c0_6, %c0_7, %c0_8, %c1, %c0_9] : memref<1x1x18x18x96xbf16, #tpu.memory_space<vmem>>, vector<1x1x16x16x96xbf16>
    %5 = vector.shape_cast %4 : vector<1x1x16x16x96xbf16> to vector<16x16x96xbf16>
    %6 = vector.shape_cast %5 : vector<16x16x96xbf16> to vector<256x96xbf16>
    %c0_10 = arith.constant 0 : index
    %c96 = arith.constant 96 : index
    %7 = vector.load %arg5[%c0_10, %c96] : memref<256x864xbf16, #tpu.memory_space<vmem>>, vector<256x96xbf16>
    tpu.vector_store %arg5[%c0_10, %c96], %6 {strides = array<i32>} : memref<256x864xbf16, #tpu.memory_space<vmem>>, vector<256x96xbf16>,
    %c0_11 = arith.constant 0 : index
    %c0_12 = arith.constant 0 : index
    %c0_13 = arith.constant 0 : index
    %c2 = arith.constant 2 : index
    %c0_14 = arith.constant 0 : index
    %8 = vector.load %arg1[%c0_11, %c0_12, %c0_13, %c2, %c0_14] : memref<1x1x18x18x96xbf16, #tpu.memory_space<vmem>>, vector<1x1x16x16x96xbf16>
    %9 = vector.shape_cast %8 : vector<1x1x16x16x96xbf16> to vector<16x16x96xbf16>
    %10 = vector.shape_cast %9 : vector<16x16x96xbf16> to vector<256x96xbf16>
    %c0_15 = arith.constant 0 : index
    %c192 = arith.constant 192 : index
    %11 = vector.load %arg5[%c0_15, %c192] : memref<256x864xbf16, #tpu.memory_space<vmem>>, vector<256x96xbf16>
    tpu.vector_store %arg5[%c0_15, %c192], %10 {strides = array<i32>} : memref<256x864xbf16, #tpu.memory_space<vmem>>, vector<256x96xbf16>,
    %c0_16 = arith.constant 0 : index
    %c0_17 = arith.constant 0 : index
    %c1_18 = arith.constant 1 : index
    %c0_19 = arith.constant 0 : index
    %c0_20 = arith.constant 0 : index
    %12 = vector.load %arg1[%c0_16, %c0_17, %c1_18, %c0_19, %c0_20] : memref<1x1x18x18x96xbf16, #tpu.memory_space<vmem>>, vector<1x1x16x16x96xbf16>
    %13 = vector.shape_cast %12 : vector<1x1x16x16x96xbf16> to vector<16x16x96xbf16>
    %14 = vector.shape_cast %13 : vector<16x16x96xbf16> to vector<256x96xbf16>
    %c0_21 = arith.constant 0 : index
    %c288 = arith.constant 288 : index
    %15 = vector.load %arg5[%c0_21, %c288] : memref<256x864xbf16, #tpu.memory_space<vmem>>, vector<256x96xbf16>
    tpu.vector_store %arg5[%c0_21, %c288], %14 {strides = array<i32>} : memref<256x864xbf16, #tpu.memory_space<vmem>>, vector<256x96xbf16>,
    %c0_22 = arith.constant 0 : index
    %c0_23 = arith.constant 0 : index
    %c1_24 = arith.constant 1 : index
    %c1_25 = arith.constant 1 : index
    %c0_26 = arith.constant 0 : index
    %16 = vector.load %arg1[%c0_22, %c0_23, %c1_24, %c1_25, %c0_26] : memref<1x1x18x18x96xbf16, #tpu.memory_space<vmem>>, vector<1x1x16x16x96xbf16>
    %17 = vector.shape_cast %16 : vector<1x1x16x16x96xbf16> to vector<16x16x96xbf16>
    %18 = vector.shape_cast %17 : vector<16x16x96xbf16> to vector<256x96xbf16>
    %c0_27 = arith.constant 0 : index
    %c384 = arith.constant 384 : index
    %19 = vector.load %arg5[%c0_27, %c384] : memref<256x864xbf16, #tpu.memory_space<vmem>>, vector<256x96xbf16>
    tpu.vector_store %arg5[%c0_27, %c384], %18 {strides = array<i32>} : memref<256x864xbf16, #tpu.memory_space<vmem>>, vector<256x96xbf16>,
    %c0_28 = arith.constant 0 : index
    %c0_29 = arith.constant 0 : index
    %c1_30 = arith.constant 1 : index
    %c2_31 = arith.constant 2 : index
    %c0_32 = arith.constant 0 : index
    %20 = vector.load %arg1[%c0_28, %c0_29, %c1_30, %c2_31, %c0_32] : memref<1x1x18x18x96xbf16, #tpu.memory_space<vmem>>, vector<1x1x16x16x96xbf16>
    %21 = vector.shape_cast %20 : vector<1x1x16x16x96xbf16> to vector<16x16x96xbf16>
    %22 = vector.shape_cast %21 : vector<16x16x96xbf16> to vector<256x96xbf16>
    %c0_33 = arith.constant 0 : index
    %c480 = arith.constant 480 : index
    %23 = vector.load %arg5[%c0_33, %c480] : memref<256x864xbf16, #tpu.memory_space<vmem>>, vector<256x96xbf16>
    tpu.vector_store %arg5[%c0_33, %c480], %22 {strides = array<i32>} : memref<256x864xbf16, #tpu.memory_space<vmem>>, vector<256x96xbf16>,
    %c0_34 = arith.constant 0 : index
    %c0_35 = arith.constant 0 : index
    %c2_36 = arith.constant 2 : index
    %c0_37 = arith.constant 0 : index
    %c0_38 = arith.constant 0 : index
    %24 = vector.load %arg1[%c0_34, %c0_35, %c2_36, %c0_37, %c0_38] : memref<1x1x18x18x96xbf16, #tpu.memory_space<vmem>>, vector<1x1x16x16x96xbf16>
    %25 = vector.shape_cast %24 : vector<1x1x16x16x96xbf16> to vector<16x16x96xbf16>
    %26 = vector.shape_cast %25 : vector<16x16x96xbf16> to vector<256x96xbf16>
    %c0_39 = arith.constant 0 : index
    %c576 = arith.constant 576 : index
    %27 = vector.load %arg5[%c0_39, %c576] : memref<256x864xbf16, #tpu.memory_space<vmem>>, vector<256x96xbf16>
    tpu.vector_store %arg5[%c0_39, %c576], %26 {strides = array<i32>} : memref<256x864xbf16, #tpu.memory_space<vmem>>, vector<256x96xbf16>,
    %c0_40 = arith.constant 0 : index
    %c0_41 = arith.constant 0 : index
    %c2_42 = arith.constant 2 : index
    %c1_43 = arith.constant 1 : index
    %c0_44 = arith.constant 0 : index
    %28 = vector.load %arg1[%c0_40, %c0_41, %c2_42, %c1_43, %c0_44] : memref<1x1x18x18x96xbf16, #tpu.memory_space<vmem>>, vector<1x1x16x16x96xbf16>
    %29 = vector.shape_cast %28 : vector<1x1x16x16x96xbf16> to vector<16x16x96xbf16>
    %30 = vector.shape_cast %29 : vector<16x16x96xbf16> to vector<256x96xbf16>
    %c0_45 = arith.constant 0 : index
    %c672 = arith.constant 672 : index
    %31 = vector.load %arg5[%c0_45, %c672] : memref<256x864xbf16, #tpu.memory_space<vmem>>, vector<256x96xbf16>
    tpu.vector_store %arg5[%c0_45, %c672], %30 {strides = array<i32>} : memref<256x864xbf16, #tpu.memory_space<vmem>>, vector<256x96xbf16>,
    %c0_46 = arith.constant 0 : index
    %c0_47 = arith.constant 0 : index
    %c2_48 = arith.constant 2 : index
    %c2_49 = arith.constant 2 : index
    %c0_50 = arith.constant 0 : index
    %32 = vector.load %arg1[%c0_46, %c0_47, %c2_48, %c2_49, %c0_50] : memref<1x1x18x18x96xbf16, #tpu.memory_space<vmem>>, vector<1x1x16x16x96xbf16>
    %33 = vector.shape_cast %32 : vector<1x1x16x16x96xbf16> to vector<16x16x96xbf16>
    %34 = vector.shape_cast %33 : vector<16x16x96xbf16> to vector<256x96xbf16>
    %c0_51 = arith.constant 0 : index
    %c768 = arith.constant 768 : index
    %35 = vector.load %arg5[%c0_51, %c768] : memref<256x864xbf16, #tpu.memory_space<vmem>>, vector<256x96xbf16>
    tpu.vector_store %arg5[%c0_51, %c768], %34 {strides = array<i32>} : memref<256x864xbf16, #tpu.memory_space<vmem>>, vector<256x96xbf16>,
    %c0_52 = arith.constant 0 : index
    %c0_53 = arith.constant 0 : index
    %36 = vector.load %arg5[%c0_52, %c0_53] : memref<256x864xbf16, #tpu.memory_space<vmem>>, vector<256x864xbf16>
    %c0_54 = arith.constant 0 : index
    %c0_55 = arith.constant 0 : index
    %37 = vector.load %arg2[%c0_54, %c0_55] : memref<864x192xbf16, #tpu.memory_space<vmem>>, vector<864x192xbf16>
    %cst = arith.constant dense<0.000000e+00> : vector<256x192xf32>
    %38 = tpu.matmul %36, %37, %cst {dimension_numbers = #tpu.dot_dimension_numbers<[1], [0], [0], [1], [0, 0, 1, 1], [], []>} : vector<256x864xbf16>, vector<864x192xbf16>, vector<256x192xf32> -> vector<256x192xf32>
    %c0_56 = arith.constant 0 : index
    %c0_57 = arith.constant 0 : index
    %39 = vector.load %arg3[%c0_56, %c0_57] : memref<1x192xf32, #tpu.memory_space<vmem>>, vector<1x192xf32>
    %40 = vector.broadcast %39 : vector<1x192xf32> to vector<256x192xf32>
    %41 = arith.addf %38, %40 : vector<256x192xf32>
    %cst_58 = arith.constant 0.000000e+00 : f32
    %42 = vector.broadcast %cst_58 : f32 to vector<256x192xf32>
    %43 = arith.cmpf oge, %41, %42 : vector<256x192xf32>
    %cst_59 = arith.constant 1.000000e-01 : f32
    %44 = vector.broadcast %cst_59 : f32 to vector<256x192xf32>
    %45 = arith.mulf %44, %41 : vector<256x192xf32>
    %46 = arith.select %43, %41, %45 : vector<256x192xi1>, vector<256x192xf32>
    %c0_60 = arith.constant 0 : index
    %c0_61 = arith.constant 0 : index
    %c0_62 = arith.constant 0 : index
    %47 = vector.load %arg4[%c0_60, %c0_61, %c0_62] : memref<1x256x192xf32, #tpu.memory_space<vmem>>, vector<1x256x192xf32>
    %48 = vector.shape_cast %47 : vector<1x256x192xf32> to vector<256x192xf32>
    %49 = vector.shape_cast %46 : vector<256x192xf32> to vector<1x256x192xf32>
    tpu.vector_store %arg4[%c0_60, %c0_61, %c0_62], %49 {strides = array<i32>} : memref<1x256x192xf32, #tpu.memory_space<vmem>>, vector<1x256x192xf32>,
    return
  }
  func.func @transform_0(%arg0: i32) -> (i32, i32, i32, i32, i32) {
    %c0_i32 = arith.constant 0 : i32
    %c0_i32_0 = arith.constant 0 : i32
    %c0_i32_1 = arith.constant 0 : i32
    %c0_i32_2 = arith.constant 0 : i32
    %c0_i32_3 = arith.constant 0 : i32
    return %arg0, %c0_i32, %c0_i32_0, %c0_i32_1, %c0_i32_2 : i32, i32, i32, i32, i32
  }
  func.func @transform_1(%arg0: i32) -> (i32, i32) {
    %c0_i32 = arith.constant 0 : i32
    %c0_i32_0 = arith.constant 0 : i32
    %c0_i32_1 = arith.constant 0 : i32
    return %c0_i32, %c0_i32_0 : i32, i32
  }
  func.func @transform_2(%arg0: i32) -> (i32, i32) {
    %c0_i32 = arith.constant 0 : i32
    %c0_i32_0 = arith.constant 0 : i32
    %c0_i32_1 = arith.constant 0 : i32
    return %c0_i32, %c0_i32_0 : i32, i32
  }
  func.func @transform_3(%arg0: i32) -> (i32, i32, i32) {
    %c0_i32 = arith.constant 0 : i32
    %c0_i32_0 = arith.constant 0 : i32
    %c0_i32_1 = arith.constant 0 : i32
    return %arg0, %c0_i32, %c0_i32_0 : i32, i32, i32
  }
}

</mosaic_0001>

<llo_original>
// kernel: tpu_custom_call.1
$region0: #{tpu_custom_call.1}
  #allocation0 [shape = 'u32[]', space=smem, size = 0x4, offset = 0x4, fixed_abs, tag = 'smem constant byte address 0x4 - core index']
  #allocation1 [shape = 'u32[144,128]{1,0:T(1,128)}', space=vmem, size = 0x12000, scoped, tag = 'internal scratch']
  #allocation2 [shape = 'bf16[256,864]{1,0:T(16,128)(2,1)}', space=vmem, size = 0x70000, scoped, tag = 'scratch operand']
  %s0 = inlined_call_operand.vmem [shape: bf16[2,1,18,18,96], index: 0, kind: input, shape index: {}]
  %s1 = inlined_call_operand.vmem [shape: bf16[864,192], index: 1, kind: input, shape index: {}]
  %s2 = inlined_call_operand.vmem [shape: f32[1,192], index: 2, kind: input, shape index: {}]
  %s3 = inlined_call_operand.vmem [shape: f32[2,256,192], index: 3, kind: output, shape index: {}]
  %s4 = sld [smem:[#allocation0]]
  $region45: #{tpu_custom_call.1} parent=0
    _
  %s6 = ssub.s32 1, %s4
  %s7 = scalar_select 0, %s6, %s4
  loop: start=0, step=1, limit=4
  $region2: #{tpu_custom_call.1} parent=0 // loop_pre_header
    _
  $region3: #{tpu_custom_call.1} parent=0 // loop_header
    %s9 = sphi 0, %s13
    %p10 = scmp.ge.s32.totalorder %s9, 4
    %s19 = sphi 0, %s21
    %s22 = sphi 0, %s19
    %s23 = sphi 0, %s22
    %s39 = sphi 0, %s23
    %s43 = sphi 0, %s43
    %s45 = sphi 0, %s43
    %s46 = sphi 0, %s45
    %s60 = sphi 0, %s46
    %s64 = sphi 0, %s64
    %s66 = sphi 0, %s64
    %s67 = sphi 0, %s66
    %s81 = sphi 0, %s67
    %s87 = sphi 0, %s89
    %s90 = sphi 0, %s87
    %s91 = sphi 0, %s90
    %s107 = sphi 0, %s91
  $region4: #{tpu_custom_call.1} parent=0 // loop_header_branch
    %12 = sbr.rel (%p10) target = $region8
  $region5: #{tpu_custom_call.1} parent=0 // loop_body
    %s14 = ssub.s32 %s9, 1
    %s15 = ssub.s32 %s9, 2
    %s16 = sadd.s32 %s9, 1
    %s17 = ssub.s32 %s9, %s16
    %p18 = scmp.eq.s32.totalorder %s17, 0
    %s20 = sadd.s32 %s19, 1
    %s21 = scalar_select %p18, %s19, %s20
    %p24 = pneg %p18
    %p25 = scmp.eq.s32.totalorder %s9, 1
    %p26 = por %p24, %p25
    %p27 = scmp.ne.s32.totalorder %s19, %s22
    %p28 = scmp.eq.s32.totalorder %s9, 0
    %p29 = por %p27, %p28
    %p30 = scmp.ne.s32.totalorder %s19, %s22
    %p31 = scmp.eq.s32.totalorder %s14, 1
    %p32 = por %p30, %p31
    %p33 = scmp.ne.s32.totalorder %s22, %s23
    %p34 = scmp.eq.s32.totalorder %s14, 0
    %p35 = por %p33, %p34
    %p36 = scmp.ne.s32.totalorder %s22, %s23
    %p37 = scmp.eq.s32.totalorder %s15, 1
    %p38 = por %p36, %p37
    %p40 = scmp.ne.s32.totalorder %s23, %s39
    %p41 = scmp.eq.s32.totalorder %s15, 0
    %p42 = por %p40, %p41
    %s44 = sadd.s32 %s43, 1
    %p47 = scmp.eq.s32.totalorder %s9, 1
    %p48 = scmp.ne.s32.totalorder %s43, %s45
    %p49 = scmp.eq.s32.totalorder %s9, 0
    %p50 = por %p48, %p49
    %p51 = scmp.ne.s32.totalorder %s43, %s45
    %p52 = scmp.eq.s32.totalorder %s14, 1
    %p53 = por %p51, %p52
    %p54 = scmp.ne.s32.totalorder %s45, %s46
    %p55 = scmp.eq.s32.totalorder %s14, 0
    %p56 = por %p54, %p55
    %p57 = scmp.ne.s32.totalorder %s45, %s46
    %p58 = scmp.eq.s32.totalorder %s15, 1
    %p59 = por %p57, %p58
    %p61 = scmp.ne.s32.totalorder %s46, %s60
    %p62 = scmp.eq.s32.totalorder %s15, 0
    %p63 = por %p61, %p62
    %s65 = sadd.s32 %s64, 1
    %p68 = scmp.eq.s32.totalorder %s9, 1
    %p69 = scmp.ne.s32.totalorder %s64, %s66
    %p70 = scmp.eq.s32.totalorder %s9, 0
    %p71 = por %p69, %p70
    %p72 = scmp.ne.s32.totalorder %s64, %s66
    %p73 = scmp.eq.s32.totalorder %s14, 1
    %p74 = por %p72, %p73
    %p75 = scmp.ne.s32.totalorder %s66, %s67
    %p76 = scmp.eq.s32.totalorder %s14, 0
    %p77 = por %p75, %p76
    %p78 = scmp.ne.s32.totalorder %s66, %s67
    %p79 = scmp.eq.s32.totalorder %s15, 1
    %p80 = por %p78, %p79
    %p82 = scmp.ne.s32.totalorder %s67, %s81
    %p83 = scmp.eq.s32.totalorder %s15, 0
    %p84 = por %p82, %p83
    %s85 = ssub.s32 %s9, %s16
    %p86 = scmp.eq.s32.totalorder %s85, 0
    %s88 = sadd.s32 %s87, 1
    %s89 = scalar_select %p86, %s87, %s88
    %p92 = pneg %p86
    %p93 = scmp.eq.s32.totalorder %s9, 1
    %p94 = por %p92, %p93
    %p95 = scmp.ne.s32.totalorder %s87, %s90
    %p96 = scmp.eq.s32.totalorder %s9, 0
    %p97 = por %p95, %p96
    %p98 = scmp.ne.s32.totalorder %s87, %s90
    %p99 = scmp.eq.s32.totalorder %s14, 1
    %p100 = por %p98, %p99
    %p101 = scmp.ne.s32.totalorder %s90, %s91
    %p102 = scmp.eq.s32.totalorder %s14, 0
    %p103 = por %p101, %p102
    %p104 = scmp.ne.s32.totalorder %s90, %s91
    %p105 = scmp.eq.s32.totalorder %s15, 1
    %p106 = por %p104, %p105
    %p108 = scmp.ne.s32.totalorder %s91, %s107
    %p109 = scmp.eq.s32.totalorder %s15, 0
    %p110 = por %p108, %p109
    %p111 = scmp.le.s32.totalorder 1, %s9
    %p112 = scmp.lt.s32.totalorder %s9, 3
    %p113 = pnand %p111, %p112
    %p114 = pneg %p113
    // Predicated region
    $region9: #{tpu_custom_call.1} parent=5 // pred_check
      _
    $region10: #{tpu_custom_call.1} parent=5 // pred_check_branch
      %116 = sbr.rel (%p113) target = $region12
    $region11: #{tpu_custom_call.1} parent=5 // pred_region
      %s117 = ssub.s32 %s9, 1
      // Predicated region
      $region13: #{tpu_custom_call.1} parent=11 // pred_check
        %p118 = pneg %p56
      $region14: #{tpu_custom_call.1} parent=11 // pred_check_branch
        %120 = sbr.rel (%p118) target = $region16
      $region15: #{tpu_custom_call.1} parent=11 // pred_region
        _
      $region16: #{tpu_custom_call.1} parent=11 // pred_fallthru
        _
      // Predicated region
      $region17: #{tpu_custom_call.1} parent=11 // pred_check
        %p121 = pneg %p77
      $region18: #{tpu_custom_call.1} parent=11 // pred_check_branch
        %123 = sbr.rel (%p121) target = $region20
      $region19: #{tpu_custom_call.1} parent=11 // pred_region
        _
      $region20: #{tpu_custom_call.1} parent=11 // pred_fallthru
        _
    $region12: #{tpu_custom_call.1} parent=5 // pred_fallthru
      _
    %p124 = scmp.lt.s32.totalorder %s9, 2
    // Predicated region
    $region21: #{tpu_custom_call.1} parent=5 // pred_check
      %p125 = pneg %p124
    $region22: #{tpu_custom_call.1} parent=5 // pred_check_branch
      %127 = sbr.rel (%p125) target = $region24
    $region23: #{tpu_custom_call.1} parent=5 // pred_region
      // Predicated region
      $region25: #{tpu_custom_call.1} parent=23 // pred_check
        %p128 = pneg %p29
      $region26: #{tpu_custom_call.1} parent=23 // pred_check_branch
        %130 = sbr.rel (%p128) target = $region28
      $region27: #{tpu_custom_call.1} parent=23 // pred_region
        %p131 = scmp.lt.s32.totalorder %s9, 1
        %s132 = scalar_select %p131, %s9, 1
        %s133 = smul.addr %s132, 54
        %s134 = smul.addr %s133, 4
        %s135 = scalar_lea.vmem %s0, %s134
      $region28: #{tpu_custom_call.1} parent=23 // pred_fallthru
        _
    $region24: #{tpu_custom_call.1} parent=5 // pred_fallthru
      _
    %p136 = scmp.le.s32.totalorder 1, %s9
    %p137 = scmp.lt.s32.totalorder %s9, 3
    %p138 = pnand %p136, %p137
    %p139 = pneg %p138
    // Predicated region
    $region29: #{tpu_custom_call.1} parent=5 // pred_check
      _
    $region30: #{tpu_custom_call.1} parent=5 // pred_check_branch
      %141 = sbr.rel (%p138) target = $region32
    $region31: #{tpu_custom_call.1} parent=5 // pred_region
      %s142 = ssub.s32 %s9, 1
      %p143 = scmp.lt.s32.totalorder %s14, 1
      %s144 = scalar_select %p143, %s14, 1
      %s145 = smul.addr %s144, 54
      %s146 = smul.addr %s145, 4
      %s147 = scalar_lea.vmem %s0, %s146
      %p148 = pneg %p35
      %p149 = pneg %p32
      %p150 = pneg %p56
      %p151 = pneg %p53
      %p152 = pneg %p77
      %p153 = pneg %p74
      %p154 = pneg %p103
      %p155 = pneg %p100
      %p156 = scmp.lt.s32.totalorder %s14, 1
      %s157 = scalar_select %p156, %s14, 1
      %s158 = smul.addr %s157, 64
      %s159 = smul.addr %s158, 8
      %s160 = scalar_lea.vmem %s3, %s159
      %p161 = scmp.lt.s32.totalorder %s14, 1
      %s162 = scalar_select %p161, %s14, 1
      %s163 = smul.addr %s162, 54
      %s164 = smul.addr %s163, 4
      %s165 = scalar_lea.vmem %s0, %s164
      %p166 = scmp.lt.s32.totalorder %s14, 1
      %s167 = scalar_select %p166, %s14, 1
      %s168 = smul.addr %s167, 64
      %s169 = smul.addr %s168, 8
      %s170 = scalar_lea.vmem %s3, %s169
      %v172 = vld [vmem:[%s165] sm:$0xf]
      %v173 = vld [vmem:[%s165 + $0x4] sm:$0xf]
      %v174 = vld [vmem:[%s165 + $0xc] sm:$0xf]
      %v175 = vld [vmem:[%s165 + $0x10] sm:$0xf]
      %v176 = vld [vmem:[%s165 + $0x18] sm:$0xf]
      %v177 = vld [vmem:[%s165 + $0x1c] sm:$0xf]
      %v178 = vld [vmem:[%s165 + $0x24] sm:$0xf]
      %v179 = vld [vmem:[%s165 + $0x28] sm:$0xf]
      %v180 = vld [vmem:[%s165 + $0x30] sm:$0xf]
      %v181 = vld [vmem:[%s165 + $0x34] sm:$0xf]
      %v182 = vld [vmem:[%s165 + $0x3c] sm:$0xf]
      %v183 = vld [vmem:[%s165 + $0x40] sm:$0xf]
      %v184 = vld [vmem:[%s165 + $0x48] sm:$0xf]
      %v185 = vld [vmem:[%s165 + $0x4c] sm:$0xf]
      %v186 = vld [vmem:[%s165 + $0x54] sm:$0xf]
      %v187 = vld [vmem:[%s165 + $0x58] sm:$0xf]
      %v188 = vld [vmem:[%s165 + $0x60] sm:$0xf]
      %v189 = vld [vmem:[%s165 + $0x64] sm:$0xf]
      %v190 = vld [vmem:[%s165 + $0x6c] sm:$0xf]
      %v191 = vld [vmem:[%s165 + $0x70] sm:$0xf]
      %v192 = vld [vmem:[%s165 + $0x78] sm:$0xf]
      %v193 = vld [vmem:[%s165 + $0x7c] sm:$0xf]
      %v194 = vld [vmem:[%s165 + $0x84] sm:$0xf]
      %v195 = vld [vmem:[%s165 + $0x88] sm:$0xf]
      %v196 = vld [vmem:[%s165 + $0x90] sm:$0xf]
      %v197 = vld [vmem:[%s165 + $0x94] sm:$0xf]
      %v198 = vld [vmem:[%s165 + $0x9c] sm:$0xf]
      %v199 = vld [vmem:[%s165 + $0xa0] sm:$0xf]
      %v200 = vld [vmem:[%s165 + $0xa8] sm:$0xf]
      %v201 = vld [vmem:[%s165 + $0xac] sm:$0xf]
      %v202 = vld [vmem:[%s165 + $0xb4] sm:$0xf]
      %v203 = vld [vmem:[%s165 + $0xb8] sm:$0xf]
      %v236 = vunpack.c.l.b16 %v172
      %v237 = vunpack.c.l.b16 %v173
      %v238 = vunpack.c.l.b16 %v174
      %v239 = vunpack.c.l.b16 %v175
      %v240 = vunpack.c.l.b16 %v176
      %v241 = vunpack.c.l.b16 %v177
      %v242 = vunpack.c.l.b16 %v178
      %v243 = vunpack.c.l.b16 %v179
      %v244 = vunpack.c.l.b16 %v180
      %v245 = vunpack.c.l.b16 %v181
      %v246 = vunpack.c.l.b16 %v182
      %v247 = vunpack.c.l.b16 %v183
      %v248 = vunpack.c.l.b16 %v184
      %v249 = vunpack.c.l.b16 %v185
      %v250 = vunpack.c.l.b16 %v186
      %v251 = vunpack.c.l.b16 %v187
      %v252 = vunpack.c.l.b16 %v188
      %v253 = vunpack.c.l.b16 %v189
      %v254 = vunpack.c.l.b16 %v190
      %v255 = vunpack.c.l.b16 %v191
      %v256 = vunpack.c.l.b16 %v192
      %v257 = vunpack.c.l.b16 %v193
      %v258 = vunpack.c.l.b16 %v194
      %v259 = vunpack.c.l.b16 %v195
      %v260 = vunpack.c.l.b16 %v196
      %v261 = vunpack.c.l.b16 %v197
      %v262 = vunpack.c.l.b16 %v198
      %v263 = vunpack.c.l.b16 %v199
      %v264 = vunpack.c.l.b16 %v200
      %v265 = vunpack.c.l.b16 %v201
      %v266 = vunpack.c.l.b16 %v202
      %v267 = vunpack.c.l.b16 %v203
      %v268 = vpack.c.b16 %v237, %v236
      %v269 = vpack.c.b16 %v239, %v238
      %v270 = vpack.c.b16 %v241, %v240
      %v271 = vpack.c.b16 %v243, %v242
      %v272 = vpack.c.b16 %v245, %v244
      %v273 = vpack.c.b16 %v247, %v246
      %v274 = vpack.c.b16 %v249, %v248
      %v275 = vpack.c.b16 %v251, %v250
      %v276 = vpack.c.b16 %v253, %v252
      %v277 = vpack.c.b16 %v255, %v254
      %v278 = vpack.c.b16 %v257, %v256
      %v279 = vpack.c.b16 %v259, %v258
      %v280 = vpack.c.b16 %v261, %v260
      %v281 = vpack.c.b16 %v263, %v262
      %v282 = vpack.c.b16 %v265, %v264
      %v283 = vpack.c.b16 %v267, %v266
      %vm300 = vcmask 785408
      %301 = vst.msk [vmem:[#allocation2] sm:$0xff] %vm300, %v268
      %302 = vst.msk [vmem:[#allocation2 + $0x38] sm:$0xff] %vm300, %v269
      %303 = vst.msk [vmem:[#allocation2 + $0x70] sm:$0xff] %vm300, %v270
      %304 = vst.msk [vmem:[#allocation2 + $0xa8] sm:$0xff] %vm300, %v271
      %305 = vst.msk [vmem:[#allocation2 + $0xe0] sm:$0xff] %vm300, %v272
      %306 = vst.msk [vmem:[#allocation2 + $0x118] sm:$0xff] %vm300, %v273
      %307 = vst.msk [vmem:[#allocation2 + $0x150] sm:$0xff] %vm300, %v274
      %308 = vst.msk [vmem:[#allocation2 + $0x188] sm:$0xff] %vm300, %v275
      %309 = vst.msk [vmem:[#allocation2 + $0x1c0] sm:$0xff] %vm300, %v276
      %310 = vst.msk [vmem:[#allocation2 + $0x1f8] sm:$0xff] %vm300, %v277
      %311 = vst.msk [vmem:[#allocation2 + $0x230] sm:$0xff] %vm300, %v278
      %312 = vst.msk [vmem:[#allocation2 + $0x268] sm:$0xff] %vm300, %v279
      %313 = vst.msk [vmem:[#allocation2 + $0x2a0] sm:$0xff] %vm300, %v280
      %314 = vst.msk [vmem:[#allocation2 + $0x2d8] sm:$0xff] %vm300, %v281
      %315 = vst.msk [vmem:[#allocation2 + $0x310] sm:$0xff] %vm300, %v282
      %316 = vst.msk [vmem:[#allocation2 + $0x348] sm:$0xff] %vm300, %v283
      %v317 = vld [vmem:[%s165] sm:$0xf]
      %v318 = vld [vmem:[%s165 + $0x4] sm:$0xf]
      %v319 = vld [vmem:[%s165 + $0x8] sm:$0x1]
      %v320 = vld [vmem:[%s165 + $0xc] sm:$0xf]
      %v321 = vld [vmem:[%s165 + $0x10] sm:$0xf]
      %v322 = vld [vmem:[%s165 + $0x14] sm:$0x1]
      %v323 = vld [vmem:[%s165 + $0x18] sm:$0xf]
      %v324 = vld [vmem:[%s165 + $0x1c] sm:$0xf]
      %v325 = vld [vmem:[%s165 + $0x20] sm:$0x1]
      %v326 = vld [vmem:[%s165 + $0x24] sm:$0xf]
      %v327 = vld [vmem:[%s165 + $0x28] sm:$0xf]
      %v328 = vld [vmem:[%s165 + $0x2c] sm:$0x1]
      %v329 = vld [vmem:[%s165 + $0x30] sm:$0xf]
      %v330 = vld [vmem:[%s165 + $0x34] sm:$0xf]
      %v331 = vld [vmem:[%s165 + $0x38] sm:$0x1]
      %v332 = vld [vmem:[%s165 + $0x3c] sm:$0xf]
      %v333 = vld [vmem:[%s165 + $0x40] sm:$0xf]
      %v334 = vld [vmem:[%s165 + $0x44] sm:$0x1]
      %v335 = vld [vmem:[%s165 + $0x48] sm:$0xf]
      %v336 = vld [vmem:[%s165 + $0x4c] sm:$0xf]
      %v337 = vld [vmem:[%s165 + $0x50] sm:$0x1]
      %v338 = vld [vmem:[%s165 + $0x54] sm:$0xf]
      %v339 = vld [vmem:[%s165 + $0x58] sm:$0xf]
      %v340 = vld [vmem:[%s165 + $0x5c] sm:$0x1]
      %v341 = vld [vmem:[%s165 + $0x60] sm:$0xf]
      %v342 = vld [vmem:[%s165 + $0x64] sm:$0xf]
      %v343 = vld [vmem:[%s165 + $0x68] sm:$0x1]
      %v344 = vld [vmem:[%s165 + $0x6c] sm:$0xf]
      %v345 = vld [vmem:[%s165 + $0x70] sm:$0xf]
      %v346 = vld [vmem:[%s165 + $0x74] sm:$0x1]
      %v347 = vld [vmem:[%s165 + $0x78] sm:$0xf]
      %v348 = vld [vmem:[%s165 + $0x7c] sm:$0xf]
      %v349 = vld [vmem:[%s165 + $0x80] sm:$0x1]
      %v350 = vld [vmem:[%s165 + $0x84] sm:$0xf]
      %v351 = vld [vmem:[%s165 + $0x88] sm:$0xf]
      %v352 = vld [vmem:[%s165 + $0x8c] sm:$0x1]
      %v353 = vld [vmem:[%s165 + $0x90] sm:$0xf]
      %v354 = vld [vmem:[%s165 + $0x94] sm:$0xf]
      %v355 = vld [vmem:[%s165 + $0x98] sm:$0x1]
      %v356 = vld [vmem:[%s165 + $0x9c] sm:$0xf]
      %v357 = vld [vmem:[%s165 + $0xa0] sm:$0xf]
      %v358 = vld [vmem:[%s165 + $0xa4] sm:$0x1]
      %v359 = vld [vmem:[%s165 + $0xa8] sm:$0xf]
      %v360 = vld [vmem:[%s165 + $0xac] sm:$0xf]
      %v361 = vld [vmem:[%s165 + $0xb0] sm:$0x1]
      %v362 = vld [vmem:[%s165 + $0xb4] sm:$0xf]
      %v363 = vld [vmem:[%s165 + $0xb8] sm:$0xf]
      %v364 = vld [vmem:[%s165 + $0xbc] sm:$0x1]
      %vm365 = vsmask.f32 3328
      %vm366 = vsmask.f32 7440
      %vm367 = vmor %vm365, %vm366
      %v369 = vshrl.u32 %v317, 16
      %v371 = vrot.slane %v369, 4
      %v372 = vshll.u32 %v317, 16
      %v374 = vrot.slane %v372, 5
      %v375 = vor.u32 %v371, %v374
      %v376 = vrot.slane %v375, 4
      %v378 = vshll.u32 %v318, 16
      %v380 = vrot.slane %v378, 5
      %v381 = vsel %vm367, %v376, %v380
      %v382 = vshrl.u32 %v318, 16
      %v384 = vrot.slane %v382, 4
      %v385 = vor.u32 %v384, %v380
      %v386 = vrot.slane %v385, 4
      %v388 = vshll.u32 %v319, 16
      %v390 = vrot.slane %v388, 5
      %v391 = vsel %vm367, %v386, %v390
      %v393 = vshrl.u32 %v320, 16
      %v395 = vrot.slane %v393, 4
      %v396 = vshll.u32 %v320, 16
      %v398 = vrot.slane %v396, 5
      %v399 = vor.u32 %v395, %v398
      %v400 = vrot.slane %v399, 4
      %v402 = vshll.u32 %v321, 16
      %v404 = vrot.slane %v402, 5
      %v405 = vsel %vm367, %v400, %v404
      %v406 = vshrl.u32 %v321, 16
      %v408 = vrot.slane %v406, 4
      %v409 = vor.u32 %v408, %v404
      %v410 = vrot.slane %v409, 4
      %v412 = vshll.u32 %v322, 16
      %v414 = vrot.slane %v412, 5
      %v415 = vsel %vm367, %v410, %v414
      %v417 = vshrl.u32 %v323, 16
      %v419 = vrot.slane %v417, 4
      %v420 = vshll.u32 %v323, 16
      %v422 = vrot.slane %v420, 5
      %v423 = vor.u32 %v419, %v422
      %v424 = vrot.slane %v423, 4
      %v426 = vshll.u32 %v324, 16
      %v428 = vrot.slane %v426, 5
      %v429 = vsel %vm367, %v424, %v428
      %v430 = vshrl.u32 %v324, 16
      %v432 = vrot.slane %v430, 4
      %v433 = vor.u32 %v432, %v428
      %v434 = vrot.slane %v433, 4
      %v436 = vshll.u32 %v325, 16
      %v438 = vrot.slane %v436, 5
      %v439 = vsel %vm367, %v434, %v438
      %v441 = vshrl.u32 %v326, 16
      %v443 = vrot.slane %v441, 4
      %v444 = vshll.u32 %v326, 16
      %v446 = vrot.slane %v444, 5
      %v447 = vor.u32 %v443, %v446
      %v448 = vrot.slane %v447, 4
      %v450 = vshll.u32 %v327, 16
      %v452 = vrot.slane %v450, 5
      %v453 = vsel %vm367, %v448, %v452
      %v454 = vshrl.u32 %v327, 16
      %v456 = vrot.slane %v454, 4
      %v457 = vor.u32 %v456, %v452
      %v458 = vrot.slane %v457, 4
      %v460 = vshll.u32 %v328, 16
      %v462 = vrot.slane %v460, 5
      %v463 = vsel %vm367, %v458, %v462
      %v465 = vshrl.u32 %v329, 16
      %v467 = vrot.slane %v465, 4
      %v468 = vshll.u32 %v329, 16
      %v470 = vrot.slane %v468, 5
      %v471 = vor.u32 %v467, %v470
      %v472 = vrot.slane %v471, 4
      %v474 = vshll.u32 %v330, 16
      %v476 = vrot.slane %v474, 5
      %v477 = vsel %vm367, %v472, %v476
      %v478 = vshrl.u32 %v330, 16
      %v480 = vrot.slane %v478, 4
      %v481 = vor.u32 %v480, %v476
      %v482 = vrot.slane %v481, 4
      %v484 = vshll.u32 %v331, 16
      %v486 = vrot.slane %v484, 5
      %v487 = vsel %vm367, %v482, %v486
      %v489 = vshrl.u32 %v332, 16
      %v491 = vrot.slane %v489, 4
      %v492 = vshll.u32 %v332, 16
      %v494 = vrot.slane %v492, 5
      %v495 = vor.u32 %v491, %v494
      %v496 = vrot.slane %v495, 4
      %v498 = vshll.u32 %v333, 16
      %v500 = vrot.slane %v498, 5
      %v501 = vsel %vm367, %v496, %v500
      %v502 = vshrl.u32 %v333, 16
      %v504 = vrot.slane %v502, 4
      %v505 = vor.u32 %v504, %v500
      %v506 = vrot.slane %v505, 4
      %v508 = vshll.u32 %v334, 16
      %v510 = vrot.slane %v508, 5
      %v511 = vsel %vm367, %v506, %v510
      %v513 = vshrl.u32 %v335, 16
      %v515 = vrot.slane %v513, 4
      %v516 = vshll.u32 %v335, 16
      %v518 = vrot.slane %v516, 5
      %v519 = vor.u32 %v515, %v518
      %v520 = vrot.slane %v519, 4
      %v522 = vshll.u32 %v336, 16
      %v524 = vrot.slane %v522, 5
      %v525 = vsel %vm367, %v520, %v524
      %v526 = vshrl.u32 %v336, 16
      %v528 = vrot.slane %v526, 4
      %v529 = vor.u32 %v528, %v524
      %v530 = vrot.slane %v529, 4
      %v532 = vshll.u32 %v337, 16
      %v534 = vrot.slane %v532, 5
      %v535 = vsel %vm367, %v530, %v534
      %v537 = vshrl.u32 %v338, 16
      %v539 = vrot.slane %v537, 4
      %v540 = vshll.u32 %v338, 16
      %v542 = vrot.slane %v540, 5
      %v543 = vor.u32 %v539, %v542
      %v544 = vrot.slane %v543, 4
      %v546 = vshll.u32 %v339, 16
      %v548 = vrot.slane %v546, 5
      %v549 = vsel %vm367, %v544, %v548
      %v550 = vshrl.u32 %v339, 16
      %v552 = vrot.slane %v550, 4
      %v553 = vor.u32 %v552, %v548
      %v554 = vrot.slane %v553, 4
      %v556 = vshll.u32 %v340, 16
      %v558 = vrot.slane %v556, 5
      %v559 = vsel %vm367, %v554, %v558
      %v561 = vshrl.u32 %v341, 16
      %v563 = vrot.slane %v561, 4
      %v564 = vshll.u32 %v341, 16
      %v566 = vrot.slane %v564, 5
      %v567 = vor.u32 %v563, %v566
      %v568 = vrot.slane %v567, 4
      %v570 = vshll.u32 %v342, 16
      %v572 = vrot.slane %v570, 5
      %v573 = vsel %vm367, %v568, %v572
      %v574 = vshrl.u32 %v342, 16
      %v576 = vrot.slane %v574, 4
      %v577 = vor.u32 %v576, %v572
      %v578 = vrot.slane %v577, 4
      %v580 = vshll.u32 %v343, 16
      %v582 = vrot.slane %v580, 5
      %v583 = vsel %vm367, %v578, %v582
      %v585 = vshrl.u32 %v344, 16
      %v587 = vrot.slane %v585, 4
      %v588 = vshll.u32 %v344, 16
      %v590 = vrot.slane %v588, 5
      %v591 = vor.u32 %v587, %v590
      %v592 = vrot.slane %v591, 4
      %v594 = vshll.u32 %v345, 16
      %v596 = vrot.slane %v594, 5
      %v597 = vsel %vm367, %v592, %v596
      %v598 = vshrl.u32 %v345, 16
      %v600 = vrot.slane %v598, 4
      %v601 = vor.u32 %v600, %v596
      %v602 = vrot.slane %v601, 4
      %v604 = vshll.u32 %v346, 16
      %v606 = vrot.slane %v604, 5
      %v607 = vsel %vm367, %v602, %v606
      %v609 = vshrl.u32 %v347, 16
      %v611 = vrot.slane %v609, 4
      %v612 = vshll.u32 %v347, 16
      %v614 = vrot.slane %v612, 5
      %v615 = vor.u32 %v611, %v614
      %v616 = vrot.slane %v615, 4
      %v618 = vshll.u32 %v348, 16
      %v620 = vrot.slane %v618, 5
      %v621 = vsel %vm367, %v616, %v620
      %v622 = vshrl.u32 %v348, 16
      %v624 = vrot.slane %v622, 4
      %v625 = vor.u32 %v624, %v620
      %v626 = vrot.slane %v625, 4
      %v628 = vshll.u32 %v349, 16
      %v630 = vrot.slane %v628, 5
      %v631 = vsel %vm367, %v626, %v630
      %v633 = vshrl.u32 %v350, 16
      %v635 = vrot.slane %v633, 4
      %v636 = vshll.u32 %v350, 16
      %v638 = vrot.slane %v636, 5
      %v639 = vor.u32 %v635, %v638
      %v640 = vrot.slane %v639, 4
      %v642 = vshll.u32 %v351, 16
      %v644 = vrot.slane %v642, 5
      %v645 = vsel %vm367, %v640, %v644
      %v646 = vshrl.u32 %v351, 16
      %v648 = vrot.slane %v646, 4
      %v649 = vor.u32 %v648, %v644
      %v650 = vrot.slane %v649, 4
      %v652 = vshll.u32 %v352, 16
      %v654 = vrot.slane %v652, 5
      %v655 = vsel %vm367, %v650, %v654
      %v657 = vshrl.u32 %v353, 16
      %v659 = vrot.slane %v657, 4
      %v660 = vshll.u32 %v353, 16
      %v662 = vrot.slane %v660, 5
      %v663 = vor.u32 %v659, %v662
      %v664 = vrot.slane %v663, 4
      %v666 = vshll.u32 %v354, 16
      %v668 = vrot.slane %v666, 5
      %v669 = vsel %vm367, %v664, %v668
      %v670 = vshrl.u32 %v354, 16
      %v672 = vrot.slane %v670, 4
      %v673 = vor.u32 %v672, %v668
      %v674 = vrot.slane %v673, 4
      %v676 = vshll.u32 %v355, 16
      %v678 = vrot.slane %v676, 5
      %v679 = vsel %vm367, %v674, %v678
      %v681 = vshrl.u32 %v356, 16
      %v683 = vrot.slane %v681, 4
      %v684 = vshll.u32 %v356, 16
      %v686 = vrot.slane %v684, 5
      %v687 = vor.u32 %v683, %v686
      %v688 = vrot.slane %v687, 4
      %v690 = vshll.u32 %v357, 16
      %v692 = vrot.slane %v690, 5
      %v693 = vsel %vm367, %v688, %v692
      %v694 = vshrl.u32 %v357, 16
      %v696 = vrot.slane %v694, 4
      %v697 = vor.u32 %v696, %v692
      %v698 = vrot.slane %v697, 4
      %v700 = vshll.u32 %v358, 16
      %v702 = vrot.slane %v700, 5
      %v703 = vsel %vm367, %v698, %v702
      %v705 = vshrl.u32 %v359, 16
      %v707 = vrot.slane %v705, 4
      %v708 = vshll.u32 %v359, 16
      %v710 = vrot.slane %v708, 5
      %v711 = vor.u32 %v707, %v710
      %v712 = vrot.slane %v711, 4
      %v714 = vshll.u32 %v360, 16
      %v716 = vrot.slane %v714, 5
      %v717 = vsel %vm367, %v712, %v716
      %v718 = vshrl.u32 %v360, 16
      %v720 = vrot.slane %v718, 4
      %v721 = vor.u32 %v720, %v716
      %v722 = vrot.slane %v721, 4
      %v724 = vshll.u32 %v361, 16
      %v726 = vrot.slane %v724, 5
      %v727 = vsel %vm367, %v722, %v726
      %v729 = vshrl.u32 %v362, 16
      %v731 = vrot.slane %v729, 4
      %v732 = vshll.u32 %v362, 16
      %v734 = vrot.slane %v732, 5
      %v735 = vor.u32 %v731, %v734
      %v736 = vrot.slane %v735, 4
      %v738 = vshll.u32 %v363, 16
      %v740 = vrot.slane %v738, 5
      %v741 = vsel %vm367, %v736, %v740
      %v742 = vshrl.u32 %v363, 16
      %v744 = vrot.slane %v742, 4
      %v745 = vor.u32 %v744, %v740
      %v746 = vrot.slane %v745, 4
      %v748 = vshll.u32 %v364, 16
      %v750 = vrot.slane %v748, 5
      %v751 = vsel %vm367, %v746, %v750
      %v752 = vunpack.c.l.b16 %v381
      %v753 = vunpack.c.l.b16 %v391
      %v754 = vunpack.c.l.b16 %v405
      %v755 = vunpack.c.l.b16 %v415
      %v756 = vunpack.c.l.b16 %v429
      %v757 = vunpack.c.l.b16 %v439
      %v758 = vunpack.c.l.b16 %v453
      %v759 = vunpack.c.l.b16 %v463
      %v760 = vunpack.c.l.b16 %v477
      %v761 = vunpack.c.l.b16 %v487
      %v762 = vunpack.c.l.b16 %v501
      %v763 = vunpack.c.l.b16 %v511
      %v764 = vunpack.c.l.b16 %v525
      %v765 = vunpack.c.l.b16 %v535
      %v766 = vunpack.c.l.b16 %v549
      %v767 = vunpack.c.l.b16 %v559
      %v768 = vunpack.c.l.b16 %v573
      %v769 = vunpack.c.l.b16 %v583
      %v770 = vunpack.c.l.b16 %v597
      %v771 = vunpack.c.l.b16 %v607
      %v772 = vunpack.c.l.b16 %v621
      %v773 = vunpack.c.l.b16 %v631
      %v774 = vunpack.c.l.b16 %v645
      %v775 = vunpack.c.l.b16 %v655
      %v776 = vunpack.c.l.b16 %v669
      %v777 = vunpack.c.l.b16 %v679
      %v778 = vunpack.c.l.b16 %v693
      %v779 = vunpack.c.l.b16 %v703
      %v780 = vunpack.c.l.b16 %v717
      %v781 = vunpack.c.l.b16 %v727
      %v782 = vunpack.c.l.b16 %v741
      %v783 = vunpack.c.l.b16 %v751
      %v784 = vpack.c.b16 %v753, %v752
      %v785 = vpack.c.b16 %v755, %v754
      %v786 = vpack.c.b16 %v757, %v756
      %v787 = vpack.c.b16 %v759, %v758
      %v788 = vpack.c.b16 %v761, %v760
      %v789 = vpack.c.b16 %v763, %v762
      %v790 = vpack.c.b16 %v765, %v764
      %v791 = vpack.c.b16 %v767, %v766
      %v792 = vpack.c.b16 %v769, %v768
      %v793 = vpack.c.b16 %v771, %v770
      %v794 = vpack.c.b16 %v773, %v772
      %v795 = vpack.c.b16 %v775, %v774
      %v796 = vpack.c.b16 %v777, %v776
      %v797 = vpack.c.b16 %v779, %v778
      %v798 = vpack.c.b16 %v781, %v780
      %v799 = vpack.c.b16 %v783, %v782
      %800 = vrot.lane.b32.xlu0 %v784, 96
      %v801 = vpop.permute.xlu0 %800
      %802 = vrot.lane.b32.xlu0 %v785, 96
      %v803 = vpop.permute.xlu0 %802
      %804 = vrot.lane.b32.xlu0 %v786, 96
      %v805 = vpop.permute.xlu0 %804
      %806 = vrot.lane.b32.xlu0 %v787, 96
      %v807 = vpop.permute.xlu0 %806
      %808 = vrot.lane.b32.xlu0 %v788, 96
      %v809 = vpop.permute.xlu0 %808
      %810 = vrot.lane.b32.xlu0 %v789, 96
      %v811 = vpop.permute.xlu0 %810
      %812 = vrot.lane.b32.xlu0 %v790, 96
      %v813 = vpop.permute.xlu0 %812
      %814 = vrot.lane.b32.xlu0 %v791, 96
      %v815 = vpop.permute.xlu0 %814
      %816 = vrot.lane.b32.xlu0 %v792, 96
      %v817 = vpop.permute.xlu0 %816
      %818 = vrot.lane.b32.xlu0 %v793, 96
      %v819 = vpop.permute.xlu0 %818
      %820 = vrot.lane.b32.xlu0 %v794, 96
      %v821 = vpop.permute.xlu0 %820
      %822 = vrot.lane.b32.xlu0 %v795, 96
      %v823 = vpop.permute.xlu0 %822
      %824 = vrot.lane.b32.xlu0 %v796, 96
      %v825 = vpop.permute.xlu0 %824
      %826 = vrot.lane.b32.xlu0 %v797, 96
      %v827 = vpop.permute.xlu0 %826
      %828 = vrot.lane.b32.xlu0 %v798, 96
      %v829 = vpop.permute.xlu0 %828
      %830 = vrot.lane.b32.xlu0 %v799, 96
      %v831 = vpop.permute.xlu0 %830
      %vm848 = vcmask 1048320
      %849 = vst.msk [vmem:[#allocation2] sm:$0xff] %vm848, %v801
      %vm850 = vcmask 523264
      %851 = vst.msk [vmem:[#allocation2 + $0x8] sm:$0xff] %vm850, %v801
      %852 = vst.msk [vmem:[#allocation2 + $0x38] sm:$0xff] %vm848, %v803
      %853 = vst.msk [vmem:[#allocation2 + $0x40] sm:$0xff] %vm850, %v803
      %854 = vst.msk [vmem:[#allocation2 + $0x70] sm:$0xff] %vm848, %v805
      %855 = vst.msk [vmem:[#allocation2 + $0x78] sm:$0xff] %vm850, %v805
      %856 = vst.msk [vmem:[#allocation2 + $0xa8] sm:$0xff] %vm848, %v807
      %857 = vst.msk [vmem:[#allocation2 + $0xb0] sm:$0xff] %vm850, %v807
      %858 = vst.msk [vmem:[#allocation2 + $0xe0] sm:$0xff] %vm848, %v809
      %859 = vst.msk [vmem:[#allocation2 + $0xe8] sm:$0xff] %vm850, %v809
      %860 = vst.msk [vmem:[#allocation2 + $0x118] sm:$0xff] %vm848, %v811
      %861 = vst.msk [vmem:[#allocation2 + $0x120] sm:$0xff] %vm850, %v811
      %862 = vst.msk [vmem:[#allocation2 + $0x150] sm:$0xff] %vm848, %v813
      %863 = vst.msk [vmem:[#allocation2 + $0x158] sm:$0xff] %vm850, %v813
      %864 = vst.msk [vmem:[#allocation2 + $0x188] sm:$0xff] %vm848, %v815
      %865 = vst.msk [vmem:[#allocation2 + $0x190] sm:$0xff] %vm850, %v815
      %866 = vst.msk [vmem:[#allocation2 + $0x1c0] sm:$0xff] %vm848, %v817
      %867 = vst.msk [vmem:[#allocation2 + $0x1c8] sm:$0xff] %vm850, %v817
      %868 = vst.msk [vmem:[#allocation2 + $0x1f8] sm:$0xff] %vm848, %v819
      %869 = vst.msk [vmem:[#allocation2 + $0x200] sm:$0xff] %vm850, %v819
      %870 = vst.msk [vmem:[#allocation2 + $0x230] sm:$0xff] %vm848, %v821
      %871 = vst.msk [vmem:[#allocation2 + $0x238] sm:$0xff] %vm850, %v821
      %872 = vst.msk [vmem:[#allocation2 + $0x268] sm:$0xff] %vm848, %v823
      %873 = vst.msk [vmem:[#allocation2 + $0x270] sm:$0xff] %vm850, %v823
      %874 = vst.msk [vmem:[#allocation2 + $0x2a0] sm:$0xff] %vm848, %v825
      %875 = vst.msk [vmem:[#allocation2 + $0x2a8] sm:$0xff] %vm850, %v825
      %876 = vst.msk [vmem:[#allocation2 + $0x2d8] sm:$0xff] %vm848, %v827
      %877 = vst.msk [vmem:[#allocation2 + $0x2e0] sm:$0xff] %vm850, %v827
      %878 = vst.msk [vmem:[#allocation2 + $0x310] sm:$0xff] %vm848, %v829
      %879 = vst.msk [vmem:[#allocation2 + $0x318] sm:$0xff] %vm850, %v829
      %880 = vst.msk [vmem:[#allocation2 + $0x348] sm:$0xff] %vm848, %v831
      %881 = vst.msk [vmem:[#allocation2 + $0x350] sm:$0xff] %vm850, %v831
      %v882 = vld [vmem:[%s165] sm:$0xe]
      %v883 = vld [vmem:[%s165 + $0x4] sm:$0xf]
      %v884 = vld [vmem:[%s165 + $0x8] sm:$0x1]
      %v885 = vld [vmem:[%s165 + $0xc] sm:$0xe]
      %v886 = vld [vmem:[%s165 + $0x10] sm:$0xf]
      %v887 = vld [vmem:[%s165 + $0x14] sm:$0x1]
      %v888 = vld [vmem:[%s165 + $0x18] sm:$0xe]
      %v889 = vld [vmem:[%s165 + $0x1c] sm:$0xf]
      %v890 = vld [vmem:[%s165 + $0x20] sm:$0x1]
      %v891 = vld [vmem:[%s165 + $0x24] sm:$0xe]
      %v892 = vld [vmem:[%s165 + $0x28] sm:$0xf]
      %v893 = vld [vmem:[%s165 + $0x2c] sm:$0x1]
      %v894 = vld [vmem:[%s165 + $0x30] sm:$0xe]
      %v895 = vld [vmem:[%s165 + $0x34] sm:$0xf]
      %v896 = vld [vmem:[%s165 + $0x38] sm:$0x1]
      %v897 = vld [vmem:[%s165 + $0x3c] sm:$0xe]
      %v898 = vld [vmem:[%s165 + $0x40] sm:$0xf]
      %v899 = vld [vmem:[%s165 + $0x44] sm:$0x1]
      %v900 = vld [vmem:[%s165 + $0x48] sm:$0xe]
      %v901 = vld [vmem:[%s165 + $0x4c] sm:$0xf]
      %v902 = vld [vmem:[%s165 + $0x50] sm:$0x1]
      %v903 = vld [vmem:[%s165 + $0x54] sm:$0xe]
      %v904 = vld [vmem:[%s165 + $0x58] sm:$0xf]
      %v905 = vld [vmem:[%s165 + $0x5c] sm:$0x1]
      %v906 = vld [vmem:[%s165 + $0x60] sm:$0xe]
      %v907 = vld [vmem:[%s165 + $0x64] sm:$0xf]
      %v908 = vld [vmem:[%s165 + $0x68] sm:$0x1]
      %v909 = vld [vmem:[%s165 + $0x6c] sm:$0xe]
      %v910 = vld [vmem:[%s165 + $0x70] sm:$0xf]
      %v911 = vld [vmem:[%s165 + $0x74] sm:$0x1]
      %v912 = vld [vmem:[%s165 + $0x78] sm:$0xe]
      %v913 = vld [vmem:[%s165 + $0x7c] sm:$0xf]
      %v914 = vld [vmem:[%s165 + $0x80] sm:$0x1]
      %v915 = vld [vmem:[%s165 + $0x84] sm:$0xe]
      %v916 = vld [vmem:[%s165 + $0x88] sm:$0xf]
      %v917 = vld [vmem:[%s165 + $0x8c] sm:$0x1]
      %v918 = vld [vmem:[%s165 + $0x90] sm:$0xe]
      %v919 = vld [vmem:[%s165 + $0x94] sm:$0xf]
      %v920 = vld [vmem:[%s165 + $0x98] sm:$0x1]
      %v921 = vld [vmem:[%s165 + $0x9c] sm:$0xe]
      %v922 = vld [vmem:[%s165 + $0xa0] sm:$0xf]
      %v923 = vld [vmem:[%s165 + $0xa4] sm:$0x1]
      %v924 = vld [vmem:[%s165 + $0xa8] sm:$0xe]
      %v925 = vld [vmem:[%s165 + $0xac] sm:$0xf]
      %v926 = vld [vmem:[%s165 + $0xb0] sm:$0x1]
      %v927 = vld [vmem:[%s165 + $0xb4] sm:$0xe]
      %v928 = vld [vmem:[%s165 + $0xb8] sm:$0xf]
      %v929 = vld [vmem:[%s165 + $0xbc] sm:$0x1]
      %vm978 = vcmask 1042432
      %vm979 = vcmask 1046532
      %vm980 = vmor %vm978, %vm979
      %v981 = vrot.slane %v882, 5
      %v982 = vrot.slane %v981, 4
      %v983 = vrot.slane %v883, 5
      %v984 = vsel %vm980, %v982, %v983
      %v985 = vrot.slane %v983, 4
      %v986 = vrot.slane %v884, 5
      %v987 = vsel %vm980, %v985, %v986
      %v988 = vrot.slane %v885, 5
      %v989 = vrot.slane %v988, 4
      %v990 = vrot.slane %v886, 5
      %v991 = vsel %vm980, %v989, %v990
      %v992 = vrot.slane %v990, 4
      %v993 = vrot.slane %v887, 5
      %v994 = vsel %vm980, %v992, %v993
      %v995 = vrot.slane %v888, 5
      %v996 = vrot.slane %v995, 4
      %v997 = vrot.slane %v889, 5
      %v998 = vsel %vm980, %v996, %v997
      %v999 = vrot.slane %v997, 4
      %v1000 = vrot.slane %v890, 5
      %v1001 = vsel %vm980, %v999, %v1000
      %v1002 = vrot.slane %v891, 5
      %v1003 = vrot.slane %v1002, 4
      %v1004 = vrot.slane %v892, 5
      %v1005 = vsel %vm980, %v1003, %v1004
      %v1006 = vrot.slane %v1004, 4
      %v1007 = vrot.slane %v893, 5
      %v1008 = vsel %vm980, %v1006, %v1007
      %v1009 = vrot.slane %v894, 5
      %v1010 = vrot.slane %v1009, 4
      %v1011 = vrot.slane %v895, 5
      %v1012 = vsel %vm980, %v1010, %v1011
      %v1013 = vrot.slane %v1011, 4
      %v1014 = vrot.slane %v896, 5
      %v1015 = vsel %vm980, %v1013, %v1014
      %v1016 = vrot.slane %v897, 5
      %v1017 = vrot.slane %v1016, 4
      %v1018 = vrot.slane %v898, 5
      %v1019 = vsel %vm980, %v1017, %v1018
      %v1020 = vrot.slane %v1018, 4
      %v1021 = vrot.slane %v899, 5
      %v1022 = vsel %vm980, %v1020, %v1021
      %v1023 = vrot.slane %v900, 5
      %v1024 = vrot.slane %v1023, 4
      %v1025 = vrot.slane %v901, 5
      %v1026 = vsel %vm980, %v1024, %v1025
      %v1027 = vrot.slane %v1025, 4
      %v1028 = vrot.slane %v902, 5
      %v1029 = vsel %vm980, %v1027, %v1028
      %v1030 = vrot.slane %v903, 5
      %v1031 = vrot.slane %v1030, 4
      %v1032 = vrot.slane %v904, 5
      %v1033 = vsel %vm980, %v1031, %v1032
      %v1034 = vrot.slane %v1032, 4
      %v1035 = vrot.slane %v905, 5
      %v1036 = vsel %vm980, %v1034, %v1035
      %v1037 = vrot.slane %v906, 5
      %v1038 = vrot.slane %v1037, 4
      %v1039 = vrot.slane %v907, 5
      %v1040 = vsel %vm980, %v1038, %v1039
      %v1041 = vrot.slane %v1039, 4
      %v1042 = vrot.slane %v908, 5
      %v1043 = vsel %vm980, %v1041, %v1042
      %v1044 = vrot.slane %v909, 5
      %v1045 = vrot.slane %v1044, 4
      %v1046 = vrot.slane %v910, 5
      %v1047 = vsel %vm980, %v1045, %v1046
      %v1048 = vrot.slane %v1046, 4
      %v1049 = vrot.slane %v911, 5
      %v1050 = vsel %vm980, %v1048, %v1049
      %v1051 = vrot.slane %v912, 5
      %v1052 = vrot.slane %v1051, 4
      %v1053 = vrot.slane %v913, 5
      %v1054 = vsel %vm980, %v1052, %v1053
      %v1055 = vrot.slane %v1053, 4
      %v1056 = vrot.slane %v914, 5
      %v1057 = vsel %vm980, %v1055, %v1056
      %v1058 = vrot.slane %v915, 5
      %v1059 = vrot.slane %v1058, 4
      %v1060 = vrot.slane %v916, 5
      %v1061 = vsel %vm980, %v1059, %v1060
      %v1062 = vrot.slane %v1060, 4
      %v1063 = vrot.slane %v917, 5
      %v1064 = vsel %vm980, %v1062, %v1063
      %v1065 = vrot.slane %v918, 5
      %v1066 = vrot.slane %v1065, 4
      %v1067 = vrot.slane %v919, 5
      %v1068 = vsel %vm980, %v1066, %v1067
      %v1069 = vrot.slane %v1067, 4
      %v1070 = vrot.slane %v920, 5
      %v1071 = vsel %vm980, %v1069, %v1070
      %v1072 = vrot.slane %v921, 5
      %v1073 = vrot.slane %v1072, 4
      %v1074 = vrot.slane %v922, 5
      %v1075 = vsel %vm980, %v1073, %v1074
      %v1076 = vrot.slane %v1074, 4
      %v1077 = vrot.slane %v923, 5
      %v1078 = vsel %vm980, %v1076, %v1077
      %v1079 = vrot.slane %v924, 5
      %v1080 = vrot.slane %v1079, 4
      %v1081 = vrot.slane %v925, 5
      %v1082 = vsel %vm980, %v1080, %v1081
      %v1083 = vrot.slane %v1081, 4
      %v1084 = vrot.slane %v926, 5
      %v1085 = vsel %vm980, %v1083, %v1084
      %v1086 = vrot.slane %v927, 5
      %v1087 = vrot.slane %v1086, 4
      %v1088 = vrot.slane %v928, 5
      %v1089 = vsel %vm980, %v1087, %v1088
      %v1090 = vrot.slane %v1088, 4
      %v1091 = vrot.slane %v929, 5
      %v1092 = vsel %vm980, %v1090, %v1091
      %v1093 = vunpack.c.l.b16 %v984
      %v1094 = vunpack.c.l.b16 %v987
      %v1095 = vunpack.c.l.b16 %v991
      %v1096 = vunpack.c.l.b16 %v994
      %v1097 = vunpack.c.l.b16 %v998
      %v1098 = vunpack.c.l.b16 %v1001
      %v1099 = vunpack.c.l.b16 %v1005
      %v1100 = vunpack.c.l.b16 %v1008
      %v1101 = vunpack.c.l.b16 %v1012
      %v1102 = vunpack.c.l.b16 %v1015
      %v1103 = vunpack.c.l.b16 %v1019
      %v1104 = vunpack.c.l.b16 %v1022
      %v1105 = vunpack.c.l.b16 %v1026
      %v1106 = vunpack.c.l.b16 %v1029
      %v1107 = vunpack.c.l.b16 %v1033
      %v1108 = vunpack.c.l.b16 %v1036
      %v1109 = vunpack.c.l.b16 %v1040
      %v1110 = vunpack.c.l.b16 %v1043
      %v1111 = vunpack.c.l.b16 %v1047
      %v1112 = vunpack.c.l.b16 %v1050
      %v1113 = vunpack.c.l.b16 %v1054
      %v1114 = vunpack.c.l.b16 %v1057
      %v1115 = vunpack.c.l.b16 %v1061
      %v1116 = vunpack.c.l.b16 %v1064
      %v1117 = vunpack.c.l.b16 %v1068
      %v1118 = vunpack.c.l.b16 %v1071
      %v1119 = vunpack.c.l.b16 %v1075
      %v1120 = vunpack.c.l.b16 %v1078
      %v1121 = vunpack.c.l.b16 %v1082
      %v1122 = vunpack.c.l.b16 %v1085
      %v1123 = vunpack.c.l.b16 %v1089
      %v1124 = vunpack.c.l.b16 %v1092
      %v1125 = vpack.c.b16 %v1094, %v1093
      %v1126 = vpack.c.b16 %v1096, %v1095
      %v1127 = vpack.c.b16 %v1098, %v1097
      %v1128 = vpack.c.b16 %v1100, %v1099
      %v1129 = vpack.c.b16 %v1102, %v1101
      %v1130 = vpack.c.b16 %v1104, %v1103
      %v1131 = vpack.c.b16 %v1106, %v1105
      %v1132 = vpack.c.b16 %v1108, %v1107
      %v1133 = vpack.c.b16 %v1110, %v1109
      %v1134 = vpack.c.b16 %v1112, %v1111
      %v1135 = vpack.c.b16 %v1114, %v1113
      %v1136 = vpack.c.b16 %v1116, %v1115
      %v1137 = vpack.c.b16 %v1118, %v1117
      %v1138 = vpack.c.b16 %v1120, %v1119
      %v1139 = vpack.c.b16 %v1122, %v1121
      %v1140 = vpack.c.b16 %v1124, %v1123
      %1141 = vrot.lane.b32.xlu0 %v1125, 64
      %v1142 = vpop.permute.xlu0 %1141
      %1143 = vrot.lane.b32.xlu0 %v1126, 64
      %v1144 = vpop.permute.xlu0 %1143
      %1145 = vrot.lane.b32.xlu0 %v1127, 64
      %v1146 = vpop.permute.xlu0 %1145
      %1147 = vrot.lane.b32.xlu0 %v1128, 64
      %v1148 = vpop.permute.xlu0 %1147
      %1149 = vrot.lane.b32.xlu0 %v1129, 64
      %v1150 = vpop.permute.xlu0 %1149
      %1151 = vrot.lane.b32.xlu0 %v1130, 64
      %v1152 = vpop.permute.xlu0 %1151
      %1153 = vrot.lane.b32.xlu0 %v1131, 64
      %v1154 = vpop.permute.xlu0 %1153
      %1155 = vrot.lane.b32.xlu0 %v1132, 64
      %v1156 = vpop.permute.xlu0 %1155
      %1157 = vrot.lane.b32.xlu0 %v1133, 64
      %v1158 = vpop.permute.xlu0 %1157
      %1159 = vrot.lane.b32.xlu0 %v1134, 64
      %v1160 = vpop.permute.xlu0 %1159
      %1161 = vrot.lane.b32.xlu0 %v1135, 64
      %v1162 = vpop.permute.xlu0 %1161
      %1163 = vrot.lane.b32.xlu0 %v1136, 64
      %v1164 = vpop.permute.xlu0 %1163
      %1165 = vrot.lane.b32.xlu0 %v1137, 64
      %v1166 = vpop.permute.xlu0 %1165
      %1167 = vrot.lane.b32.xlu0 %v1138, 64
      %v1168 = vpop.permute.xlu0 %1167
      %1169 = vrot.lane.b32.xlu0 %v1139, 64
      %v1170 = vpop.permute.xlu0 %1169
      %1171 = vrot.lane.b32.xlu0 %v1140, 64
      %v1172 = vpop.permute.xlu0 %1171
      %vm1189 = vcmask 1048064
      %1190 = vst.msk [vmem:[#allocation2 + $0x8] sm:$0xff] %vm1189, %v1142
      %vm1191 = vcmask 261120
      %1192 = vst.msk [vmem:[#allocation2 + $0x10] sm:$0xff] %vm1191, %v1142
      %1193 = vst.msk [vmem:[#allocation2 + $0x40] sm:$0xff] %vm1189, %v1144
      %1194 = vst.msk [vmem:[#allocation2 + $0x48] sm:$0xff] %vm1191, %v1144
      %1195 = vst.msk [vmem:[#allocation2 + $0x78] sm:$0xff] %vm1189, %v1146
      %1196 = vst.msk [vmem:[#allocation2 + $0x80] sm:$0xff] %vm1191, %v1146
      %1197 = vst.msk [vmem:[#allocation2 + $0xb0] sm:$0xff] %vm1189, %v1148
      %1198 = vst.msk [vmem:[#allocation2 + $0xb8] sm:$0xff] %vm1191, %v1148
      %1199 = vst.msk [vmem:[#allocation2 + $0xe8] sm:$0xff] %vm1189, %v1150
      %1200 = vst.msk [vmem:[#allocation2 + $0xf0] sm:$0xff] %vm1191, %v1150
      %1201 = vst.msk [vmem:[#allocation2 + $0x120] sm:$0xff] %vm1189, %v1152
      %1202 = vst.msk [vmem:[#allocation2 + $0x128] sm:$0xff] %vm1191, %v1152
      %1203 = vst.msk [vmem:[#allocation2 + $0x158] sm:$0xff] %vm1189, %v1154
      %1204 = vst.msk [vmem:[#allocation2 + $0x160] sm:$0xff] %vm1191, %v1154
      %1205 = vst.msk [vmem:[#allocation2 + $0x190] sm:$0xff] %vm1189, %v1156
      %1206 = vst.msk [vmem:[#allocation2 + $0x198] sm:$0xff] %vm1191, %v1156
      %1207 = vst.msk [vmem:[#allocation2 + $0x1c8] sm:$0xff] %vm1189, %v1158
      %1208 = vst.msk [vmem:[#allocation2 + $0x1d0] sm:$0xff] %vm1191, %v1158
      %1209 = vst.msk [vmem:[#allocation2 + $0x200] sm:$0xff] %vm1189, %v1160
      %1210 = vst.msk [vmem:[#allocation2 + $0x208] sm:$0xff] %vm1191, %v1160
      %1211 = vst.msk [vmem:[#allocation2 + $0x238] sm:$0xff] %vm1189, %v1162
      %1212 = vst.msk [vmem:[#allocation2 + $0x240] sm:$0xff] %vm1191, %v1162
      %1213 = vst.msk [vmem:[#allocation2 + $0x270] sm:$0xff] %vm1189, %v1164
      %1214 = vst.msk [vmem:[#allocation2 + $0x278] sm:$0xff] %vm1191, %v1164
      %1215 = vst.msk [vmem:[#allocation2 + $0x2a8] sm:$0xff] %vm1189, %v1166
      %1216 = vst.msk [vmem:[#allocation2 + $0x2b0] sm:$0xff] %vm1191, %v1166
      %1217 = vst.msk [vmem:[#allocation2 + $0x2e0] sm:$0xff] %vm1189, %v1168
      %1218 = vst.msk [vmem:[#allocation2 + $0x2e8] sm:$0xff] %vm1191, %v1168
      %1219 = vst.msk [vmem:[#allocation2 + $0x318] sm:$0xff] %vm1189, %v1170
      %1220 = vst.msk [vmem:[#allocation2 + $0x320] sm:$0xff] %vm1191, %v1170
      %1221 = vst.msk [vmem:[#allocation2 + $0x350] sm:$0xff] %vm1189, %v1172
      %1222 = vst.msk [vmem:[#allocation2 + $0x358] sm:$0xff] %vm1191, %v1172
      %s1223 = scalar_lea.vmem %s165, 12
      %v1224 = vld [vmem:[%s1223] sm:$0xf]
      %v1225 = vld [vmem:[%s1223 + $0x4] sm:$0xf]
      %v1226 = vld [vmem:[%s1223 + $0xc] sm:$0xf]
      %v1227 = vld [vmem:[%s1223 + $0x10] sm:$0xf]
      %v1228 = vld [vmem:[%s1223 + $0x18] sm:$0xf]
      %v1229 = vld [vmem:[%s1223 + $0x1c] sm:$0xf]
      %v1230 = vld [vmem:[%s1223 + $0x24] sm:$0xf]
      %v1231 = vld [vmem:[%s1223 + $0x28] sm:$0xf]
      %v1232 = vld [vmem:[%s1223 + $0x30] sm:$0xf]
      %v1233 = vld [vmem:[%s1223 + $0x34] sm:$0xf]
      %v1234 = vld [vmem:[%s1223 + $0x3c] sm:$0xf]
      %v1235 = vld [vmem:[%s1223 + $0x40] sm:$0xf]
      %v1236 = vld [vmem:[%s1223 + $0x48] sm:$0xf]
      %v1237 = vld [vmem:[%s1223 + $0x4c] sm:$0xf]
      %v1238 = vld [vmem:[%s1223 + $0x54] sm:$0xf]
      %v1239 = vld [vmem:[%s1223 + $0x58] sm:$0xf]
      %v1240 = vld [vmem:[%s1223 + $0x60] sm:$0xf]
      %v1241 = vld [vmem:[%s1223 + $0x64] sm:$0xf]
      %v1242 = vld [vmem:[%s1223 + $0x6c] sm:$0xf]
      %v1243 = vld [vmem:[%s1223 + $0x70] sm:$0xf]
      %v1244 = vld [vmem:[%s1223 + $0x78] sm:$0xf]
      %v1245 = vld [vmem:[%s1223 + $0x7c] sm:$0xf]
      %v1246 = vld [vmem:[%s1223 + $0x84] sm:$0xf]
      %v1247 = vld [vmem:[%s1223 + $0x88] sm:$0xf]
      %v1248 = vld [vmem:[%s1223 + $0x90] sm:$0xf]
      %v1249 = vld [vmem:[%s1223 + $0x94] sm:$0xf]
      %v1250 = vld [vmem:[%s1223 + $0x9c] sm:$0xf]
      %v1251 = vld [vmem:[%s1223 + $0xa0] sm:$0xf]
      %v1252 = vld [vmem:[%s1223 + $0xa8] sm:$0xf]
      %v1253 = vld [vmem:[%s1223 + $0xac] sm:$0xf]
      %v1254 = vld [vmem:[%s1223 + $0xb4] sm:$0xf]
      %v1255 = vld [vmem:[%s1223 + $0xb8] sm:$0xf]
      %v1288 = vunpack.c.l.b16 %v1224
      %v1289 = vunpack.c.l.b16 %v1225
      %v1290 = vunpack.c.l.b16 %v1226
      %v1291 = vunpack.c.l.b16 %v1227
      %v1292 = vunpack.c.l.b16 %v1228
      %v1293 = vunpack.c.l.b16 %v1229
      %v1294 = vunpack.c.l.b16 %v1230
      %v1295 = vunpack.c.l.b16 %v1231
      %v1296 = vunpack.c.l.b16 %v1232
      %v1297 = vunpack.c.l.b16 %v1233
      %v1298 = vunpack.c.l.b16 %v1234
      %v1299 = vunpack.c.l.b16 %v1235
      %v1300 = vunpack.c.l.b16 %v1236
      %v1301 = vunpack.c.l.b16 %v1237
      %v1302 = vunpack.c.l.b16 %v1238
      %v1303 = vunpack.c.l.b16 %v1239
      %v1304 = vunpack.c.l.b16 %v1240
      %v1305 = vunpack.c.l.b16 %v1241
      %v1306 = vunpack.c.l.b16 %v1242
      %v1307 = vunpack.c.l.b16 %v1243
      %v1308 = vunpack.c.l.b16 %v1244
      %v1309 = vunpack.c.l.b16 %v1245
      %v1310 = vunpack.c.l.b16 %v1246
      %v1311 = vunpack.c.l.b16 %v1247
      %v1312 = vunpack.c.l.b16 %v1248
      %v1313 = vunpack.c.l.b16 %v1249
      %v1314 = vunpack.c.l.b16 %v1250
      %v1315 = vunpack.c.l.b16 %v1251
      %v1316 = vunpack.c.l.b16 %v1252
      %v1317 = vunpack.c.l.b16 %v1253
      %v1318 = vunpack.c.l.b16 %v1254
      %v1319 = vunpack.c.l.b16 %v1255
      %v1320 = vpack.c.b16 %v1289, %v1288
      %v1321 = vpack.c.b16 %v1291, %v1290
      %v1322 = vpack.c.b16 %v1293, %v1292
      %v1323 = vpack.c.b16 %v1295, %v1294
      %v1324 = vpack.c.b16 %v1297, %v1296
      %v1325 = vpack.c.b16 %v1299, %v1298
      %v1326 = vpack.c.b16 %v1301, %v1300
      %v1327 = vpack.c.b16 %v1303, %v1302
      %v1328 = vpack.c.b16 %v1305, %v1304
      %v1329 = vpack.c.b16 %v1307, %v1306
      %v1330 = vpack.c.b16 %v1309, %v1308
      %v1331 = vpack.c.b16 %v1311, %v1310
      %v1332 = vpack.c.b16 %v1313, %v1312
      %v1333 = vpack.c.b16 %v1315, %v1314
      %v1334 = vpack.c.b16 %v1317, %v1316
      %v1335 = vpack.c.b16 %v1319, %v1318
      %1336 = vrot.lane.b32.xlu0 %v1320, 32
      %v1337 = vpop.permute.xlu0 %1336
      %1338 = vrot.lane.b32.xlu0 %v1321, 32
      %v1339 = vpop.permute.xlu0 %1338
      %1340 = vrot.lane.b32.xlu0 %v1322, 32
      %v1341 = vpop.permute.xlu0 %1340
      %1342 = vrot.lane.b32.xlu0 %v1323, 32
      %v1343 = vpop.permute.xlu0 %1342
      %1344 = vrot.lane.b32.xlu0 %v1324, 32
      %v1345 = vpop.permute.xlu0 %1344
      %1346 = vrot.lane.b32.xlu0 %v1325, 32
      %v1347 = vpop.permute.xlu0 %1346
      %1348 = vrot.lane.b32.xlu0 %v1326, 32
      %v1349 = vpop.permute.xlu0 %1348
      %1350 = vrot.lane.b32.xlu0 %v1327, 32
      %v1351 = vpop.permute.xlu0 %1350
      %1352 = vrot.lane.b32.xlu0 %v1328, 32
      %v1353 = vpop.permute.xlu0 %1352
      %1354 = vrot.lane.b32.xlu0 %v1329, 32
      %v1355 = vpop.permute.xlu0 %1354
      %1356 = vrot.lane.b32.xlu0 %v1330, 32
      %v1357 = vpop.permute.xlu0 %1356
      %1358 = vrot.lane.b32.xlu0 %v1331, 32
      %v1359 = vpop.permute.xlu0 %1358
      %1360 = vrot.lane.b32.xlu0 %v1332, 32
      %v1361 = vpop.permute.xlu0 %1360
      %1362 = vrot.lane.b32.xlu0 %v1333, 32
      %v1363 = vpop.permute.xlu0 %1362
      %1364 = vrot.lane.b32.xlu0 %v1334, 32
      %v1365 = vpop.permute.xlu0 %1364
      %1366 = vrot.lane.b32.xlu0 %v1335, 32
      %v1367 = vpop.permute.xlu0 %1366
      %vm1384 = vcmask 1047808
      %1385 = vst.msk [vmem:[#allocation2 + $0x10] sm:$0xff] %vm1384, %v1337
      %1386 = vst.msk [vmem:[#allocation2 + $0x48] sm:$0xff] %vm1384, %v1339
      %1387 = vst.msk [vmem:[#allocation2 + $0x80] sm:$0xff] %vm1384, %v1341
      %1388 = vst.msk [vmem:[#allocation2 + $0xb8] sm:$0xff] %vm1384, %v1343
      %1389 = vst.msk [vmem:[#allocation2 + $0xf0] sm:$0xff] %vm1384, %v1345
      %1390 = vst.msk [vmem:[#allocation2 + $0x128] sm:$0xff] %vm1384, %v1347
      %1391 = vst.msk [vmem:[#allocation2 + $0x160] sm:$0xff] %vm1384, %v1349
      %1392 = vst.msk [vmem:[#allocation2 + $0x198] sm:$0xff] %vm1384, %v1351
      %1393 = vst.msk [vmem:[#allocation2 + $0x1d0] sm:$0xff] %vm1384, %v1353
      %1394 = vst.msk [vmem:[#allocation2 + $0x208] sm:$0xff] %vm1384, %v1355
      %1395 = vst.msk [vmem:[#allocation2 + $0x240] sm:$0xff] %vm1384, %v1357
      %1396 = vst.msk [vmem:[#allocation2 + $0x278] sm:$0xff] %vm1384, %v1359
      %1397 = vst.msk [vmem:[#allocation2 + $0x2b0] sm:$0xff] %vm1384, %v1361
      %1398 = vst.msk [vmem:[#allocation2 + $0x2e8] sm:$0xff] %vm1384, %v1363
      %1399 = vst.msk [vmem:[#allocation2 + $0x320] sm:$0xff] %vm1384, %v1365
      %1400 = vst.msk [vmem:[#allocation2 + $0x358] sm:$0xff] %vm1384, %v1367
      %v1401 = vld [vmem:[%s1223] sm:$0xf]
      %v1402 = vld [vmem:[%s1223 + $0x4] sm:$0xf]
      %v1403 = vld [vmem:[%s1223 + $0x8] sm:$0x1]
      %v1404 = vld [vmem:[%s1223 + $0xc] sm:$0xf]
      %v1405 = vld [vmem:[%s1223 + $0x10] sm:$0xf]
      %v1406 = vld [vmem:[%s1223 + $0x14] sm:$0x1]
      %v1407 = vld [vmem:[%s1223 + $0x18] sm:$0xf]
      %v1408 = vld [vmem:[%s1223 + $0x1c] sm:$0xf]
      %v1409 = vld [vmem:[%s1223 + $0x20] sm:$0x1]
      %v1410 = vld [vmem:[%s1223 + $0x24] sm:$0xf]
      %v1411 = vld [vmem:[%s1223 + $0x28] sm:$0xf]
      %v1412 = vld [vmem:[%s1223 + $0x2c] sm:$0x1]
      %v1413 = vld [vmem:[%s1223 + $0x30] sm:$0xf]
      %v1414 = vld [vmem:[%s1223 + $0x34] sm:$0xf]
      %v1415 = vld [vmem:[%s1223 + $0x38] sm:$0x1]
      %v1416 = vld [vmem:[%s1223 + $0x3c] sm:$0xf]
      %v1417 = vld [vmem:[%s1223 + $0x40] sm:$0xf]
      %v1418 = vld [vmem:[%s1223 + $0x44] sm:$0x1]
      %v1419 = vld [vmem:[%s1223 + $0x48] sm:$0xf]
      %v1420 = vld [vmem:[%s1223 + $0x4c] sm:$0xf]
      %v1421 = vld [vmem:[%s1223 + $0x50] sm:$0x1]
      %v1422 = vld [vmem:[%s1223 + $0x54] sm:$0xf]
      %v1423 = vld [vmem:[%s1223 + $0x58] sm:$0xf]
      %v1424 = vld [vmem:[%s1223 + $0x5c] sm:$0x1]
      %v1425 = vld [vmem:[%s1223 + $0x60] sm:$0xf]
      %v1426 = vld [vmem:[%s1223 + $0x64] sm:$0xf]
      %v1427 = vld [vmem:[%s1223 + $0x68] sm:$0x1]
      %v1428 = vld [vmem:[%s1223 + $0x6c] sm:$0xf]
      %v1429 = vld [vmem:[%s1223 + $0x70] sm:$0xf]
      %v1430 = vld [vmem:[%s1223 + $0x74] sm:$0x1]
      %v1431 = vld [vmem:[%s1223 + $0x78] sm:$0xf]
      %v1432 = vld [vmem:[%s1223 + $0x7c] sm:$0xf]
      %v1433 = vld [vmem:[%s1223 + $0x80] sm:$0x1]
      %v1434 = vld [vmem:[%s1223 + $0x84] sm:$0xf]
      %v1435 = vld [vmem:[%s1223 + $0x88] sm:$0xf]
      %v1436 = vld [vmem:[%s1223 + $0x8c] sm:$0x1]
      %v1437 = vld [vmem:[%s1223 + $0x90] sm:$0xf]
      %v1438 = vld [vmem:[%s1223 + $0x94] sm:$0xf]
      %v1439 = vld [vmem:[%s1223 + $0x98] sm:$0x1]
      %v1440 = vld [vmem:[%s1223 + $0x9c] sm:$0xf]
      %v1441 = vld [vmem:[%s1223 + $0xa0] sm:$0xf]
      %v1442 = vld [vmem:[%s1223 + $0xa4] sm:$0x1]
      %v1443 = vld [vmem:[%s1223 + $0xa8] sm:$0xf]
      %v1444 = vld [vmem:[%s1223 + $0xac] sm:$0xf]
      %v1445 = vld [vmem:[%s1223 + $0xb0] sm:$0x1]
      %v1446 = vld [vmem:[%s1223 + $0xb4] sm:$0xf]
      %v1447 = vld [vmem:[%s1223 + $0xb8] sm:$0xf]
      %v1448 = vld [vmem:[%s1223 + $0xbc] sm:$0x1]
      %v1450 = vshrl.u32 %v1401, 16
      %v1452 = vrot.slane %v1450, 4
      %v1453 = vshll.u32 %v1401, 16
      %v1455 = vrot.slane %v1453, 5
      %v1456 = vor.u32 %v1452, %v1455
      %v1457 = vrot.slane %v1456, 4
      %v1459 = vshll.u32 %v1402, 16
      %v1461 = vrot.slane %v1459, 5
      %v1462 = vsel %vm367, %v1457, %v1461
      %v1463 = vshrl.u32 %v1402, 16
      %v1465 = vrot.slane %v1463, 4
      %v1466 = vor.u32 %v1465, %v1461
      %v1467 = vrot.slane %v1466, 4
      %v1469 = vshll.u32 %v1403, 16
      %v1471 = vrot.slane %v1469, 5
      %v1472 = vsel %vm367, %v1467, %v1471
      %v1474 = vshrl.u32 %v1404, 16
      %v1476 = vrot.slane %v1474, 4
      %v1477 = vshll.u32 %v1404, 16
      %v1479 = vrot.slane %v1477, 5
      %v1480 = vor.u32 %v1476, %v1479
      %v1481 = vrot.slane %v1480, 4
      %v1483 = vshll.u32 %v1405, 16
      %v1485 = vrot.slane %v1483, 5
      %v1486 = vsel %vm367, %v1481, %v1485
      %v1487 = vshrl.u32 %v1405, 16
      %v1489 = vrot.slane %v1487, 4
      %v1490 = vor.u32 %v1489, %v1485
      %v1491 = vrot.slane %v1490, 4
      %v1493 = vshll.u32 %v1406, 16
      %v1495 = vrot.slane %v1493, 5
      %v1496 = vsel %vm367, %v1491, %v1495
      %v1498 = vshrl.u32 %v1407, 16
      %v1500 = vrot.slane %v1498, 4
      %v1501 = vshll.u32 %v1407, 16
      %v1503 = vrot.slane %v1501, 5
      %v1504 = vor.u32 %v1500, %v1503
      %v1505 = vrot.slane %v1504, 4
      %v1507 = vshll.u32 %v1408, 16
      %v1509 = vrot.slane %v1507, 5
      %v1510 = vsel %vm367, %v1505, %v1509
      %v1511 = vshrl.u32 %v1408, 16
      %v1513 = vrot.slane %v1511, 4
      %v1514 = vor.u32 %v1513, %v1509
      %v1515 = vrot.slane %v1514, 4
      %v1517 = vshll.u32 %v1409, 16
      %v1519 = vrot.slane %v1517, 5
      %v1520 = vsel %vm367, %v1515, %v1519
      %v1522 = vshrl.u32 %v1410, 16
      %v1524 = vrot.slane %v1522, 4
      %v1525 = vshll.u32 %v1410, 16
      %v1527 = vrot.slane %v1525, 5
      %v1528 = vor.u32 %v1524, %v1527
      %v1529 = vrot.slane %v1528, 4
      %v1531 = vshll.u32 %v1411, 16
      %v1533 = vrot.slane %v1531, 5
      %v1534 = vsel %vm367, %v1529, %v1533
      %v1535 = vshrl.u32 %v1411, 16
      %v1537 = vrot.slane %v1535, 4
      %v1538 = vor.u32 %v1537, %v1533
      %v1539 = vrot.slane %v1538, 4
      %v1541 = vshll.u32 %v1412, 16
      %v1543 = vrot.slane %v1541, 5
      %v1544 = vsel %vm367, %v1539, %v1543
      %v1546 = vshrl.u32 %v1413, 16
      %v1548 = vrot.slane %v1546, 4
      %v1549 = vshll.u32 %v1413, 16
      %v1551 = vrot.slane %v1549, 5
      %v1552 = vor.u32 %v1548, %v1551
      %v1553 = vrot.slane %v1552, 4
      %v1555 = vshll.u32 %v1414, 16
      %v1557 = vrot.slane %v1555, 5
      %v1558 = vsel %vm367, %v1553, %v1557
      %v1559 = vshrl.u32 %v1414, 16
      %v1561 = vrot.slane %v1559, 4
      %v1562 = vor.u32 %v1561, %v1557
      %v1563 = vrot.slane %v1562, 4
      %v1565 = vshll.u32 %v1415, 16
      %v1567 = vrot.slane %v1565, 5
      %v1568 = vsel %vm367, %v1563, %v1567
      %v1570 = vshrl.u32 %v1416, 16
      %v1572 = vrot.slane %v1570, 4
      %v1573 = vshll.u32 %v1416, 16
      %v1575 = vrot.slane %v1573, 5
      %v1576 = vor.u32 %v1572, %v1575
      %v1577 = vrot.slane %v1576, 4
      %v1579 = vshll.u32 %v1417, 16
      %v1581 = vrot.slane %v1579, 5
      %v1582 = vsel %vm367, %v1577, %v1581
      %v1583 = vshrl.u32 %v1417, 16
      %v1585 = vrot.slane %v1583, 4
      %v1586 = vor.u32 %v1585, %v1581
      %v1587 = vrot.slane %v1586, 4
      %v1589 = vshll.u32 %v1418, 16
      %v1591 = vrot.slane %v1589, 5
      %v1592 = vsel %vm367, %v1587, %v1591
      %v1594 = vshrl.u32 %v1419, 16
      %v1596 = vrot.slane %v1594, 4
      %v1597 = vshll.u32 %v1419, 16
      %v1599 = vrot.slane %v1597, 5
      %v1600 = vor.u32 %v1596, %v1599
      %v1601 = vrot.slane %v1600, 4
      %v1603 = vshll.u32 %v1420, 16
      %v1605 = vrot.slane %v1603, 5
      %v1606 = vsel %vm367, %v1601, %v1605
      %v1607 = vshrl.u32 %v1420, 16
      %v1609 = vrot.slane %v1607, 4
      %v1610 = vor.u32 %v1609, %v1605
      %v1611 = vrot.slane %v1610, 4
      %v1613 = vshll.u32 %v1421, 16
      %v1615 = vrot.slane %v1613, 5
      %v1616 = vsel %vm367, %v1611, %v1615
      %v1618 = vshrl.u32 %v1422, 16
      %v1620 = vrot.slane %v1618, 4
      %v1621 = vshll.u32 %v1422, 16
      %v1623 = vrot.slane %v1621, 5
      %v1624 = vor.u32 %v1620, %v1623
      %v1625 = vrot.slane %v1624, 4
      %v1627 = vshll.u32 %v1423, 16
      %v1629 = vrot.slane %v1627, 5
      %v1630 = vsel %vm367, %v1625, %v1629
      %v1631 = vshrl.u32 %v1423, 16
      %v1633 = vrot.slane %v1631, 4
      %v1634 = vor.u32 %v1633, %v1629
      %v1635 = vrot.slane %v1634, 4
      %v1637 = vshll.u32 %v1424, 16
      %v1639 = vrot.slane %v1637, 5
      %v1640 = vsel %vm367, %v1635, %v1639
      %v1642 = vshrl.u32 %v1425, 16
      %v1644 = vrot.slane %v1642, 4
      %v1645 = vshll.u32 %v1425, 16
      %v1647 = vrot.slane %v1645, 5
      %v1648 = vor.u32 %v1644, %v1647
      %v1649 = vrot.slane %v1648, 4
      %v1651 = vshll.u32 %v1426, 16
      %v1653 = vrot.slane %v1651, 5
      %v1654 = vsel %vm367, %v1649, %v1653
      %v1655 = vshrl.u32 %v1426, 16
      %v1657 = vrot.slane %v1655, 4
      %v1658 = vor.u32 %v1657, %v1653
      %v1659 = vrot.slane %v1658, 4
      %v1661 = vshll.u32 %v1427, 16
      %v1663 = vrot.slane %v1661, 5
      %v1664 = vsel %vm367, %v1659, %v1663
      %v1666 = vshrl.u32 %v1428, 16
      %v1668 = vrot.slane %v1666, 4
      %v1669 = vshll.u32 %v1428, 16
      %v1671 = vrot.slane %v1669, 5
      %v1672 = vor.u32 %v1668, %v1671
      %v1673 = vrot.slane %v1672, 4
      %v1675 = vshll.u32 %v1429, 16
      %v1677 = vrot.slane %v1675, 5
      %v1678 = vsel %vm367, %v1673, %v1677
      %v1679 = vshrl.u32 %v1429, 16
      %v1681 = vrot.slane %v1679, 4
      %v1682 = vor.u32 %v1681, %v1677
      %v1683 = vrot.slane %v1682, 4
      %v1685 = vshll.u32 %v1430, 16
      %v1687 = vrot.slane %v1685, 5
      %v1688 = vsel %vm367, %v1683, %v1687
      %v1690 = vshrl.u32 %v1431, 16
      %v1692 = vrot.slane %v1690, 4
      %v1693 = vshll.u32 %v1431, 16
      %v1695 = vrot.slane %v1693, 5
      %v1696 = vor.u32 %v1692, %v1695
      %v1697 = vrot.slane %v1696, 4
      %v1699 = vshll.u32 %v1432, 16
      %v1701 = vrot.slane %v1699, 5
      %v1702 = vsel %vm367, %v1697, %v1701
      %v1703 = vshrl.u32 %v1432, 16
      %v1705 = vrot.slane %v1703, 4
      %v1706 = vor.u32 %v1705, %v1701
      %v1707 = vrot.slane %v1706, 4
      %v1709 = vshll.u32 %v1433, 16
      %v1711 = vrot.slane %v1709, 5
      %v1712 = vsel %vm367, %v1707, %v1711
      %v1714 = vshrl.u32 %v1434, 16
      %v1716 = vrot.slane %v1714, 4
      %v1717 = vshll.u32 %v1434, 16
      %v1719 = vrot.slane %v1717, 5
      %v1720 = vor.u32 %v1716, %v1719
      %v1721 = vrot.slane %v1720, 4
      %v1723 = vshll.u32 %v1435, 16
      %v1725 = vrot.slane %v1723, 5
      %v1726 = vsel %vm367, %v1721, %v1725
      %v1727 = vshrl.u32 %v1435, 16
      %v1729 = vrot.slane %v1727, 4
      %v1730 = vor.u32 %v1729, %v1725
      %v1731 = vrot.slane %v1730, 4
      %v1733 = vshll.u32 %v1436, 16
      %v1735 = vrot.slane %v1733, 5
      %v1736 = vsel %vm367, %v1731, %v1735
      %v1738 = vshrl.u32 %v1437, 16
      %v1740 = vrot.slane %v1738, 4
      %v1741 = vshll.u32 %v1437, 16
      %v1743 = vrot.slane %v1741, 5
      %v1744 = vor.u32 %v1740, %v1743
      %v1745 = vrot.slane %v1744, 4
      %v1747 = vshll.u32 %v1438, 16
      %v1749 = vrot.slane %v1747, 5
      %v1750 = vsel %vm367, %v1745, %v1749
      %v1751 = vshrl.u32 %v1438, 16
      %v1753 = vrot.slane %v1751, 4
      %v1754 = vor.u32 %v1753, %v1749
      %v1755 = vrot.slane %v1754, 4
      %v1757 = vshll.u32 %v1439, 16
      %v1759 = vrot.slane %v1757, 5
      %v1760 = vsel %vm367, %v1755, %v1759
      %v1762 = vshrl.u32 %v1440, 16
      %v1764 = vrot.slane %v1762, 4
      %v1765 = vshll.u32 %v1440, 16
      %v1767 = vrot.slane %v1765, 5
      %v1768 = vor.u32 %v1764, %v1767
      %v1769 = vrot.slane %v1768, 4
      %v1771 = vshll.u32 %v1441, 16
      %v1773 = vrot.slane %v1771, 5
      %v1774 = vsel %vm367, %v1769, %v1773
      %v1775 = vshrl.u32 %v1441, 16
      %v1777 = vrot.slane %v1775, 4
      %v1778 = vor.u32 %v1777, %v1773
      %v1779 = vrot.slane %v1778, 4
      %v1781 = vshll.u32 %v1442, 16
      %v1783 = vrot.slane %v1781, 5
      %v1784 = vsel %vm367, %v1779, %v1783
      %v1786 = vshrl.u32 %v1443, 16
      %v1788 = vrot.slane %v1786, 4
      %v1789 = vshll.u32 %v1443, 16
      %v1791 = vrot.slane %v1789, 5
      %v1792 = vor.u32 %v1788, %v1791
      %v1793 = vrot.slane %v1792, 4
      %v1795 = vshll.u32 %v1444, 16
      %v1797 = vrot.slane %v1795, 5
      %v1798 = vsel %vm367, %v1793, %v1797
      %v1799 = vshrl.u32 %v1444, 16
      %v1801 = vrot.slane %v1799, 4
      %v1802 = vor.u32 %v1801, %v1797
      %v1803 = vrot.slane %v1802, 4
      %v1805 = vshll.u32 %v1445, 16
      %v1807 = vrot.slane %v1805, 5
      %v1808 = vsel %vm367, %v1803, %v1807
      %v1810 = vshrl.u32 %v1446, 16
      %v1812 = vrot.slane %v1810, 4
      %v1813 = vshll.u32 %v1446, 16
      %v1815 = vrot.slane %v1813, 5
      %v1816 = vor.u32 %v1812, %v1815
      %v1817 = vrot.slane %v1816, 4
      %v1819 = vshll.u32 %v1447, 16
      %v1821 = vrot.slane %v1819, 5
      %v1822 = vsel %vm367, %v1817, %v1821
      %v1823 = vshrl.u32 %v1447, 16
      %v1825 = vrot.slane %v1823, 4
      %v1826 = vor.u32 %v1825, %v1821
      %v1827 = vrot.slane %v1826, 4
      %v1829 = vshll.u32 %v1448, 16
      %v1831 = vrot.slane %v1829, 5
      %v1832 = vsel %vm367, %v1827, %v1831
      %v1833 = vunpack.c.l.b16 %v1462
      %v1834 = vunpack.c.l.b16 %v1472
      %v1835 = vunpack.c.l.b16 %v1486
      %v1836 = vunpack.c.l.b16 %v1496
      %v1837 = vunpack.c.l.b16 %v1510
      %v1838 = vunpack.c.l.b16 %v1520
      %v1839 = vunpack.c.l.b16 %v1534
      %v1840 = vunpack.c.l.b16 %v1544
      %v1841 = vunpack.c.l.b16 %v1558
      %v1842 = vunpack.c.l.b16 %v1568
      %v1843 = vunpack.c.l.b16 %v1582
      %v1844 = vunpack.c.l.b16 %v1592
      %v1845 = vunpack.c.l.b16 %v1606
      %v1846 = vunpack.c.l.b16 %v1616
      %v1847 = vunpack.c.l.b16 %v1630
      %v1848 = vunpack.c.l.b16 %v1640
      %v1849 = vunpack.c.l.b16 %v1654
      %v1850 = vunpack.c.l.b16 %v1664
      %v1851 = vunpack.c.l.b16 %v1678
      %v1852 = vunpack.c.l.b16 %v1688
      %v1853 = vunpack.c.l.b16 %v1702
      %v1854 = vunpack.c.l.b16 %v1712
      %v1855 = vunpack.c.l.b16 %v1726
      %v1856 = vunpack.c.l.b16 %v1736
      %v1857 = vunpack.c.l.b16 %v1750
      %v1858 = vunpack.c.l.b16 %v1760
      %v1859 = vunpack.c.l.b16 %v1774
      %v1860 = vunpack.c.l.b16 %v1784
      %v1861 = vunpack.c.l.b16 %v1798
      %v1862 = vunpack.c.l.b16 %v1808
      %v1863 = vunpack.c.l.b16 %v1822
      %v1864 = vunpack.c.l.b16 %v1832
      %v1865 = vpack.c.b16 %v1834, %v1833
      %v1866 = vpack.c.b16 %v1836, %v1835
      %v1867 = vpack.c.b16 %v1838, %v1837
      %v1868 = vpack.c.b16 %v1840, %v1839
      %v1869 = vpack.c.b16 %v1842, %v1841
      %v1870 = vpack.c.b16 %v1844, %v1843
      %v1871 = vpack.c.b16 %v1846, %v1845
      %v1872 = vpack.c.b16 %v1848, %v1847
      %v1873 = vpack.c.b16 %v1850, %v1849
      %v1874 = vpack.c.b16 %v1852, %v1851
      %v1875 = vpack.c.b16 %v1854, %v1853
      %v1876 = vpack.c.b16 %v1856, %v1855
      %v1877 = vpack.c.b16 %v1858, %v1857
      %v1878 = vpack.c.b16 %v1860, %v1859
      %v1879 = vpack.c.b16 %v1862, %v1861
      %v1880 = vpack.c.b16 %v1864, %v1863
      %1897 = vst.msk [vmem:[#allocation2 + $0x18] sm:$0xff] %vm300, %v1865
      %1898 = vst.msk [vmem:[#allocation2 + $0x50] sm:$0xff] %vm300, %v1866
      %1899 = vst.msk [vmem:[#allocation2 + $0x88] sm:$0xff] %vm300, %v1867
      %1900 = vst.msk [vmem:[#allocation2 + $0xc0] sm:$0xff] %vm300, %v1868
      %1901 = vst.msk [vmem:[#allocation2 + $0xf8] sm:$0xff] %vm300, %v1869
      %1902 = vst.msk [vmem:[#allocation2 + $0x130] sm:$0xff] %vm300, %v1870
      %1903 = vst.msk [vmem:[#allocation2 + $0x168] sm:$0xff] %vm300, %v1871
      %1904 = vst.msk [vmem:[#allocation2 + $0x1a0] sm:$0xff] %vm300, %v1872
      %1905 = vst.msk [vmem:[#allocation2 + $0x1d8] sm:$0xff] %vm300, %v1873
      %1906 = vst.msk [vmem:[#allocation2 + $0x210] sm:$0xff] %vm300, %v1874
      %1907 = vst.msk [vmem:[#allocation2 + $0x248] sm:$0xff] %vm300, %v1875
      %1908 = vst.msk [vmem:[#allocation2 + $0x280] sm:$0xff] %vm300, %v1876
      %1909 = vst.msk [vmem:[#allocation2 + $0x2b8] sm:$0xff] %vm300, %v1877
      %1910 = vst.msk [vmem:[#allocation2 + $0x2f0] sm:$0xff] %vm300, %v1878
      %1911 = vst.msk [vmem:[#allocation2 + $0x328] sm:$0xff] %vm300, %v1879
      %1912 = vst.msk [vmem:[#allocation2 + $0x360] sm:$0xff] %vm300, %v1880
      %v1913 = vld [vmem:[%s1223] sm:$0xe]
      %v1914 = vld [vmem:[%s1223 + $0x4] sm:$0xf]
      %v1915 = vld [vmem:[%s1223 + $0x8] sm:$0x1]
      %v1916 = vld [vmem:[%s1223 + $0xc] sm:$0xe]
      %v1917 = vld [vmem:[%s1223 + $0x10] sm:$0xf]
      %v1918 = vld [vmem:[%s1223 + $0x14] sm:$0x1]
      %v1919 = vld [vmem:[%s1223 + $0x18] sm:$0xe]
      %v1920 = vld [vmem:[%s1223 + $0x1c] sm:$0xf]
      %v1921 = vld [vmem:[%s1223 + $0x20] sm:$0x1]
      %v1922 = vld [vmem:[%s1223 + $0x24] sm:$0xe]
      %v1923 = vld [vmem:[%s1223 + $0x28] sm:$0xf]
      %v1924 = vld [vmem:[%s1223 + $0x2c] sm:$0x1]
      %v1925 = vld [vmem:[%s1223 + $0x30] sm:$0xe]
      %v1926 = vld [vmem:[%s1223 + $0x34] sm:$0xf]
      %v1927 = vld [vmem:[%s1223 + $0x38] sm:$0x1]
      %v1928 = vld [vmem:[%s1223 + $0x3c] sm:$0xe]
      %v1929 = vld [vmem:[%s1223 + $0x40] sm:$0xf]
      %v1930 = vld [vmem:[%s1223 + $0x44] sm:$0x1]
      %v1931 = vld [vmem:[%s1223 + $0x48] sm:$0xe]
      %v1932 = vld [vmem:[%s1223 + $0x4c] sm:$0xf]
      %v1933 = vld [vmem:[%s1223 + $0x50] sm:$0x1]
      %v1934 = vld [vmem:[%s1223 + $0x54] sm:$0xe]
      %v1935 = vld [vmem:[%s1223 + $0x58] sm:$0xf]
      %v1936 = vld [vmem:[%s1223 + $0x5c] sm:$0x1]
      %v1937 = vld [vmem:[%s1223 + $0x60] sm:$0xe]
      %v1938 = vld [vmem:[%s1223 + $0x64] sm:$0xf]
      %v1939 = vld [vmem:[%s1223 + $0x68] sm:$0x1]
      %v1940 = vld [vmem:[%s1223 + $0x6c] sm:$0xe]
      %v1941 = vld [vmem:[%s1223 + $0x70] sm:$0xf]
      %v1942 = vld [vmem:[%s1223 + $0x74] sm:$0x1]
      %v1943 = vld [vmem:[%s1223 + $0x78] sm:$0xe]
      %v1944 = vld [vmem:[%s1223 + $0x7c] sm:$0xf]
      %v1945 = vld [vmem:[%s1223 + $0x80] sm:$0x1]
      %v1946 = vld [vmem:[%s1223 + $0x84] sm:$0xe]
      %v1947 = vld [vmem:[%s1223 + $0x88] sm:$0xf]
      %v1948 = vld [vmem:[%s1223 + $0x8c] sm:$0x1]
      %v1949 = vld [vmem:[%s1223 + $0x90] sm:$0xe]
      %v1950 = vld [vmem:[%s1223 + $0x94] sm:$0xf]
      %v1951 = vld [vmem:[%s1223 + $0x98] sm:$0x1]
      %v1952 = vld [vmem:[%s1223 + $0x9c] sm:$0xe]
      %v1953 = vld [vmem:[%s1223 + $0xa0] sm:$0xf]
      %v1954 = vld [vmem:[%s1223 + $0xa4] sm:$0x1]
      %v1955 = vld [vmem:[%s1223 + $0xa8] sm:$0xe]
      %v1956 = vld [vmem:[%s1223 + $0xac] sm:$0xf]
      %v1957 = vld [vmem:[%s1223 + $0xb0] sm:$0x1]
      %v1958 = vld [vmem:[%s1223 + $0xb4] sm:$0xe]
      %v1959 = vld [vmem:[%s1223 + $0xb8] sm:$0xf]
      %v1960 = vld [vmem:[%s1223 + $0xbc] sm:$0x1]
      %v2009 = vrot.slane %v1913, 5
      %v2010 = vrot.slane %v2009, 4
      %v2011 = vrot.slane %v1914, 5
      %v2012 = vsel %vm980, %v2010, %v2011
      %v2013 = vrot.slane %v2011, 4
      %v2014 = vrot.slane %v1915, 5
      %v2015 = vsel %vm980, %v2013, %v2014
      %v2016 = vrot.slane %v1916, 5
      %v2017 = vrot.slane %v2016, 4
      %v2018 = vrot.slane %v1917, 5
      %v2019 = vsel %vm980, %v2017, %v2018
      %v2020 = vrot.slane %v2018, 4
      %v2021 = vrot.slane %v1918, 5
      %v2022 = vsel %vm980, %v2020, %v2021
      %v2023 = vrot.slane %v1919, 5
      %v2024 = vrot.slane %v2023, 4
      %v2025 = vrot.slane %v1920, 5
      %v2026 = vsel %vm980, %v2024, %v2025
      %v2027 = vrot.slane %v2025, 4
      %v2028 = vrot.slane %v1921, 5
      %v2029 = vsel %vm980, %v2027, %v2028
      %v2030 = vrot.slane %v1922, 5
      %v2031 = vrot.slane %v2030, 4
      %v2032 = vrot.slane %v1923, 5
      %v2033 = vsel %vm980, %v2031, %v2032
      %v2034 = vrot.slane %v2032, 4
      %v2035 = vrot.slane %v1924, 5
      %v2036 = vsel %vm980, %v2034, %v2035
      %v2037 = vrot.slane %v1925, 5
      %v2038 = vrot.slane %v2037, 4
      %v2039 = vrot.slane %v1926, 5
      %v2040 = vsel %vm980, %v2038, %v2039
      %v2041 = vrot.slane %v2039, 4
      %v2042 = vrot.slane %v1927, 5
      %v2043 = vsel %vm980, %v2041, %v2042
      %v2044 = vrot.slane %v1928, 5
      %v2045 = vrot.slane %v2044, 4
      %v2046 = vrot.slane %v1929, 5
      %v2047 = vsel %vm980, %v2045, %v2046
      %v2048 = vrot.slane %v2046, 4
      %v2049 = vrot.slane %v1930, 5
      %v2050 = vsel %vm980, %v2048, %v2049
      %v2051 = vrot.slane %v1931, 5
      %v2052 = vrot.slane %v2051, 4
      %v2053 = vrot.slane %v1932, 5
      %v2054 = vsel %vm980, %v2052, %v2053
      %v2055 = vrot.slane %v2053, 4
      %v2056 = vrot.slane %v1933, 5
      %v2057 = vsel %vm980, %v2055, %v2056
      %v2058 = vrot.slane %v1934, 5
      %v2059 = vrot.slane %v2058, 4
      %v2060 = vrot.slane %v1935, 5
      %v2061 = vsel %vm980, %v2059, %v2060
      %v2062 = vrot.slane %v2060, 4
      %v2063 = vrot.slane %v1936, 5
      %v2064 = vsel %vm980, %v2062, %v2063
      %v2065 = vrot.slane %v1937, 5
      %v2066 = vrot.slane %v2065, 4
      %v2067 = vrot.slane %v1938, 5
      %v2068 = vsel %vm980, %v2066, %v2067
      %v2069 = vrot.slane %v2067, 4
      %v2070 = vrot.slane %v1939, 5
      %v2071 = vsel %vm980, %v2069, %v2070
      %v2072 = vrot.slane %v1940, 5
      %v2073 = vrot.slane %v2072, 4
      %v2074 = vrot.slane %v1941, 5
      %v2075 = vsel %vm980, %v2073, %v2074
      %v2076 = vrot.slane %v2074, 4
      %v2077 = vrot.slane %v1942, 5
      %v2078 = vsel %vm980, %v2076, %v2077
      %v2079 = vrot.slane %v1943, 5
      %v2080 = vrot.slane %v2079, 4
      %v2081 = vrot.slane %v1944, 5
      %v2082 = vsel %vm980, %v2080, %v2081
      %v2083 = vrot.slane %v2081, 4
      %v2084 = vrot.slane %v1945, 5
      %v2085 = vsel %vm980, %v2083, %v2084
      %v2086 = vrot.slane %v1946, 5
      %v2087 = vrot.slane %v2086, 4
      %v2088 = vrot.slane %v1947, 5
      %v2089 = vsel %vm980, %v2087, %v2088
      %v2090 = vrot.slane %v2088, 4
      %v2091 = vrot.slane %v1948, 5
      %v2092 = vsel %vm980, %v2090, %v2091
      %v2093 = vrot.slane %v1949, 5
      %v2094 = vrot.slane %v2093, 4
      %v2095 = vrot.slane %v1950, 5
      %v2096 = vsel %vm980, %v2094, %v2095
      %v2097 = vrot.slane %v2095, 4
      %v2098 = vrot.slane %v1951, 5
      %v2099 = vsel %vm980, %v2097, %v2098
      %v2100 = vrot.slane %v1952, 5
      %v2101 = vrot.slane %v2100, 4
      %v2102 = vrot.slane %v1953, 5
      %v2103 = vsel %vm980, %v2101, %v2102
      %v2104 = vrot.slane %v2102, 4
      %v2105 = vrot.slane %v1954, 5
      %v2106 = vsel %vm980, %v2104, %v2105
      %v2107 = vrot.slane %v1955, 5
      %v2108 = vrot.slane %v2107, 4
      %v2109 = vrot.slane %v1956, 5
      %v2110 = vsel %vm980, %v2108, %v2109
      %v2111 = vrot.slane %v2109, 4
      %v2112 = vrot.slane %v1957, 5
      %v2113 = vsel %vm980, %v2111, %v2112
      %v2114 = vrot.slane %v1958, 5
      %v2115 = vrot.slane %v2114, 4
      %v2116 = vrot.slane %v1959, 5
      %v2117 = vsel %vm980, %v2115, %v2116
      %v2118 = vrot.slane %v2116, 4
      %v2119 = vrot.slane %v1960, 5
      %v2120 = vsel %vm980, %v2118, %v2119
      %v2121 = vunpack.c.l.b16 %v2012
      %v2122 = vunpack.c.l.b16 %v2015
      %v2123 = vunpack.c.l.b16 %v2019
      %v2124 = vunpack.c.l.b16 %v2022
      %v2125 = vunpack.c.l.b16 %v2026
      %v2126 = vunpack.c.l.b16 %v2029
      %v2127 = vunpack.c.l.b16 %v2033
      %v2128 = vunpack.c.l.b16 %v2036
      %v2129 = vunpack.c.l.b16 %v2040
      %v2130 = vunpack.c.l.b16 %v2043
      %v2131 = vunpack.c.l.b16 %v2047
      %v2132 = vunpack.c.l.b16 %v2050
      %v2133 = vunpack.c.l.b16 %v2054
      %v2134 = vunpack.c.l.b16 %v2057
      %v2135 = vunpack.c.l.b16 %v2061
      %v2136 = vunpack.c.l.b16 %v2064
      %v2137 = vunpack.c.l.b16 %v2068
      %v2138 = vunpack.c.l.b16 %v2071
      %v2139 = vunpack.c.l.b16 %v2075
      %v2140 = vunpack.c.l.b16 %v2078
      %v2141 = vunpack.c.l.b16 %v2082
      %v2142 = vunpack.c.l.b16 %v2085
      %v2143 = vunpack.c.l.b16 %v2089
      %v2144 = vunpack.c.l.b16 %v2092
      %v2145 = vunpack.c.l.b16 %v2096
      %v2146 = vunpack.c.l.b16 %v2099
      %v2147 = vunpack.c.l.b16 %v2103
      %v2148 = vunpack.c.l.b16 %v2106
      %v2149 = vunpack.c.l.b16 %v2110
      %v2150 = vunpack.c.l.b16 %v2113
      %v2151 = vunpack.c.l.b16 %v2117
      %v2152 = vunpack.c.l.b16 %v2120
      %v2153 = vpack.c.b16 %v2122, %v2121
      %v2154 = vpack.c.b16 %v2124, %v2123
      %v2155 = vpack.c.b16 %v2126, %v2125
      %v2156 = vpack.c.b16 %v2128, %v2127
      %v2157 = vpack.c.b16 %v2130, %v2129
      %v2158 = vpack.c.b16 %v2132, %v2131
      %v2159 = vpack.c.b16 %v2134, %v2133
      %v2160 = vpack.c.b16 %v2136, %v2135
      %v2161 = vpack.c.b16 %v2138, %v2137
      %v2162 = vpack.c.b16 %v2140, %v2139
      %v2163 = vpack.c.b16 %v2142, %v2141
      %v2164 = vpack.c.b16 %v2144, %v2143
      %v2165 = vpack.c.b16 %v2146, %v2145
      %v2166 = vpack.c.b16 %v2148, %v2147
      %v2167 = vpack.c.b16 %v2150, %v2149
      %v2168 = vpack.c.b16 %v2152, %v2151
      %2169 = vrot.lane.b32.xlu0 %v2153, 96
      %v2170 = vpop.permute.xlu0 %2169
      %2171 = vrot.lane.b32.xlu0 %v2154, 96
      %v2172 = vpop.permute.xlu0 %2171
      %2173 = vrot.lane.b32.xlu0 %v2155, 96
      %v2174 = vpop.permute.xlu0 %2173
      %2175 = vrot.lane.b32.xlu0 %v2156, 96
      %v2176 = vpop.permute.xlu0 %2175
      %2177 = vrot.lane.b32.xlu0 %v2157, 96
      %v2178 = vpop.permute.xlu0 %2177
      %2179 = vrot.lane.b32.xlu0 %v2158, 96
      %v2180 = vpop.permute.xlu0 %2179
      %2181 = vrot.lane.b32.xlu0 %v2159, 96
      %v2182 = vpop.permute.xlu0 %2181
      %2183 = vrot.lane.b32.xlu0 %v2160, 96
      %v2184 = vpop.permute.xlu0 %2183
      %2185 = vrot.lane.b32.xlu0 %v2161, 96
      %v2186 = vpop.permute.xlu0 %2185
      %2187 = vrot.lane.b32.xlu0 %v2162, 96
      %v2188 = vpop.permute.xlu0 %2187
      %2189 = vrot.lane.b32.xlu0 %v2163, 96
      %v2190 = vpop.permute.xlu0 %2189
      %2191 = vrot.lane.b32.xlu0 %v2164, 96
      %v2192 = vpop.permute.xlu0 %2191
      %2193 = vrot.lane.b32.xlu0 %v2165, 96
      %v2194 = vpop.permute.xlu0 %2193
      %2195 = vrot.lane.b32.xlu0 %v2166, 96
      %v2196 = vpop.permute.xlu0 %2195
      %2197 = vrot.lane.b32.xlu0 %v2167, 96
      %v2198 = vpop.permute.xlu0 %2197
      %2199 = vrot.lane.b32.xlu0 %v2168, 96
      %v2200 = vpop.permute.xlu0 %2199
      %2217 = vst.msk [vmem:[#allocation2 + $0x18] sm:$0xff] %vm848, %v2170
      %2218 = vst.msk [vmem:[#allocation2 + $0x20] sm:$0xff] %vm850, %v2170
      %2219 = vst.msk [vmem:[#allocation2 + $0x50] sm:$0xff] %vm848, %v2172
      %2220 = vst.msk [vmem:[#allocation2 + $0x58] sm:$0xff] %vm850, %v2172
      %2221 = vst.msk [vmem:[#allocation2 + $0x88] sm:$0xff] %vm848, %v2174
      %2222 = vst.msk [vmem:[#allocation2 + $0x90] sm:$0xff] %vm850, %v2174
      %2223 = vst.msk [vmem:[#allocation2 + $0xc0] sm:$0xff] %vm848, %v2176
      %2224 = vst.msk [vmem:[#allocation2 + $0xc8] sm:$0xff] %vm850, %v2176
      %2225 = vst.msk [vmem:[#allocation2 + $0xf8] sm:$0xff] %vm848, %v2178
      %2226 = vst.msk [vmem:[#allocation2 + $0x100] sm:$0xff] %vm850, %v2178
      %2227 = vst.msk [vmem:[#allocation2 + $0x130] sm:$0xff] %vm848, %v2180
      %2228 = vst.msk [vmem:[#allocation2 + $0x138] sm:$0xff] %vm850, %v2180
      %2229 = vst.msk [vmem:[#allocation2 + $0x168] sm:$0xff] %vm848, %v2182
      %2230 = vst.msk [vmem:[#allocation2 + $0x170] sm:$0xff] %vm850, %v2182
      %2231 = vst.msk [vmem:[#allocation2 + $0x1a0] sm:$0xff] %vm848, %v2184
      %2232 = vst.msk [vmem:[#allocation2 + $0x1a8] sm:$0xff] %vm850, %v2184
      %2233 = vst.msk [vmem:[#allocation2 + $0x1d8] sm:$0xff] %vm848, %v2186
      %2234 = vst.msk [vmem:[#allocation2 + $0x1e0] sm:$0xff] %vm850, %v2186
      %2235 = vst.msk [vmem:[#allocation2 + $0x210] sm:$0xff] %vm848, %v2188
      %2236 = vst.msk [vmem:[#allocation2 + $0x218] sm:$0xff] %vm850, %v2188
      %2237 = vst.msk [vmem:[#allocation2 + $0x248] sm:$0xff] %vm848, %v2190
      %2238 = vst.msk [vmem:[#allocation2 + $0x250] sm:$0xff] %vm850, %v2190
      %2239 = vst.msk [vmem:[#allocation2 + $0x280] sm:$0xff] %vm848, %v2192
      %2240 = vst.msk [vmem:[#allocation2 + $0x288] sm:$0xff] %vm850, %v2192
      %2241 = vst.msk [vmem:[#allocation2 + $0x2b8] sm:$0xff] %vm848, %v2194
      %2242 = vst.msk [vmem:[#allocation2 + $0x2c0] sm:$0xff] %vm850, %v2194
      %2243 = vst.msk [vmem:[#allocation2 + $0x2f0] sm:$0xff] %vm848, %v2196
      %2244 = vst.msk [vmem:[#allocation2 + $0x2f8] sm:$0xff] %vm850, %v2196
      %2245 = vst.msk [vmem:[#allocation2 + $0x328] sm:$0xff] %vm848, %v2198
      %2246 = vst.msk [vmem:[#allocation2 + $0x330] sm:$0xff] %vm850, %v2198
      %2247 = vst.msk [vmem:[#allocation2 + $0x360] sm:$0xff] %vm848, %v2200
      %2248 = vst.msk [vmem:[#allocation2 + $0x368] sm:$0xff] %vm850, %v2200
      %s2249 = scalar_lea.vmem %s165, 24
      %v2250 = vld [vmem:[%s2249] sm:$0xf]
      %v2251 = vld [vmem:[%s2249 + $0x4] sm:$0xf]
      %v2252 = vld [vmem:[%s2249 + $0xc] sm:$0xf]
      %v2253 = vld [vmem:[%s2249 + $0x10] sm:$0xf]
      %v2254 = vld [vmem:[%s2249 + $0x18] sm:$0xf]
      %v2255 = vld [vmem:[%s2249 + $0x1c] sm:$0xf]
      %v2256 = vld [vmem:[%s2249 + $0x24] sm:$0xf]
      %v2257 = vld [vmem:[%s2249 + $0x28] sm:$0xf]
      %v2258 = vld [vmem:[%s2249 + $0x30] sm:$0xf]
      %v2259 = vld [vmem:[%s2249 + $0x34] sm:$0xf]
      %v2260 = vld [vmem:[%s2249 + $0x3c] sm:$0xf]
      %v2261 = vld [vmem:[%s2249 + $0x40] sm:$0xf]
      %v2262 = vld [vmem:[%s2249 + $0x48] sm:$0xf]
      %v2263 = vld [vmem:[%s2249 + $0x4c] sm:$0xf]
      %v2264 = vld [vmem:[%s2249 + $0x54] sm:$0xf]
      %v2265 = vld [vmem:[%s2249 + $0x58] sm:$0xf]
      %v2266 = vld [vmem:[%s2249 + $0x60] sm:$0xf]
      %v2267 = vld [vmem:[%s2249 + $0x64] sm:$0xf]
      %v2268 = vld [vmem:[%s2249 + $0x6c] sm:$0xf]
      %v2269 = vld [vmem:[%s2249 + $0x70] sm:$0xf]
      %v2270 = vld [vmem:[%s2249 + $0x78] sm:$0xf]
      %v2271 = vld [vmem:[%s2249 + $0x7c] sm:$0xf]
      %v2272 = vld [vmem:[%s2249 + $0x84] sm:$0xf]
      %v2273 = vld [vmem:[%s2249 + $0x88] sm:$0xf]
      %v2274 = vld [vmem:[%s2249 + $0x90] sm:$0xf]
      %v2275 = vld [vmem:[%s2249 + $0x94] sm:$0xf]
      %v2276 = vld [vmem:[%s2249 + $0x9c] sm:$0xf]
      %v2277 = vld [vmem:[%s2249 + $0xa0] sm:$0xf]
      %v2278 = vld [vmem:[%s2249 + $0xa8] sm:$0xf]
      %v2279 = vld [vmem:[%s2249 + $0xac] sm:$0xf]
      %v2280 = vld [vmem:[%s2249 + $0xb4] sm:$0xf]
      %v2281 = vld [vmem:[%s2249 + $0xb8] sm:$0xf]
      %v2314 = vunpack.c.l.b16 %v2250
      %v2315 = vunpack.c.l.b16 %v2251
      %v2316 = vunpack.c.l.b16 %v2252
      %v2317 = vunpack.c.l.b16 %v2253
      %v2318 = vunpack.c.l.b16 %v2254
      %v2319 = vunpack.c.l.b16 %v2255
      %v2320 = vunpack.c.l.b16 %v2256
      %v2321 = vunpack.c.l.b16 %v2257
      %v2322 = vunpack.c.l.b16 %v2258
      %v2323 = vunpack.c.l.b16 %v2259
      %v2324 = vunpack.c.l.b16 %v2260
      %v2325 = vunpack.c.l.b16 %v2261
      %v2326 = vunpack.c.l.b16 %v2262
      %v2327 = vunpack.c.l.b16 %v2263
      %v2328 = vunpack.c.l.b16 %v2264
      %v2329 = vunpack.c.l.b16 %v2265
      %v2330 = vunpack.c.l.b16 %v2266
      %v2331 = vunpack.c.l.b16 %v2267
      %v2332 = vunpack.c.l.b16 %v2268
      %v2333 = vunpack.c.l.b16 %v2269
      %v2334 = vunpack.c.l.b16 %v2270
      %v2335 = vunpack.c.l.b16 %v2271
      %v2336 = vunpack.c.l.b16 %v2272
      %v2337 = vunpack.c.l.b16 %v2273
      %v2338 = vunpack.c.l.b16 %v2274
      %v2339 = vunpack.c.l.b16 %v2275
      %v2340 = vunpack.c.l.b16 %v2276
      %v2341 = vunpack.c.l.b16 %v2277
      %v2342 = vunpack.c.l.b16 %v2278
      %v2343 = vunpack.c.l.b16 %v2279
      %v2344 = vunpack.c.l.b16 %v2280
      %v2345 = vunpack.c.l.b16 %v2281
      %v2346 = vpack.c.b16 %v2315, %v2314
      %v2347 = vpack.c.b16 %v2317, %v2316
      %v2348 = vpack.c.b16 %v2319, %v2318
      %v2349 = vpack.c.b16 %v2321, %v2320
      %v2350 = vpack.c.b16 %v2323, %v2322
      %v2351 = vpack.c.b16 %v2325, %v2324
      %v2352 = vpack.c.b16 %v2327, %v2326
      %v2353 = vpack.c.b16 %v2329, %v2328
      %v2354 = vpack.c.b16 %v2331, %v2330
      %v2355 = vpack.c.b16 %v2333, %v2332
      %v2356 = vpack.c.b16 %v2335, %v2334
      %v2357 = vpack.c.b16 %v2337, %v2336
      %v2358 = vpack.c.b16 %v2339, %v2338
      %v2359 = vpack.c.b16 %v2341, %v2340
      %v2360 = vpack.c.b16 %v2343, %v2342
      %v2361 = vpack.c.b16 %v2345, %v2344
      %2362 = vrot.lane.b32.xlu0 %v2346, 64
      %v2363 = vpop.permute.xlu0 %2362
      %2364 = vrot.lane.b32.xlu0 %v2347, 64
      %v2365 = vpop.permute.xlu0 %2364
      %2366 = vrot.lane.b32.xlu0 %v2348, 64
      %v2367 = vpop.permute.xlu0 %2366
      %2368 = vrot.lane.b32.xlu0 %v2349, 64
      %v2369 = vpop.permute.xlu0 %2368
      %2370 = vrot.lane.b32.xlu0 %v2350, 64
      %v2371 = vpop.permute.xlu0 %2370
      %2372 = vrot.lane.b32.xlu0 %v2351, 64
      %v2373 = vpop.permute.xlu0 %2372
      %2374 = vrot.lane.b32.xlu0 %v2352, 64
      %v2375 = vpop.permute.xlu0 %2374
      %2376 = vrot.lane.b32.xlu0 %v2353, 64
      %v2377 = vpop.permute.xlu0 %2376
      %2378 = vrot.lane.b32.xlu0 %v2354, 64
      %v2379 = vpop.permute.xlu0 %2378
      %2380 = vrot.lane.b32.xlu0 %v2355, 64
      %v2381 = vpop.permute.xlu0 %2380
      %2382 = vrot.lane.b32.xlu0 %v2356, 64
      %v2383 = vpop.permute.xlu0 %2382
      %2384 = vrot.lane.b32.xlu0 %v2357, 64
      %v2385 = vpop.permute.xlu0 %2384
      %2386 = vrot.lane.b32.xlu0 %v2358, 64
      %v2387 = vpop.permute.xlu0 %2386
      %2388 = vrot.lane.b32.xlu0 %v2359, 64
      %v2389 = vpop.permute.xlu0 %2388
      %2390 = vrot.lane.b32.xlu0 %v2360, 64
      %v2391 = vpop.permute.xlu0 %2390
      %2392 = vrot.lane.b32.xlu0 %v2361, 64
      %v2393 = vpop.permute.xlu0 %2392
      %2410 = vst.msk [vmem:[#allocation2 + $0x20] sm:$0xff] %vm1189, %v2363
      %2411 = vst.msk [vmem:[#allocation2 + $0x28] sm:$0xff] %vm1191, %v2363
      %2412 = vst.msk [vmem:[#allocation2 + $0x58] sm:$0xff] %vm1189, %v2365
      %2413 = vst.msk [vmem:[#allocation2 + $0x60] sm:$0xff] %vm1191, %v2365
      %2414 = vst.msk [vmem:[#allocation2 + $0x90] sm:$0xff] %vm1189, %v2367
      %2415 = vst.msk [vmem:[#allocation2 + $0x98] sm:$0xff] %vm1191, %v2367
      %2416 = vst.msk [vmem:[#allocation2 + $0xc8] sm:$0xff] %vm1189, %v2369
      %2417 = vst.msk [vmem:[#allocation2 + $0xd0] sm:$0xff] %vm1191, %v2369
      %2418 = vst.msk [vmem:[#allocation2 + $0x100] sm:$0xff] %vm1189, %v2371
      %2419 = vst.msk [vmem:[#allocation2 + $0x108] sm:$0xff] %vm1191, %v2371
      %2420 = vst.msk [vmem:[#allocation2 + $0x138] sm:$0xff] %vm1189, %v2373
      %2421 = vst.msk [vmem:[#allocation2 + $0x140] sm:$0xff] %vm1191, %v2373
      %2422 = vst.msk [vmem:[#allocation2 + $0x170] sm:$0xff] %vm1189, %v2375
      %2423 = vst.msk [vmem:[#allocation2 + $0x178] sm:$0xff] %vm1191, %v2375
      %2424 = vst.msk [vmem:[#allocation2 + $0x1a8] sm:$0xff] %vm1189, %v2377
      %2425 = vst.msk [vmem:[#allocation2 + $0x1b0] sm:$0xff] %vm1191, %v2377
      %2426 = vst.msk [vmem:[#allocation2 + $0x1e0] sm:$0xff] %vm1189, %v2379
      %2427 = vst.msk [vmem:[#allocation2 + $0x1e8] sm:$0xff] %vm1191, %v2379
      %2428 = vst.msk [vmem:[#allocation2 + $0x218] sm:$0xff] %vm1189, %v2381
      %2429 = vst.msk [vmem:[#allocation2 + $0x220] sm:$0xff] %vm1191, %v2381
      %2430 = vst.msk [vmem:[#allocation2 + $0x250] sm:$0xff] %vm1189, %v2383
      %2431 = vst.msk [vmem:[#allocation2 + $0x258] sm:$0xff] %vm1191, %v2383
      %2432 = vst.msk [vmem:[#allocation2 + $0x288] sm:$0xff] %vm1189, %v2385
      %2433 = vst.msk [vmem:[#allocation2 + $0x290] sm:$0xff] %vm1191, %v2385
      %2434 = vst.msk [vmem:[#allocation2 + $0x2c0] sm:$0xff] %vm1189, %v2387
      %2435 = vst.msk [vmem:[#allocation2 + $0x2c8] sm:$0xff] %vm1191, %v2387
      %2436 = vst.msk [vmem:[#allocation2 + $0x2f8] sm:$0xff] %vm1189, %v2389
      %2437 = vst.msk [vmem:[#allocation2 + $0x300] sm:$0xff] %vm1191, %v2389
      %2438 = vst.msk [vmem:[#allocation2 + $0x330] sm:$0xff] %vm1189, %v2391
      %2439 = vst.msk [vmem:[#allocation2 + $0x338] sm:$0xff] %vm1191, %v2391
      %2440 = vst.msk [vmem:[#allocation2 + $0x368] sm:$0xff] %vm1189, %v2393
      %2441 = vst.msk [vmem:[#allocation2 + $0x370] sm:$0xff] %vm1191, %v2393
      %v2442 = vld [vmem:[%s2249] sm:$0xf]
      %v2443 = vld [vmem:[%s2249 + $0x4] sm:$0xf]
      %v2444 = vld [vmem:[%s2249 + $0x8] sm:$0x1]
      %v2445 = vld [vmem:[%s2249 + $0xc] sm:$0xf]
      %v2446 = vld [vmem:[%s2249 + $0x10] sm:$0xf]
      %v2447 = vld [vmem:[%s2249 + $0x14] sm:$0x1]
      %v2448 = vld [vmem:[%s2249 + $0x18] sm:$0xf]
      %v2449 = vld [vmem:[%s2249 + $0x1c] sm:$0xf]
      %v2450 = vld [vmem:[%s2249 + $0x20] sm:$0x1]
      %v2451 = vld [vmem:[%s2249 + $0x24] sm:$0xf]
      %v2452 = vld [vmem:[%s2249 + $0x28] sm:$0xf]
      %v2453 = vld [vmem:[%s2249 + $0x2c] sm:$0x1]
      %v2454 = vld [vmem:[%s2249 + $0x30] sm:$0xf]
      %v2455 = vld [vmem:[%s2249 + $0x34] sm:$0xf]
      %v2456 = vld [vmem:[%s2249 + $0x38] sm:$0x1]
      %v2457 = vld [vmem:[%s2249 + $0x3c] sm:$0xf]
      %v2458 = vld [vmem:[%s2249 + $0x40] sm:$0xf]
      %v2459 = vld [vmem:[%s2249 + $0x44] sm:$0x1]
      %v2460 = vld [vmem:[%s2249 + $0x48] sm:$0xf]
      %v2461 = vld [vmem:[%s2249 + $0x4c] sm:$0xf]
      %v2462 = vld [vmem:[%s2249 + $0x50] sm:$0x1]
      %v2463 = vld [vmem:[%s2249 + $0x54] sm:$0xf]
      %v2464 = vld [vmem:[%s2249 + $0x58] sm:$0xf]
      %v2465 = vld [vmem:[%s2249 + $0x5c] sm:$0x1]
      %v2466 = vld [vmem:[%s2249 + $0x60] sm:$0xf]
      %v2467 = vld [vmem:[%s2249 + $0x64] sm:$0xf]
      %v2468 = vld [vmem:[%s2249 + $0x68] sm:$0x1]
      %v2469 = vld [vmem:[%s2249 + $0x6c] sm:$0xf]
      %v2470 = vld [vmem:[%s2249 + $0x70] sm:$0xf]
      %v2471 = vld [vmem:[%s2249 + $0x74] sm:$0x1]
      %v2472 = vld [vmem:[%s2249 + $0x78] sm:$0xf]
      %v2473 = vld [vmem:[%s2249 + $0x7c] sm:$0xf]
      %v2474 = vld [vmem:[%s2249 + $0x80] sm:$0x1]
      %v2475 = vld [vmem:[%s2249 + $0x84] sm:$0xf]
      %v2476 = vld [vmem:[%s2249 + $0x88] sm:$0xf]
      %v2477 = vld [vmem:[%s2249 + $0x8c] sm:$0x1]
      %v2478 = vld [vmem:[%s2249 + $0x90] sm:$0xf]
      %v2479 = vld [vmem:[%s2249 + $0x94] sm:$0xf]
      %v2480 = vld [vmem:[%s2249 + $0x98] sm:$0x1]
      %v2481 = vld [vmem:[%s2249 + $0x9c] sm:$0xf]
      %v2482 = vld [vmem:[%s2249 + $0xa0] sm:$0xf]
      %v2483 = vld [vmem:[%s2249 + $0xa4] sm:$0x1]
      %v2484 = vld [vmem:[%s2249 + $0xa8] sm:$0xf]
      %v2485 = vld [vmem:[%s2249 + $0xac] sm:$0xf]
      %v2486 = vld [vmem:[%s2249 + $0xb0] sm:$0x1]
      %v2487 = vld [vmem:[%s2249 + $0xb4] sm:$0xf]
      %v2488 = vld [vmem:[%s2249 + $0xb8] sm:$0xf]
      %v2489 = vld [vmem:[%s2249 + $0xbc] sm:$0x1]
      %v2491 = vshrl.u32 %v2442, 16
      %v2493 = vrot.slane %v2491, 4
      %v2494 = vshll.u32 %v2442, 16
      %v2496 = vrot.slane %v2494, 5
      %v2497 = vor.u32 %v2493, %v2496
      %v2498 = vrot.slane %v2497, 4
      %v2500 = vshll.u32 %v2443, 16
      %v2502 = vrot.slane %v2500, 5
      %v2503 = vsel %vm367, %v2498, %v2502
      %v2504 = vshrl.u32 %v2443, 16
      %v2506 = vrot.slane %v2504, 4
      %v2507 = vor.u32 %v2506, %v2502
      %v2508 = vrot.slane %v2507, 4
      %v2510 = vshll.u32 %v2444, 16
      %v2512 = vrot.slane %v2510, 5
      %v2513 = vsel %vm367, %v2508, %v2512
      %v2515 = vshrl.u32 %v2445, 16
      %v2517 = vrot.slane %v2515, 4
      %v2518 = vshll.u32 %v2445, 16
      %v2520 = vrot.slane %v2518, 5
      %v2521 = vor.u32 %v2517, %v2520
      %v2522 = vrot.slane %v2521, 4
      %v2524 = vshll.u32 %v2446, 16
      %v2526 = vrot.slane %v2524, 5
      %v2527 = vsel %vm367, %v2522, %v2526
      %v2528 = vshrl.u32 %v2446, 16
      %v2530 = vrot.slane %v2528, 4
      %v2531 = vor.u32 %v2530, %v2526
      %v2532 = vrot.slane %v2531, 4
      %v2534 = vshll.u32 %v2447, 16
      %v2536 = vrot.slane %v2534, 5
      %v2537 = vsel %vm367, %v2532, %v2536
      %v2539 = vshrl.u32 %v2448, 16
      %v2541 = vrot.slane %v2539, 4
      %v2542 = vshll.u32 %v2448, 16
      %v2544 = vrot.slane %v2542, 5
      %v2545 = vor.u32 %v2541, %v2544
      %v2546 = vrot.slane %v2545, 4
      %v2548 = vshll.u32 %v2449, 16
      %v2550 = vrot.slane %v2548, 5
      %v2551 = vsel %vm367, %v2546, %v2550
      %v2552 = vshrl.u32 %v2449, 16
      %v2554 = vrot.slane %v2552, 4
      %v2555 = vor.u32 %v2554, %v2550
      %v2556 = vrot.slane %v2555, 4
      %v2558 = vshll.u32 %v2450, 16
      %v2560 = vrot.slane %v2558, 5
      %v2561 = vsel %vm367, %v2556, %v2560
      %v2563 = vshrl.u32 %v2451, 16
      %v2565 = vrot.slane %v2563, 4
      %v2566 = vshll.u32 %v2451, 16
      %v2568 = vrot.slane %v2566, 5
      %v2569 = vor.u32 %v2565, %v2568
      %v2570 = vrot.slane %v2569, 4
      %v2572 = vshll.u32 %v2452, 16
      %v2574 = vrot.slane %v2572, 5
      %v2575 = vsel %vm367, %v2570, %v2574
      %v2576 = vshrl.u32 %v2452, 16
      %v2578 = vrot.slane %v2576, 4
      %v2579 = vor.u32 %v2578, %v2574
      %v2580 = vrot.slane %v2579, 4
      %v2582 = vshll.u32 %v2453, 16
      %v2584 = vrot.slane %v2582, 5
      %v2585 = vsel %vm367, %v2580, %v2584
      %v2587 = vshrl.u32 %v2454, 16
      %v2589 = vrot.slane %v2587, 4
      %v2590 = vshll.u32 %v2454, 16
      %v2592 = vrot.slane %v2590, 5
      %v2593 = vor.u32 %v2589, %v2592
      %v2594 = vrot.slane %v2593, 4
      %v2596 = vshll.u32 %v2455, 16
      %v2598 = vrot.slane %v2596, 5
      %v2599 = vsel %vm367, %v2594, %v2598
      %v2600 = vshrl.u32 %v2455, 16
      %v2602 = vrot.slane %v2600, 4
      %v2603 = vor.u32 %v2602, %v2598
      %v2604 = vrot.slane %v2603, 4
      %v2606 = vshll.u32 %v2456, 16
      %v2608 = vrot.slane %v2606, 5
      %v2609 = vsel %vm367, %v2604, %v2608
      %v2611 = vshrl.u32 %v2457, 16
      %v2613 = vrot.slane %v2611, 4
      %v2614 = vshll.u32 %v2457, 16
      %v2616 = vrot.slane %v2614, 5
      %v2617 = vor.u32 %v2613, %v2616
      %v2618 = vrot.slane %v2617, 4
      %v2620 = vshll.u32 %v2458, 16
      %v2622 = vrot.slane %v2620, 5
      %v2623 = vsel %vm367, %v2618, %v2622
      %v2624 = vshrl.u32 %v2458, 16
      %v2626 = vrot.slane %v2624, 4
      %v2627 = vor.u32 %v2626, %v2622
      %v2628 = vrot.slane %v2627, 4
      %v2630 = vshll.u32 %v2459, 16
      %v2632 = vrot.slane %v2630, 5
      %v2633 = vsel %vm367, %v2628, %v2632
      %v2635 = vshrl.u32 %v2460, 16
      %v2637 = vrot.slane %v2635, 4
      %v2638 = vshll.u32 %v2460, 16
      %v2640 = vrot.slane %v2638, 5
      %v2641 = vor.u32 %v2637, %v2640
      %v2642 = vrot.slane %v2641, 4
      %v2644 = vshll.u32 %v2461, 16
      %v2646 = vrot.slane %v2644, 5
      %v2647 = vsel %vm367, %v2642, %v2646
      %v2648 = vshrl.u32 %v2461, 16
      %v2650 = vrot.slane %v2648, 4
      %v2651 = vor.u32 %v2650, %v2646
      %v2652 = vrot.slane %v2651, 4
      %v2654 = vshll.u32 %v2462, 16
      %v2656 = vrot.slane %v2654, 5
      %v2657 = vsel %vm367, %v2652, %v2656
      %v2659 = vshrl.u32 %v2463, 16
      %v2661 = vrot.slane %v2659, 4
      %v2662 = vshll.u32 %v2463, 16
      %v2664 = vrot.slane %v2662, 5
      %v2665 = vor.u32 %v2661, %v2664
      %v2666 = vrot.slane %v2665, 4
      %v2668 = vshll.u32 %v2464, 16
      %v2670 = vrot.slane %v2668, 5
      %v2671 = vsel %vm367, %v2666, %v2670
      %v2672 = vshrl.u32 %v2464, 16
      %v2674 = vrot.slane %v2672, 4
      %v2675 = vor.u32 %v2674, %v2670
      %v2676 = vrot.slane %v2675, 4
      %v2678 = vshll.u32 %v2465, 16
      %v2680 = vrot.slane %v2678, 5
      %v2681 = vsel %vm367, %v2676, %v2680
      %v2683 = vshrl.u32 %v2466, 16
      %v2685 = vrot.slane %v2683, 4
      %v2686 = vshll.u32 %v2466, 16
      %v2688 = vrot.slane %v2686, 5
      %v2689 = vor.u32 %v2685, %v2688
      %v2690 = vrot.slane %v2689, 4
      %v2692 = vshll.u32 %v2467, 16
      %v2694 = vrot.slane %v2692, 5
      %v2695 = vsel %vm367, %v2690, %v2694
      %v2696 = vshrl.u32 %v2467, 16
      %v2698 = vrot.slane %v2696, 4
      %v2699 = vor.u32 %v2698, %v2694
      %v2700 = vrot.slane %v2699, 4
      %v2702 = vshll.u32 %v2468, 16
      %v2704 = vrot.slane %v2702, 5
      %v2705 = vsel %vm367, %v2700, %v2704
      %v2707 = vshrl.u32 %v2469, 16
      %v2709 = vrot.slane %v2707, 4
      %v2710 = vshll.u32 %v2469, 16
      %v2712 = vrot.slane %v2710, 5
      %v2713 = vor.u32 %v2709, %v2712
      %v2714 = vrot.slane %v2713, 4
      %v2716 = vshll.u32 %v2470, 16
      %v2718 = vrot.slane %v2716, 5
      %v2719 = vsel %vm367, %v2714, %v2718
      %v2720 = vshrl.u32 %v2470, 16
      %v2722 = vrot.slane %v2720, 4
      %v2723 = vor.u32 %v2722, %v2718
      %v2724 = vrot.slane %v2723, 4
      %v2726 = vshll.u32 %v2471, 16
      %v2728 = vrot.slane %v2726, 5
      %v2729 = vsel %vm367, %v2724, %v2728
      %v2731 = vshrl.u32 %v2472, 16
      %v2733 = vrot.slane %v2731, 4
      %v2734 = vshll.u32 %v2472, 16
      %v2736 = vrot.slane %v2734, 5
      %v2737 = vor.u32 %v2733, %v2736
      %v2738 = vrot.slane %v2737, 4
      %v2740 = vshll.u32 %v2473, 16
      %v2742 = vrot.slane %v2740, 5
      %v2743 = vsel %vm367, %v2738, %v2742
      %v2744 = vshrl.u32 %v2473, 16
      %v2746 = vrot.slane %v2744, 4
      %v2747 = vor.u32 %v2746, %v2742
      %v2748 = vrot.slane %v2747, 4
      %v2750 = vshll.u32 %v2474, 16
      %v2752 = vrot.slane %v2750, 5
      %v2753 = vsel %vm367, %v2748, %v2752
      %v2755 = vshrl.u32 %v2475, 16
      %v2757 = vrot.slane %v2755, 4
      %v2758 = vshll.u32 %v2475, 16
      %v2760 = vrot.slane %v2758, 5
      %v2761 = vor.u32 %v2757, %v2760
      %v2762 = vrot.slane %v2761, 4
      %v2764 = vshll.u32 %v2476, 16
      %v2766 = vrot.slane %v2764, 5
      %v2767 = vsel %vm367, %v2762, %v2766
      %v2768 = vshrl.u32 %v2476, 16
      %v2770 = vrot.slane %v2768, 4
      %v2771 = vor.u32 %v2770, %v2766
      %v2772 = vrot.slane %v2771, 4
      %v2774 = vshll.u32 %v2477, 16
      %v2776 = vrot.slane %v2774, 5
      %v2777 = vsel %vm367, %v2772, %v2776
      %v2779 = vshrl.u32 %v2478, 16
      %v2781 = vrot.slane %v2779, 4
      %v2782 = vshll.u32 %v2478, 16
      %v2784 = vrot.slane %v2782, 5
      %v2785 = vor.u32 %v2781, %v2784
      %v2786 = vrot.slane %v2785, 4
      %v2788 = vshll.u32 %v2479, 16
      %v2790 = vrot.slane %v2788, 5
      %v2791 = vsel %vm367, %v2786, %v2790
      %v2792 = vshrl.u32 %v2479, 16
      %v2794 = vrot.slane %v2792, 4
      %v2795 = vor.u32 %v2794, %v2790
      %v2796 = vrot.slane %v2795, 4
      %v2798 = vshll.u32 %v2480, 16
      %v2800 = vrot.slane %v2798, 5
      %v2801 = vsel %vm367, %v2796, %v2800
      %v2803 = vshrl.u32 %v2481, 16
      %v2805 = vrot.slane %v2803, 4
      %v2806 = vshll.u32 %v2481, 16
      %v2808 = vrot.slane %v2806, 5
      %v2809 = vor.u32 %v2805, %v2808
      %v2810 = vrot.slane %v2809, 4
      %v2812 = vshll.u32 %v2482, 16
      %v2814 = vrot.slane %v2812, 5
      %v2815 = vsel %vm367, %v2810, %v2814
      %v2816 = vshrl.u32 %v2482, 16
      %v2818 = vrot.slane %v2816, 4
      %v2819 = vor.u32 %v2818, %v2814
      %v2820 = vrot.slane %v2819, 4
      %v2822 = vshll.u32 %v2483, 16
      %v2824 = vrot.slane %v2822, 5
      %v2825 = vsel %vm367, %v2820, %v2824
      %v2827 = vshrl.u32 %v2484, 16
      %v2829 = vrot.slane %v2827, 4
      %v2830 = vshll.u32 %v2484, 16
      %v2832 = vrot.slane %v2830, 5
      %v2833 = vor.u32 %v2829, %v2832
      %v2834 = vrot.slane %v2833, 4
      %v2836 = vshll.u32 %v2485, 16
      %v2838 = vrot.slane %v2836, 5
      %v2839 = vsel %vm367, %v2834, %v2838
      %v2840 = vshrl.u32 %v2485, 16
      %v2842 = vrot.slane %v2840, 4
      %v2843 = vor.u32 %v2842, %v2838
      %v2844 = vrot.slane %v2843, 4
      %v2846 = vshll.u32 %v2486, 16
      %v2848 = vrot.slane %v2846, 5
      %v2849 = vsel %vm367, %v2844, %v2848
      %v2851 = vshrl.u32 %v2487, 16
      %v2853 = vrot.slane %v2851, 4
      %v2854 = vshll.u32 %v2487, 16
      %v2856 = vrot.slane %v2854, 5
      %v2857 = vor.u32 %v2853, %v2856
      %v2858 = vrot.slane %v2857, 4
      %v2860 = vshll.u32 %v2488, 16
      %v2862 = vrot.slane %v2860, 5
      %v2863 = vsel %vm367, %v2858, %v2862
      %v2864 = vshrl.u32 %v2488, 16
      %v2866 = vrot.slane %v2864, 4
      %v2867 = vor.u32 %v2866, %v2862
      %v2868 = vrot.slane %v2867, 4
      %v2870 = vshll.u32 %v2489, 16
      %v2872 = vrot.slane %v2870, 5
      %v2873 = vsel %vm367, %v2868, %v2872
      %v2874 = vunpack.c.l.b16 %v2503
      %v2875 = vunpack.c.l.b16 %v2513
      %v2876 = vunpack.c.l.b16 %v2527
      %v2877 = vunpack.c.l.b16 %v2537
      %v2878 = vunpack.c.l.b16 %v2551
      %v2879 = vunpack.c.l.b16 %v2561
      %v2880 = vunpack.c.l.b16 %v2575
      %v2881 = vunpack.c.l.b16 %v2585
      %v2882 = vunpack.c.l.b16 %v2599
      %v2883 = vunpack.c.l.b16 %v2609
      %v2884 = vunpack.c.l.b16 %v2623
      %v2885 = vunpack.c.l.b16 %v2633
      %v2886 = vunpack.c.l.b16 %v2647
      %v2887 = vunpack.c.l.b16 %v2657
      %v2888 = vunpack.c.l.b16 %v2671
      %v2889 = vunpack.c.l.b16 %v2681
      %v2890 = vunpack.c.l.b16 %v2695
      %v2891 = vunpack.c.l.b16 %v2705
      %v2892 = vunpack.c.l.b16 %v2719
      %v2893 = vunpack.c.l.b16 %v2729
      %v2894 = vunpack.c.l.b16 %v2743
      %v2895 = vunpack.c.l.b16 %v2753
      %v2896 = vunpack.c.l.b16 %v2767
      %v2897 = vunpack.c.l.b16 %v2777
      %v2898 = vunpack.c.l.b16 %v2791
      %v2899 = vunpack.c.l.b16 %v2801
      %v2900 = vunpack.c.l.b16 %v2815
      %v2901 = vunpack.c.l.b16 %v2825
      %v2902 = vunpack.c.l.b16 %v2839
      %v2903 = vunpack.c.l.b16 %v2849
      %v2904 = vunpack.c.l.b16 %v2863
      %v2905 = vunpack.c.l.b16 %v2873
      %v2906 = vpack.c.b16 %v2875, %v2874
      %v2907 = vpack.c.b16 %v2877, %v2876
      %v2908 = vpack.c.b16 %v2879, %v2878
      %v2909 = vpack.c.b16 %v2881, %v2880
      %v2910 = vpack.c.b16 %v2883, %v2882
      %v2911 = vpack.c.b16 %v2885, %v2884
      %v2912 = vpack.c.b16 %v2887, %v2886
      %v2913 = vpack.c.b16 %v2889, %v2888
      %v2914 = vpack.c.b16 %v2891, %v2890
      %v2915 = vpack.c.b16 %v2893, %v2892
      %v2916 = vpack.c.b16 %v2895, %v2894
      %v2917 = vpack.c.b16 %v2897, %v2896
      %v2918 = vpack.c.b16 %v2899, %v2898
      %v2919 = vpack.c.b16 %v2901, %v2900
      %v2920 = vpack.c.b16 %v2903, %v2902
      %v2921 = vpack.c.b16 %v2905, %v2904
      %2922 = vrot.lane.b32.xlu0 %v2906, 32
      %v2923 = vpop.permute.xlu0 %2922
      %2924 = vrot.lane.b32.xlu0 %v2907, 32
      %v2925 = vpop.permute.xlu0 %2924
      %2926 = vrot.lane.b32.xlu0 %v2908, 32
      %v2927 = vpop.permute.xlu0 %2926
      %2928 = vrot.lane.b32.xlu0 %v2909, 32
      %v2929 = vpop.permute.xlu0 %2928
      %2930 = vrot.lane.b32.xlu0 %v2910, 32
      %v2931 = vpop.permute.xlu0 %2930
      %2932 = vrot.lane.b32.xlu0 %v2911, 32
      %v2933 = vpop.permute.xlu0 %2932
      %2934 = vrot.lane.b32.xlu0 %v2912, 32
      %v2935 = vpop.permute.xlu0 %2934
      %2936 = vrot.lane.b32.xlu0 %v2913, 32
      %v2937 = vpop.permute.xlu0 %2936
      %2938 = vrot.lane.b32.xlu0 %v2914, 32
      %v2939 = vpop.permute.xlu0 %2938
      %2940 = vrot.lane.b32.xlu0 %v2915, 32
      %v2941 = vpop.permute.xlu0 %2940
      %2942 = vrot.lane.b32.xlu0 %v2916, 32
      %v2943 = vpop.permute.xlu0 %2942
      %2944 = vrot.lane.b32.xlu0 %v2917, 32
      %v2945 = vpop.permute.xlu0 %2944
      %2946 = vrot.lane.b32.xlu0 %v2918, 32
      %v2947 = vpop.permute.xlu0 %2946
      %2948 = vrot.lane.b32.xlu0 %v2919, 32
      %v2949 = vpop.permute.xlu0 %2948
      %2950 = vrot.lane.b32.xlu0 %v2920, 32
      %v2951 = vpop.permute.xlu0 %2950
      %2952 = vrot.lane.b32.xlu0 %v2921, 32
      %v2953 = vpop.permute.xlu0 %2952
      %2970 = vst.msk [vmem:[#allocation2 + $0x28] sm:$0xff] %vm1384, %v2923
      %2971 = vst.msk [vmem:[#allocation2 + $0x60] sm:$0xff] %vm1384, %v2925
      %2972 = vst.msk [vmem:[#allocation2 + $0x98] sm:$0xff] %vm1384, %v2927
      %2973 = vst.msk [vmem:[#allocation2 + $0xd0] sm:$0xff] %vm1384, %v2929
      %2974 = vst.msk [vmem:[#allocation2 + $0x108] sm:$0xff] %vm1384, %v2931
      %2975 = vst.msk [vmem:[#allocation2 + $0x140] sm:$0xff] %vm1384, %v2933
      %2976 = vst.msk [vmem:[#allocation2 + $0x178] sm:$0xff] %vm1384, %v2935
      %2977 = vst.msk [vmem:[#allocation2 + $0x1b0] sm:$0xff] %vm1384, %v2937
      %2978 = vst.msk [vmem:[#allocation2 + $0x1e8] sm:$0xff] %vm1384, %v2939
      %2979 = vst.msk [vmem:[#allocation2 + $0x220] sm:$0xff] %vm1384, %v2941
      %2980 = vst.msk [vmem:[#allocation2 + $0x258] sm:$0xff] %vm1384, %v2943
      %2981 = vst.msk [vmem:[#allocation2 + $0x290] sm:$0xff] %vm1384, %v2945
      %2982 = vst.msk [vmem:[#allocation2 + $0x2c8] sm:$0xff] %vm1384, %v2947
      %2983 = vst.msk [vmem:[#allocation2 + $0x300] sm:$0xff] %vm1384, %v2949
      %2984 = vst.msk [vmem:[#allocation2 + $0x338] sm:$0xff] %vm1384, %v2951
      %2985 = vst.msk [vmem:[#allocation2 + $0x370] sm:$0xff] %vm1384, %v2953
      %v2986 = vld [vmem:[%s2249] sm:$0xe]
      %v2987 = vld [vmem:[%s2249 + $0x4] sm:$0xf]
      %v2988 = vld [vmem:[%s2249 + $0x8] sm:$0x1]
      %v2989 = vld [vmem:[%s2249 + $0xc] sm:$0xe]
      %v2990 = vld [vmem:[%s2249 + $0x10] sm:$0xf]
      %v2991 = vld [vmem:[%s2249 + $0x14] sm:$0x1]
      %v2992 = vld [vmem:[%s2249 + $0x18] sm:$0xe]
      %v2993 = vld [vmem:[%s2249 + $0x1c] sm:$0xf]
      %v2994 = vld [vmem:[%s2249 + $0x20] sm:$0x1]
      %v2995 = vld [vmem:[%s2249 + $0x24] sm:$0xe]
      %v2996 = vld [vmem:[%s2249 + $0x28] sm:$0xf]
      %v2997 = vld [vmem:[%s2249 + $0x2c] sm:$0x1]
      %v2998 = vld [vmem:[%s2249 + $0x30] sm:$0xe]
      %v2999 = vld [vmem:[%s2249 + $0x34] sm:$0xf]
      %v3000 = vld [vmem:[%s2249 + $0x38] sm:$0x1]
      %v3001 = vld [vmem:[%s2249 + $0x3c] sm:$0xe]
      %v3002 = vld [vmem:[%s2249 + $0x40] sm:$0xf]
      %v3003 = vld [vmem:[%s2249 + $0x44] sm:$0x1]
      %v3004 = vld [vmem:[%s2249 + $0x48] sm:$0xe]
      %v3005 = vld [vmem:[%s2249 + $0x4c] sm:$0xf]
      %v3006 = vld [vmem:[%s2249 + $0x50] sm:$0x1]
      %v3007 = vld [vmem:[%s2249 + $0x54] sm:$0xe]
      %v3008 = vld [vmem:[%s2249 + $0x58] sm:$0xf]
      %v3009 = vld [vmem:[%s2249 + $0x5c] sm:$0x1]
      %v3010 = vld [vmem:[%s2249 + $0x60] sm:$0xe]
      %v3011 = vld [vmem:[%s2249 + $0x64] sm:$0xf]
      %v3012 = vld [vmem:[%s2249 + $0x68] sm:$0x1]
      %v3013 = vld [vmem:[%s2249 + $0x6c] sm:$0xe]
      %v3014 = vld [vmem:[%s2249 + $0x70] sm:$0xf]
      %v3015 = vld [vmem:[%s2249 + $0x74] sm:$0x1]
      %v3016 = vld [vmem:[%s2249 + $0x78] sm:$0xe]
      %v3017 = vld [vmem:[%s2249 + $0x7c] sm:$0xf]
      %v3018 = vld [vmem:[%s2249 + $0x80] sm:$0x1]
      %v3019 = vld [vmem:[%s2249 + $0x84] sm:$0xe]
      %v3020 = vld [vmem:[%s2249 + $0x88] sm:$0xf]
      %v3021 = vld [vmem:[%s2249 + $0x8c] sm:$0x1]
      %v3022 = vld [vmem:[%s2249 + $0x90] sm:$0xe]
      %v3023 = vld [vmem:[%s2249 + $0x94] sm:$0xf]
      %v3024 = vld [vmem:[%s2249 + $0x98] sm:$0x1]
      %v3025 = vld [vmem:[%s2249 + $0x9c] sm:$0xe]
      %v3026 = vld [vmem:[%s2249 + $0xa0] sm:$0xf]
      %v3027 = vld [vmem:[%s2249 + $0xa4] sm:$0x1]
      %v3028 = vld [vmem:[%s2249 + $0xa8] sm:$0xe]
      %v3029 = vld [vmem:[%s2249 + $0xac] sm:$0xf]
      %v3030 = vld [vmem:[%s2249 + $0xb0] sm:$0x1]
      %v3031 = vld [vmem:[%s2249 + $0xb4] sm:$0xe]
      %v3032 = vld [vmem:[%s2249 + $0xb8] sm:$0xf]
      %v3033 = vld [vmem:[%s2249 + $0xbc] sm:$0x1]
      %v3082 = vrot.slane %v2986, 5
      %v3083 = vrot.slane %v3082, 4
      %v3084 = vrot.slane %v2987, 5
      %v3085 = vsel %vm980, %v3083, %v3084
      %v3086 = vrot.slane %v3084, 4
      %v3087 = vrot.slane %v2988, 5
      %v3088 = vsel %vm980, %v3086, %v3087
      %v3089 = vrot.slane %v2989, 5
      %v3090 = vrot.slane %v3089, 4
      %v3091 = vrot.slane %v2990, 5
      %v3092 = vsel %vm980, %v3090, %v3091
      %v3093 = vrot.slane %v3091, 4
      %v3094 = vrot.slane %v2991, 5
      %v3095 = vsel %vm980, %v3093, %v3094
      %v3096 = vrot.slane %v2992, 5
      %v3097 = vrot.slane %v3096, 4
      %v3098 = vrot.slane %v2993, 5
      %v3099 = vsel %vm980, %v3097, %v3098
      %v3100 = vrot.slane %v3098, 4
      %v3101 = vrot.slane %v2994, 5
      %v3102 = vsel %vm980, %v3100, %v3101
      %v3103 = vrot.slane %v2995, 5
      %v3104 = vrot.slane %v3103, 4
      %v3105 = vrot.slane %v2996, 5
      %v3106 = vsel %vm980, %v3104, %v3105
      %v3107 = vrot.slane %v3105, 4
      %v3108 = vrot.slane %v2997, 5
      %v3109 = vsel %vm980, %v3107, %v3108
      %v3110 = vrot.slane %v2998, 5
      %v3111 = vrot.slane %v3110, 4
      %v3112 = vrot.slane %v2999, 5
      %v3113 = vsel %vm980, %v3111, %v3112
      %v3114 = vrot.slane %v3112, 4
      %v3115 = vrot.slane %v3000, 5
      %v3116 = vsel %vm980, %v3114, %v3115
      %v3117 = vrot.slane %v3001, 5
      %v3118 = vrot.slane %v3117, 4
      %v3119 = vrot.slane %v3002, 5
      %v3120 = vsel %vm980, %v3118, %v3119
      %v3121 = vrot.slane %v3119, 4
      %v3122 = vrot.slane %v3003, 5
      %v3123 = vsel %vm980, %v3121, %v3122
      %v3124 = vrot.slane %v3004, 5
      %v3125 = vrot.slane %v3124, 4
      %v3126 = vrot.slane %v3005, 5
      %v3127 = vsel %vm980, %v3125, %v3126
      %v3128 = vrot.slane %v3126, 4
      %v3129 = vrot.slane %v3006, 5
      %v3130 = vsel %vm980, %v3128, %v3129
      %v3131 = vrot.slane %v3007, 5
      %v3132 = vrot.slane %v3131, 4
      %v3133 = vrot.slane %v3008, 5
      %v3134 = vsel %vm980, %v3132, %v3133
      %v3135 = vrot.slane %v3133, 4
      %v3136 = vrot.slane %v3009, 5
      %v3137 = vsel %vm980, %v3135, %v3136
      %v3138 = vrot.slane %v3010, 5
      %v3139 = vrot.slane %v3138, 4
      %v3140 = vrot.slane %v3011, 5
      %v3141 = vsel %vm980, %v3139, %v3140
      %v3142 = vrot.slane %v3140, 4
      %v3143 = vrot.slane %v3012, 5
      %v3144 = vsel %vm980, %v3142, %v3143
      %v3145 = vrot.slane %v3013, 5
      %v3146 = vrot.slane %v3145, 4
      %v3147 = vrot.slane %v3014, 5
      %v3148 = vsel %vm980, %v3146, %v3147
      %v3149 = vrot.slane %v3147, 4
      %v3150 = vrot.slane %v3015, 5
      %v3151 = vsel %vm980, %v3149, %v3150
      %v3152 = vrot.slane %v3016, 5
      %v3153 = vrot.slane %v3152, 4
      %v3154 = vrot.slane %v3017, 5
      %v3155 = vsel %vm980, %v3153, %v3154
      %v3156 = vrot.slane %v3154, 4
      %v3157 = vrot.slane %v3018, 5
      %v3158 = vsel %vm980, %v3156, %v3157
      %v3159 = vrot.slane %v3019, 5
      %v3160 = vrot.slane %v3159, 4
      %v3161 = vrot.slane %v3020, 5
      %v3162 = vsel %vm980, %v3160, %v3161
      %v3163 = vrot.slane %v3161, 4
      %v3164 = vrot.slane %v3021, 5
      %v3165 = vsel %vm980, %v3163, %v3164
      %v3166 = vrot.slane %v3022, 5
      %v3167 = vrot.slane %v3166, 4
      %v3168 = vrot.slane %v3023, 5
      %v3169 = vsel %vm980, %v3167, %v3168
      %v3170 = vrot.slane %v3168, 4
      %v3171 = vrot.slane %v3024, 5
      %v3172 = vsel %vm980, %v3170, %v3171
      %v3173 = vrot.slane %v3025, 5
      %v3174 = vrot.slane %v3173, 4
      %v3175 = vrot.slane %v3026, 5
      %v3176 = vsel %vm980, %v3174, %v3175
      %v3177 = vrot.slane %v3175, 4
      %v3178 = vrot.slane %v3027, 5
      %v3179 = vsel %vm980, %v3177, %v3178
      %v3180 = vrot.slane %v3028, 5
      %v3181 = vrot.slane %v3180, 4
      %v3182 = vrot.slane %v3029, 5
      %v3183 = vsel %vm980, %v3181, %v3182
      %v3184 = vrot.slane %v3182, 4
      %v3185 = vrot.slane %v3030, 5
      %v3186 = vsel %vm980, %v3184, %v3185
      %v3187 = vrot.slane %v3031, 5
      %v3188 = vrot.slane %v3187, 4
      %v3189 = vrot.slane %v3032, 5
      %v3190 = vsel %vm980, %v3188, %v3189
      %v3191 = vrot.slane %v3189, 4
      %v3192 = vrot.slane %v3033, 5
      %v3193 = vsel %vm980, %v3191, %v3192
      %v3194 = vunpack.c.l.b16 %v3085
      %v3195 = vunpack.c.l.b16 %v3088
      %v3196 = vunpack.c.l.b16 %v3092
      %v3197 = vunpack.c.l.b16 %v3095
      %v3198 = vunpack.c.l.b16 %v3099
      %v3199 = vunpack.c.l.b16 %v3102
      %v3200 = vunpack.c.l.b16 %v3106
      %v3201 = vunpack.c.l.b16 %v3109
      %v3202 = vunpack.c.l.b16 %v3113
      %v3203 = vunpack.c.l.b16 %v3116
      %v3204 = vunpack.c.l.b16 %v3120
      %v3205 = vunpack.c.l.b16 %v3123
      %v3206 = vunpack.c.l.b16 %v3127
      %v3207 = vunpack.c.l.b16 %v3130
      %v3208 = vunpack.c.l.b16 %v3134
      %v3209 = vunpack.c.l.b16 %v3137
      %v3210 = vunpack.c.l.b16 %v3141
      %v3211 = vunpack.c.l.b16 %v3144
      %v3212 = vunpack.c.l.b16 %v3148
      %v3213 = vunpack.c.l.b16 %v3151
      %v3214 = vunpack.c.l.b16 %v3155
      %v3215 = vunpack.c.l.b16 %v3158
      %v3216 = vunpack.c.l.b16 %v3162
      %v3217 = vunpack.c.l.b16 %v3165
      %v3218 = vunpack.c.l.b16 %v3169
      %v3219 = vunpack.c.l.b16 %v3172
      %v3220 = vunpack.c.l.b16 %v3176
      %v3221 = vunpack.c.l.b16 %v3179
      %v3222 = vunpack.c.l.b16 %v3183
      %v3223 = vunpack.c.l.b16 %v3186
      %v3224 = vunpack.c.l.b16 %v3190
      %v3225 = vunpack.c.l.b16 %v3193
      %v3226 = vpack.c.b16 %v3195, %v3194
      %v3227 = vpack.c.b16 %v3197, %v3196
      %v3228 = vpack.c.b16 %v3199, %v3198
      %v3229 = vpack.c.b16 %v3201, %v3200
      %v3230 = vpack.c.b16 %v3203, %v3202
      %v3231 = vpack.c.b16 %v3205, %v3204
      %v3232 = vpack.c.b16 %v3207, %v3206
      %v3233 = vpack.c.b16 %v3209, %v3208
      %v3234 = vpack.c.b16 %v3211, %v3210
      %v3235 = vpack.c.b16 %v3213, %v3212
      %v3236 = vpack.c.b16 %v3215, %v3214
      %v3237 = vpack.c.b16 %v3217, %v3216
      %v3238 = vpack.c.b16 %v3219, %v3218
      %v3239 = vpack.c.b16 %v3221, %v3220
      %v3240 = vpack.c.b16 %v3223, %v3222
      %v3241 = vpack.c.b16 %v3225, %v3224
      %3258 = vst.msk [vmem:[#allocation2 + $0x30] sm:$0xff] %vm300, %v3226
      %3259 = vst.msk [vmem:[#allocation2 + $0x68] sm:$0xff] %vm300, %v3227
      %3260 = vst.msk [vmem:[#allocation2 + $0xa0] sm:$0xff] %vm300, %v3228
      %3261 = vst.msk [vmem:[#allocation2 + $0xd8] sm:$0xff] %vm300, %v3229
      %3262 = vst.msk [vmem:[#allocation2 + $0x110] sm:$0xff] %vm300, %v3230
      %3263 = vst.msk [vmem:[#allocation2 + $0x148] sm:$0xff] %vm300, %v3231
      %3264 = vst.msk [vmem:[#allocation2 + $0x180] sm:$0xff] %vm300, %v3232
      %3265 = vst.msk [vmem:[#allocation2 + $0x1b8] sm:$0xff] %vm300, %v3233
      %3266 = vst.msk [vmem:[#allocation2 + $0x1f0] sm:$0xff] %vm300, %v3234
      %3267 = vst.msk [vmem:[#allocation2 + $0x228] sm:$0xff] %vm300, %v3235
      %3268 = vst.msk [vmem:[#allocation2 + $0x260] sm:$0xff] %vm300, %v3236
      %3269 = vst.msk [vmem:[#allocation2 + $0x298] sm:$0xff] %vm300, %v3237
      %3270 = vst.msk [vmem:[#allocation2 + $0x2d0] sm:$0xff] %vm300, %v3238
      %3271 = vst.msk [vmem:[#allocation2 + $0x308] sm:$0xff] %vm300, %v3239
      %3272 = vst.msk [vmem:[#allocation2 + $0x340] sm:$0xff] %vm300, %v3240
      %3273 = vst.msk [vmem:[#allocation2 + $0x378] sm:$0xff] %vm300, %v3241
      %v3274 = vld [vmem:[#allocation2] sm:$0xff]
      %v3275 = vld [vmem:[#allocation2 + $0x8] sm:$0xff]
      %v3276 = vld [vmem:[#allocation2 + $0x10] sm:$0xff]
      %v3277 = vld [vmem:[#allocation2 + $0x18] sm:$0xff]
      %v3278 = vld [vmem:[#allocation2 + $0x20] sm:$0xff]
      %v3279 = vld [vmem:[#allocation2 + $0x28] sm:$0xff]
      %v3280 = vld [vmem:[#allocation2 + $0x30] sm:$0xff]
      %v3281 = vld [vmem:[#allocation2 + $0x38] sm:$0xff]
      %v3282 = vld [vmem:[#allocation2 + $0x40] sm:$0xff]
      %v3283 = vld [vmem:[#allocation2 + $0x48] sm:$0xff]
      %v3284 = vld [vmem:[#allocation2 + $0x50] sm:$0xff]
      %v3285 = vld [vmem:[#allocation2 + $0x58] sm:$0xff]
      %v3286 = vld [vmem:[#allocation2 + $0x60] sm:$0xff]
      %v3287 = vld [vmem:[#allocation2 + $0x68] sm:$0xff]
      %v3288 = vld [vmem:[#allocation2 + $0x70] sm:$0xff]
      %v3289 = vld [vmem:[#allocation2 + $0x78] sm:$0xff]
      %v3290 = vld [vmem:[#allocation2 + $0x80] sm:$0xff]
      %v3291 = vld [vmem:[#allocation2 + $0x88] sm:$0xff]
      %v3292 = vld [vmem:[#allocation2 + $0x90] sm:$0xff]
      %v3293 = vld [vmem:[#allocation2 + $0x98] sm:$0xff]
      %v3294 = vld [vmem:[#allocation2 + $0xa0] sm:$0xff]
      %v3295 = vld [vmem:[#allocation2 + $0xa8] sm:$0xff]
      %v3296 = vld [vmem:[#allocation2 + $0xb0] sm:$0xff]
      %v3297 = vld [vmem:[#allocation2 + $0xb8] sm:$0xff]
      %v3298 = vld [vmem:[#allocation2 + $0xc0] sm:$0xff]
      %v3299 = vld [vmem:[#allocation2 + $0xc8] sm:$0xff]
      %v3300 = vld [vmem:[#allocation2 + $0xd0] sm:$0xff]
      %v3301 = vld [vmem:[#allocation2 + $0xd8] sm:$0xff]
      %v3302 = vld [vmem:[#allocation2 + $0xe0] sm:$0xff]
      %v3303 = vld [vmem:[#allocation2 + $0xe8] sm:$0xff]
      %v3304 = vld [vmem:[#allocation2 + $0xf0] sm:$0xff]
      %v3305 = vld [vmem:[#allocation2 + $0xf8] sm:$0xff]
      %v3306 = vld [vmem:[#allocation2 + $0x100] sm:$0xff]
      %v3307 = vld [vmem:[#allocation2 + $0x108] sm:$0xff]
      %v3308 = vld [vmem:[#allocation2 + $0x110] sm:$0xff]
      %v3309 = vld [vmem:[#allocation2 + $0x118] sm:$0xff]
      %v3310 = vld [vmem:[#allocation2 + $0x120] sm:$0xff]
      %v3311 = vld [vmem:[#allocation2 + $0x128] sm:$0xff]
      %v3312 = vld [vmem:[#allocation2 + $0x130] sm:$0xff]
      %v3313 = vld [vmem:[#allocation2 + $0x138] sm:$0xff]
      %v3314 = vld [vmem:[#allocation2 + $0x140] sm:$0xff]
      %v3315 = vld [vmem:[#allocation2 + $0x148] sm:$0xff]
      %v3316 = vld [vmem:[#allocation2 + $0x150] sm:$0xff]
      %v3317 = vld [vmem:[#allocation2 + $0x158] sm:$0xff]
      %v3318 = vld [vmem:[#allocation2 + $0x160] sm:$0xff]
      %v3319 = vld [vmem:[#allocation2 + $0x168] sm:$0xff]
      %v3320 = vld [vmem:[#allocation2 + $0x170] sm:$0xff]
      %v3321 = vld [vmem:[#allocation2 + $0x178] sm:$0xff]
      %v3322 = vld [vmem:[#allocation2 + $0x180] sm:$0xff]
      %v3323 = vld [vmem:[#allocation2 + $0x188] sm:$0xff]
      %v3324 = vld [vmem:[#allocation2 + $0x190] sm:$0xff]
      %v3325 = vld [vmem:[#allocation2 + $0x198] sm:$0xff]
      %v3326 = vld [vmem:[#allocation2 + $0x1a0] sm:$0xff]
      %v3327 = vld [vmem:[#allocation2 + $0x1a8] sm:$0xff]
      %v3328 = vld [vmem:[#allocation2 + $0x1b0] sm:$0xff]
      %v3329 = vld [vmem:[#allocation2 + $0x1b8] sm:$0xff]
      %v3330 = vld [vmem:[#allocation2 + $0x1c0] sm:$0xff]
      %v3331 = vld [vmem:[#allocation2 + $0x1c8] sm:$0xff]
      %v3332 = vld [vmem:[#allocation2 + $0x1d0] sm:$0xff]
      %v3333 = vld [vmem:[#allocation2 + $0x1d8] sm:$0xff]
      %v3334 = vld [vmem:[#allocation2 + $0x1e0] sm:$0xff]
      %v3335 = vld [vmem:[#allocation2 + $0x1e8] sm:$0xff]
      %v3336 = vld [vmem:[#allocation2 + $0x1f0] sm:$0xff]
      %v3337 = vld [vmem:[#allocation2 + $0x1f8] sm:$0xff]
      %v3338 = vld [vmem:[#allocation2 + $0x200] sm:$0xff]
      %v3339 = vld [vmem:[#allocation2 + $0x208] sm:$0xff]
      %v3340 = vld [vmem:[#allocation2 + $0x210] sm:$0xff]
      %v3341 = vld [vmem:[#allocation2 + $0x218] sm:$0xff]
      %v3342 = vld [vmem:[#allocation2 + $0x220] sm:$0xff]
      %v3343 = vld [vmem:[#allocation2 + $0x228] sm:$0xff]
      %v3344 = vld [vmem:[#allocation2 + $0x230] sm:$0xff]
      %v3345 = vld [vmem:[#allocation2 + $0x238] sm:$0xff]
      %v3346 = vld [vmem:[#allocation2 + $0x240] sm:$0xff]
      %v3347 = vld [vmem:[#allocation2 + $0x248] sm:$0xff]
      %v3348 = vld [vmem:[#allocation2 + $0x250] sm:$0xff]
      %v3349 = vld [vmem:[#allocation2 + $0x258] sm:$0xff]
      %v3350 = vld [vmem:[#allocation2 + $0x260] sm:$0xff]
      %v3351 = vld [vmem:[#allocation2 + $0x268] sm:$0xff]
      %v3352 = vld [vmem:[#allocation2 + $0x270] sm:$0xff]
      %v3353 = vld [vmem:[#allocation2 + $0x278] sm:$0xff]
      %v3354 = vld [vmem:[#allocation2 + $0x280] sm:$0xff]
      %v3355 = vld [vmem:[#allocation2 + $0x288] sm:$0xff]
      %v3356 = vld [vmem:[#allocation2 + $0x290] sm:$0xff]
      %v3357 = vld [vmem:[#allocation2 + $0x298] sm:$0xff]
      %v3358 = vld [vmem:[#allocation2 + $0x2a0] sm:$0xff]
      %v3359 = vld [vmem:[#allocation2 + $0x2a8] sm:$0xff]
      %v3360 = vld [vmem:[#allocation2 + $0x2b0] sm:$0xff]
      %v3361 = vld [vmem:[#allocation2 + $0x2b8] sm:$0xff]
      %v3362 = vld [vmem:[#allocation2 + $0x2c0] sm:$0xff]
      %v3363 = vld [vmem:[#allocation2 + $0x2c8] sm:$0xff]
      %v3364 = vld [vmem:[#allocation2 + $0x2d0] sm:$0xff]
      %v3365 = vld [vmem:[#allocation2 + $0x2d8] sm:$0xff]
      %v3366 = vld [vmem:[#allocation2 + $0x2e0] sm:$0xff]
      %v3367 = vld [vmem:[#allocation2 + $0x2e8] sm:$0xff]
      %v3368 = vld [vmem:[#allocation2 + $0x2f0] sm:$0xff]
      %v3369 = vld [vmem:[#allocation2 + $0x2f8] sm:$0xff]
      %v3370 = vld [vmem:[#allocation2 + $0x300] sm:$0xff]
      %v3371 = vld [vmem:[#allocation2 + $0x308] sm:$0xff]
      %v3372 = vld [vmem:[#allocation2 + $0x310] sm:$0xff]
      %v3373 = vld [vmem:[#allocation2 + $0x318] sm:$0xff]
      %v3374 = vld [vmem:[#allocation2 + $0x320] sm:$0xff]
      %v3375 = vld [vmem:[#allocation2 + $0x328] sm:$0xff]
      %v3376 = vld [vmem:[#allocation2 + $0x330] sm:$0xff]
      %v3377 = vld [vmem:[#allocation2 + $0x338] sm:$0xff]
      %v3378 = vld [vmem:[#allocation2 + $0x340] sm:$0xff]
      %v3379 = vld [vmem:[#allocation2 + $0x348] sm:$0xff]
      %v3380 = vld [vmem:[#allocation2 + $0x350] sm:$0xff]
      %v3381 = vld [vmem:[#allocation2 + $0x358] sm:$0xff]
      %v3382 = vld [vmem:[#allocation2 + $0x360] sm:$0xff]
      %v3383 = vld [vmem:[#allocation2 + $0x368] sm:$0xff]
      %v3384 = vld [vmem:[#allocation2 + $0x370] sm:$0xff]
      %v3385 = vld [vmem:[#allocation2 + $0x378] sm:$0xff]
      %v3386 = vld [vmem:[%s1] sm:$0xff]
      %v3387 = vld [vmem:[%s1 + $0x8] sm:$0xff]
      %v3388 = vld [vmem:[%s1 + $0x10] sm:$0xff]
      %v3389 = vld [vmem:[%s1 + $0x18] sm:$0xff]
      %v3390 = vld [vmem:[%s1 + $0x20] sm:$0xff]
      %v3391 = vld [vmem:[%s1 + $0x28] sm:$0xff]
      %v3392 = vld [vmem:[%s1 + $0x30] sm:$0xff]
      %v3393 = vld [vmem:[%s1 + $0x38] sm:$0xff]
      %v3394 = vld [vmem:[%s1 + $0x40] sm:$0xff]
      %v3395 = vld [vmem:[%s1 + $0x48] sm:$0xff]
      %v3396 = vld [vmem:[%s1 + $0x50] sm:$0xff]
      %v3397 = vld [vmem:[%s1 + $0x58] sm:$0xff]
      %v3398 = vld [vmem:[%s1 + $0x60] sm:$0xff]
      %v3399 = vld [vmem:[%s1 + $0x68] sm:$0xff]
      %v3400 = vld [vmem:[%s1 + $0x70] sm:$0xff]
      %v3401 = vld [vmem:[%s1 + $0x78] sm:$0xff]
      %v3402 = vld [vmem:[%s1 + $0x80] sm:$0xff]
      %v3403 = vld [vmem:[%s1 + $0x88] sm:$0xff]
      %v3404 = vld [vmem:[%s1 + $0x90] sm:$0xff]
      %v3405 = vld [vmem:[%s1 + $0x98] sm:$0xff]
      %v3406 = vld [vmem:[%s1 + $0xa0] sm:$0xff]
      %v3407 = vld [vmem:[%s1 + $0xa8] sm:$0xff]
      %v3408 = vld [vmem:[%s1 + $0xb0] sm:$0xff]
      %v3409 = vld [vmem:[%s1 + $0xb8] sm:$0xff]
      %v3410 = vld [vmem:[%s1 + $0xc0] sm:$0xff]
      %v3411 = vld [vmem:[%s1 + $0xc8] sm:$0xff]
      %v3412 = vld [vmem:[%s1 + $0xd0] sm:$0xff]
      %v3413 = vld [vmem:[%s1 + $0xd8] sm:$0xff]
      %v3414 = vld [vmem:[%s1 + $0xe0] sm:$0xff]
      %v3415 = vld [vmem:[%s1 + $0xe8] sm:$0xff]
      %v3416 = vld [vmem:[%s1 + $0xf0] sm:$0xff]
      %v3417 = vld [vmem:[%s1 + $0xf8] sm:$0xff]
      %v3418 = vld [vmem:[%s1 + $0x100] sm:$0xff]
      %v3419 = vld [vmem:[%s1 + $0x108] sm:$0xff]
      %v3420 = vld [vmem:[%s1 + $0x110] sm:$0xff]
      %v3421 = vld [vmem:[%s1 + $0x118] sm:$0xff]
      %v3422 = vld [vmem:[%s1 + $0x120] sm:$0xff]
      %v3423 = vld [vmem:[%s1 + $0x128] sm:$0xff]
      %v3424 = vld [vmem:[%s1 + $0x130] sm:$0xff]
      %v3425 = vld [vmem:[%s1 + $0x138] sm:$0xff]
      %v3426 = vld [vmem:[%s1 + $0x140] sm:$0xff]
      %v3427 = vld [vmem:[%s1 + $0x148] sm:$0xff]
      %v3428 = vld [vmem:[%s1 + $0x150] sm:$0xff]
      %v3429 = vld [vmem:[%s1 + $0x158] sm:$0xff]
      %v3430 = vld [vmem:[%s1 + $0x160] sm:$0xff]
      %v3431 = vld [vmem:[%s1 + $0x168] sm:$0xff]
      %v3432 = vld [vmem:[%s1 + $0x170] sm:$0xff]
      %v3433 = vld [vmem:[%s1 + $0x178] sm:$0xff]
      %v3434 = vld [vmem:[%s1 + $0x180] sm:$0xff]
      %v3435 = vld [vmem:[%s1 + $0x188] sm:$0xff]
      %v3436 = vld [vmem:[%s1 + $0x190] sm:$0xff]
      %v3437 = vld [vmem:[%s1 + $0x198] sm:$0xff]
      %v3438 = vld [vmem:[%s1 + $0x1a0] sm:$0xff]
      %v3439 = vld [vmem:[%s1 + $0x1a8] sm:$0xff]
      %v3440 = vld [vmem:[%s1 + $0x1b0] sm:$0xff]
      %v3441 = vld [vmem:[%s1 + $0x1b8] sm:$0xff]
      %v3442 = vld [vmem:[%s1 + $0x1c0] sm:$0xff]
      %v3443 = vld [vmem:[%s1 + $0x1c8] sm:$0xff]
      %v3444 = vld [vmem:[%s1 + $0x1d0] sm:$0xff]
      %v3445 = vld [vmem:[%s1 + $0x1d8] sm:$0xff]
      %v3446 = vld [vmem:[%s1 + $0x1e0] sm:$0xff]
      %v3447 = vld [vmem:[%s1 + $0x1e8] sm:$0xff]
      %v3448 = vld [vmem:[%s1 + $0x1f0] sm:$0xff]
      %v3449 = vld [vmem:[%s1 + $0x1f8] sm:$0xff]
      %v3450 = vld [vmem:[%s1 + $0x200] sm:$0xff]
      %v3451 = vld [vmem:[%s1 + $0x208] sm:$0xff]
      %v3452 = vld [vmem:[%s1 + $0x210] sm:$0xff]
      %v3453 = vld [vmem:[%s1 + $0x218] sm:$0xff]
      %v3454 = vld [vmem:[%s1 + $0x220] sm:$0xff]
      %v3455 = vld [vmem:[%s1 + $0x228] sm:$0xff]
      %v3456 = vld [vmem:[%s1 + $0x230] sm:$0xff]
      %v3457 = vld [vmem:[%s1 + $0x238] sm:$0xff]
      %v3458 = vld [vmem:[%s1 + $0x240] sm:$0xff]
      %v3459 = vld [vmem:[%s1 + $0x248] sm:$0xff]
      %v3460 = vld [vmem:[%s1 + $0x250] sm:$0xff]
      %v3461 = vld [vmem:[%s1 + $0x258] sm:$0xff]
      %v3462 = vld [vmem:[%s1 + $0x260] sm:$0xff]
      %v3463 = vld [vmem:[%s1 + $0x268] sm:$0xff]
      %v3464 = vld [vmem:[%s1 + $0x270] sm:$0xff]
      %v3465 = vld [vmem:[%s1 + $0x278] sm:$0xff]
      %v3466 = vld [vmem:[%s1 + $0x280] sm:$0xff]
      %v3467 = vld [vmem:[%s1 + $0x288] sm:$0xff]
      %v3468 = vld [vmem:[%s1 + $0x290] sm:$0xff]
      %v3469 = vld [vmem:[%s1 + $0x298] sm:$0xff]
      %v3470 = vld [vmem:[%s1 + $0x2a0] sm:$0xff]
      %v3471 = vld [vmem:[%s1 + $0x2a8] sm:$0xff]
      %v3472 = vld [vmem:[%s1 + $0x2b0] sm:$0xff]
      %v3473 = vld [vmem:[%s1 + $0x2b8] sm:$0xff]
      %v3474 = vld [vmem:[%s1 + $0x2c0] sm:$0xff]
      %v3475 = vld [vmem:[%s1 + $0x2c8] sm:$0xff]
      %v3476 = vld [vmem:[%s1 + $0x2d0] sm:$0xff]
      %v3477 = vld [vmem:[%s1 + $0x2d8] sm:$0xff]
      %v3478 = vld [vmem:[%s1 + $0x2e0] sm:$0xff]
      %v3479 = vld [vmem:[%s1 + $0x2e8] sm:$0xff]
      %v3480 = vld [vmem:[%s1 + $0x2f0] sm:$0xff]
      %v3481 = vld [vmem:[%s1 + $0x2f8] sm:$0xff]
      %v3482 = vld [vmem:[%s1 + $0x300] sm:$0xff]
      %v3483 = vld [vmem:[%s1 + $0x308] sm:$0xff]
      %v3484 = vld [vmem:[%s1 + $0x310] sm:$0xff]
      %v3485 = vld [vmem:[%s1 + $0x318] sm:$0xff]
      %v3486 = vld [vmem:[%s1 + $0x320] sm:$0xff]
      %v3487 = vld [vmem:[%s1 + $0x328] sm:$0xff]
      %v3488 = vld [vmem:[%s1 + $0x330] sm:$0xff]
      %v3489 = vld [vmem:[%s1 + $0x338] sm:$0xff]
      %v3490 = vld [vmem:[%s1 + $0x340] sm:$0xff]
      %v3491 = vld [vmem:[%s1 + $0x348] sm:$0xff]
      %v3492 = vld [vmem:[%s1 + $0x350] sm:$0xff]
      %v3493 = vld [vmem:[%s1 + $0x358] sm:$0xff]
      %v3494 = vld [vmem:[%s2] sm:$0x3]
      %v3496 = vlaneseq
      %v3497 = vshrl.u32 %v3496, 7
      %v3498 = vsub.s32 0, %v3497
      %v3499 = vrot.slane %v3494, %v3498
      %v3500 = vlaneseq
      %v3501 = vshrl.u32 %v3500, 7
      %v3502 = vsub.s32 1, %v3501
      %v3503 = vrot.slane %v3494, %v3502
      %v3614 = vunpack.c.l.b16 %v3386
      %v3615 = vunpack.c.h.b16 %v3386
      %v3616 = vunpack.c.l.b16 %v3387
      %v3617 = vunpack.c.h.b16 %v3387
      %v3618 = vunpack.c.l.b16 %v3388
      %v3619 = vunpack.c.h.b16 %v3388
      %v3620 = vunpack.c.l.b16 %v3389
      %v3621 = vunpack.c.h.b16 %v3389
      %v3622 = vunpack.c.l.b16 %v3390
      %v3623 = vunpack.c.h.b16 %v3390
      %v3624 = vunpack.c.l.b16 %v3391
      %v3625 = vunpack.c.h.b16 %v3391
      %v3626 = vunpack.c.l.b16 %v3392
      %v3627 = vunpack.c.h.b16 %v3392
      %v3628 = vunpack.c.l.b16 %v3393
      %v3629 = vunpack.c.h.b16 %v3393
      %v3630 = vunpack.c.l.b16 %v3394
      %v3631 = vunpack.c.h.b16 %v3394
      %v3632 = vunpack.c.l.b16 %v3395
      %v3633 = vunpack.c.h.b16 %v3395
      %v3634 = vunpack.c.l.b16 %v3396
      %v3635 = vunpack.c.h.b16 %v3396
      %v3636 = vunpack.c.l.b16 %v3397
      %v3637 = vunpack.c.h.b16 %v3397
      %v3638 = vunpack.c.l.b16 %v3398
      %v3639 = vunpack.c.h.b16 %v3398
      %v3640 = vunpack.c.l.b16 %v3399
      %v3641 = vunpack.c.h.b16 %v3399
      %v3642 = vunpack.c.l.b16 %v3400
      %v3643 = vunpack.c.h.b16 %v3400
      %v3644 = vunpack.c.l.b16 %v3401
      %v3645 = vunpack.c.h.b16 %v3401
      %v3646 = vunpack.c.l.b16 %v3402
      %v3647 = vunpack.c.h.b16 %v3402
      %v3648 = vunpack.c.l.b16 %v3403
      %v3649 = vunpack.c.h.b16 %v3403
      %v3650 = vunpack.c.l.b16 %v3404
      %v3651 = vunpack.c.h.b16 %v3404
      %v3652 = vunpack.c.l.b16 %v3405
      %v3653 = vunpack.c.h.b16 %v3405
      %v3654 = vunpack.c.l.b16 %v3406
      %v3655 = vunpack.c.h.b16 %v3406
      %v3656 = vunpack.c.l.b16 %v3407
      %v3657 = vunpack.c.h.b16 %v3407
      %v3658 = vunpack.c.l.b16 %v3408
      %v3659 = vunpack.c.h.b16 %v3408
      %v3660 = vunpack.c.l.b16 %v3409
      %v3661 = vunpack.c.h.b16 %v3409
      %v3662 = vunpack.c.l.b16 %v3410
      %v3663 = vunpack.c.h.b16 %v3410
      %v3664 = vunpack.c.l.b16 %v3411
      %v3665 = vunpack.c.h.b16 %v3411
      %v3666 = vunpack.c.l.b16 %v3412
      %v3667 = vunpack.c.h.b16 %v3412
      %v3668 = vunpack.c.l.b16 %v3413
      %v3669 = vunpack.c.h.b16 %v3413
      %v3670 = vunpack.c.l.b16 %v3414
      %v3671 = vunpack.c.h.b16 %v3414
      %v3672 = vunpack.c.l.b16 %v3415
      %v3673 = vunpack.c.h.b16 %v3415
      %v3674 = vunpack.c.l.b16 %v3416
      %v3675 = vunpack.c.h.b16 %v3416
      %v3676 = vunpack.c.l.b16 %v3417
      %v3677 = vunpack.c.h.b16 %v3417
      %v3678 = vunpack.c.l.b16 %v3418
      %v3679 = vunpack.c.h.b16 %v3418
      %v3680 = vunpack.c.l.b16 %v3419
      %v3681 = vunpack.c.h.b16 %v3419
      %v3682 = vunpack.c.l.b16 %v3420
      %v3683 = vunpack.c.h.b16 %v3420
      %v3684 = vunpack.c.l.b16 %v3421
      %v3685 = vunpack.c.h.b16 %v3421
      %v3686 = vunpack.c.l.b16 %v3422
      %v3687 = vunpack.c.h.b16 %v3422
      %v3688 = vunpack.c.l.b16 %v3423
      %v3689 = vunpack.c.h.b16 %v3423
      %v3690 = vunpack.c.l.b16 %v3424
      %v3691 = vunpack.c.h.b16 %v3424
      %v3692 = vunpack.c.l.b16 %v3425
      %v3693 = vunpack.c.h.b16 %v3425
      %v3694 = vunpack.c.l.b16 %v3426
      %v3695 = vunpack.c.h.b16 %v3426
      %v3696 = vunpack.c.l.b16 %v3427
      %v3697 = vunpack.c.h.b16 %v3427
      %v3698 = vunpack.c.l.b16 %v3428
      %v3699 = vunpack.c.h.b16 %v3428
      %v3700 = vunpack.c.l.b16 %v3429
      %v3701 = vunpack.c.h.b16 %v3429
      %v3702 = vunpack.c.l.b16 %v3430
      %v3703 = vunpack.c.h.b16 %v3430
      %v3704 = vunpack.c.l.b16 %v3431
      %v3705 = vunpack.c.h.b16 %v3431
      %v3706 = vunpack.c.l.b16 %v3432
      %v3707 = vunpack.c.h.b16 %v3432
      %v3708 = vunpack.c.l.b16 %v3433
      %v3709 = vunpack.c.h.b16 %v3433
      %v3710 = vunpack.c.l.b16 %v3434
      %v3711 = vunpack.c.h.b16 %v3434
      %v3712 = vunpack.c.l.b16 %v3435
      %v3713 = vunpack.c.h.b16 %v3435
      %v3714 = vunpack.c.l.b16 %v3436
      %v3715 = vunpack.c.h.b16 %v3436
      %v3716 = vunpack.c.l.b16 %v3437
      %v3717 = vunpack.c.h.b16 %v3437
      %v3718 = vunpack.c.l.b16 %v3438
      %v3719 = vunpack.c.h.b16 %v3438
      %v3720 = vunpack.c.l.b16 %v3439
      %v3721 = vunpack.c.h.b16 %v3439
      %v3722 = vunpack.c.l.b16 %v3440
      %v3723 = vunpack.c.h.b16 %v3440
      %v3724 = vunpack.c.l.b16 %v3441
      %v3725 = vunpack.c.h.b16 %v3441
      %v3726 = vunpack.c.l.b16 %v3442
      %v3727 = vunpack.c.h.b16 %v3442
      %v3728 = vunpack.c.l.b16 %v3443
      %v3729 = vunpack.c.h.b16 %v3443
      %v3730 = vunpack.c.l.b16 %v3444
      %v3731 = vunpack.c.h.b16 %v3444
      %v3732 = vunpack.c.l.b16 %v3445
      %v3733 = vunpack.c.h.b16 %v3445
      %v3734 = vunpack.c.l.b16 %v3446
      %v3735 = vunpack.c.h.b16 %v3446
      %v3736 = vunpack.c.l.b16 %v3447
      %v3737 = vunpack.c.h.b16 %v3447
      %v3738 = vunpack.c.l.b16 %v3448
      %v3739 = vunpack.c.h.b16 %v3448
      %v3740 = vunpack.c.l.b16 %v3449
      %v3741 = vunpack.c.h.b16 %v3449
      %v3742 = vunpack.c.l.b16 %v3450
      %v3743 = vunpack.c.h.b16 %v3450
      %v3744 = vunpack.c.l.b16 %v3451
      %v3745 = vunpack.c.h.b16 %v3451
      %v3746 = vunpack.c.l.b16 %v3452
      %v3747 = vunpack.c.h.b16 %v3452
      %v3748 = vunpack.c.l.b16 %v3453
      %v3749 = vunpack.c.h.b16 %v3453
      %v3750 = vunpack.c.l.b16 %v3454
      %v3751 = vunpack.c.h.b16 %v3454
      %v3752 = vunpack.c.l.b16 %v3455
      %v3753 = vunpack.c.h.b16 %v3455
      %v3754 = vunpack.c.l.b16 %v3456
      %v3755 = vunpack.c.h.b16 %v3456
      %v3756 = vunpack.c.l.b16 %v3457
      %v3757 = vunpack.c.h.b16 %v3457
      %v3758 = vunpack.c.l.b16 %v3458
      %v3759 = vunpack.c.h.b16 %v3458
      %v3760 = vunpack.c.l.b16 %v3459
      %v3761 = vunpack.c.h.b16 %v3459
      %v3762 = vunpack.c.l.b16 %v3460
      %v3763 = vunpack.c.h.b16 %v3460
      %v3764 = vunpack.c.l.b16 %v3461
      %v3765 = vunpack.c.h.b16 %v3461
      %v3766 = vunpack.c.l.b16 %v3462
      %v3767 = vunpack.c.h.b16 %v3462
      %v3768 = vunpack.c.l.b16 %v3463
      %v3769 = vunpack.c.h.b16 %v3463
      %v3770 = vunpack.c.l.b16 %v3464
      %v3771 = vunpack.c.h.b16 %v3464
      %v3772 = vunpack.c.l.b16 %v3465
      %v3773 = vunpack.c.h.b16 %v3465
      %v3774 = vunpack.c.l.b16 %v3466
      %v3775 = vunpack.c.h.b16 %v3466
      %v3776 = vunpack.c.l.b16 %v3467
      %v3777 = vunpack.c.h.b16 %v3467
      %v3778 = vunpack.c.l.b16 %v3468
      %v3779 = vunpack.c.h.b16 %v3468
      %v3780 = vunpack.c.l.b16 %v3469
      %v3781 = vunpack.c.h.b16 %v3469
      %v3782 = vunpack.c.l.b16 %v3470
      %v3783 = vunpack.c.h.b16 %v3470
      %v3784 = vunpack.c.l.b16 %v3471
      %v3785 = vunpack.c.h.b16 %v3471
      %v3786 = vunpack.c.l.b16 %v3472
      %v3787 = vunpack.c.h.b16 %v3472
      %v3788 = vunpack.c.l.b16 %v3473
      %v3789 = vunpack.c.h.b16 %v3473
      %v3790 = vunpack.c.l.b16 %v3474
      %v3791 = vunpack.c.h.b16 %v3474
      %v3792 = vunpack.c.l.b16 %v3475
      %v3793 = vunpack.c.h.b16 %v3475
      %v3794 = vunpack.c.l.b16 %v3476
      %v3795 = vunpack.c.h.b16 %v3476
      %v3796 = vunpack.c.l.b16 %v3477
      %v3797 = vunpack.c.h.b16 %v3477
      %v3798 = vunpack.c.l.b16 %v3478
      %v3799 = vunpack.c.h.b16 %v3478
      %v3800 = vunpack.c.l.b16 %v3479
      %v3801 = vunpack.c.h.b16 %v3479
      %v3802 = vunpack.c.l.b16 %v3480
      %v3803 = vunpack.c.h.b16 %v3480
      %v3804 = vunpack.c.l.b16 %v3481
      %v3805 = vunpack.c.h.b16 %v3481
      %v3806 = vunpack.c.l.b16 %v3482
      %v3807 = vunpack.c.h.b16 %v3482
      %v3808 = vunpack.c.l.b16 %v3483
      %v3809 = vunpack.c.h.b16 %v3483
      %v3810 = vunpack.c.l.b16 %v3484
      %v3811 = vunpack.c.h.b16 %v3484
      %v3812 = vunpack.c.l.b16 %v3485
      %v3813 = vunpack.c.h.b16 %v3485
      %v3814 = vunpack.c.l.b16 %v3486
      %v3815 = vunpack.c.h.b16 %v3486
      %v3816 = vunpack.c.l.b16 %v3487
      %v3817 = vunpack.c.h.b16 %v3487
      %v3818 = vunpack.c.l.b16 %v3488
      %v3819 = vunpack.c.h.b16 %v3488
      %v3820 = vunpack.c.l.b16 %v3489
      %v3821 = vunpack.c.h.b16 %v3489
      %v3822 = vunpack.c.l.b16 %v3490
      %v3823 = vunpack.c.h.b16 %v3490
      %v3824 = vunpack.c.l.b16 %v3491
      %v3825 = vunpack.c.h.b16 %v3491
      %v3826 = vunpack.c.l.b16 %v3492
      %v3827 = vunpack.c.h.b16 %v3492
      %v3828 = vunpack.c.l.b16 %v3493
      %v3829 = vunpack.c.h.b16 %v3493
      %v3830 = vpack.c.b16 %v3616, %v3614
      %v3831 = vpack.c.b16 %v3617, %v3615
      %v3832 = vpack.c.b16 %v3620, %v3618
      %v3833 = vpack.c.b16 %v3621, %v3619
      %v3834 = vpack.c.b16 %v3624, %v3622
      %v3835 = vpack.c.b16 %v3625, %v3623
      %v3836 = vpack.c.b16 %v3628, %v3626
      %v3837 = vpack.c.b16 %v3629, %v3627
      %v3838 = vpack.c.b16 %v3632, %v3630
      %v3839 = vpack.c.b16 %v3633, %v3631
      %v3840 = vpack.c.b16 %v3636, %v3634
      %v3841 = vpack.c.b16 %v3637, %v3635
      %v3842 = vpack.c.b16 %v3640, %v3638
      %v3843 = vpack.c.b16 %v3641, %v3639
      %v3844 = vpack.c.b16 %v3644, %v3642
      %v3845 = vpack.c.b16 %v3645, %v3643
      %v3846 = vpack.c.b16 %v3648, %v3646
      %v3847 = vpack.c.b16 %v3649, %v3647
      %v3848 = vpack.c.b16 %v3652, %v3650
      %v3849 = vpack.c.b16 %v3653, %v3651
      %v3850 = vpack.c.b16 %v3656, %v3654
      %v3851 = vpack.c.b16 %v3657, %v3655
      %v3852 = vpack.c.b16 %v3660, %v3658
      %v3853 = vpack.c.b16 %v3661, %v3659
      %v3854 = vpack.c.b16 %v3664, %v3662
      %v3855 = vpack.c.b16 %v3665, %v3663
      %v3856 = vpack.c.b16 %v3668, %v3666
      %v3857 = vpack.c.b16 %v3669, %v3667
      %v3858 = vpack.c.b16 %v3672, %v3670
      %v3859 = vpack.c.b16 %v3673, %v3671
      %v3860 = vpack.c.b16 %v3676, %v3674
      %v3861 = vpack.c.b16 %v3677, %v3675
      %v3862 = vpack.c.b16 %v3680, %v3678
      %v3863 = vpack.c.b16 %v3681, %v3679
      %v3864 = vpack.c.b16 %v3684, %v3682
      %v3865 = vpack.c.b16 %v3685, %v3683
      %v3866 = vpack.c.b16 %v3688, %v3686
      %v3867 = vpack.c.b16 %v3689, %v3687
      %v3868 = vpack.c.b16 %v3692, %v3690
      %v3869 = vpack.c.b16 %v3693, %v3691
      %v3870 = vpack.c.b16 %v3696, %v3694
      %v3871 = vpack.c.b16 %v3697, %v3695
      %v3872 = vpack.c.b16 %v3700, %v3698
      %v3873 = vpack.c.b16 %v3701, %v3699
      %v3874 = vpack.c.b16 %v3704, %v3702
      %v3875 = vpack.c.b16 %v3705, %v3703
      %v3876 = vpack.c.b16 %v3708, %v3706
      %v3877 = vpack.c.b16 %v3709, %v3707
      %v3878 = vpack.c.b16 %v3712, %v3710
      %v3879 = vpack.c.b16 %v3713, %v3711
      %v3880 = vpack.c.b16 %v3716, %v3714
      %v3881 = vpack.c.b16 %v3717, %v3715
      %v3882 = vpack.c.b16 %v3720, %v3718
      %v3883 = vpack.c.b16 %v3721, %v3719
      %v3884 = vpack.c.b16 %v3724, %v3722
      %v3885 = vpack.c.b16 %v3725, %v3723
      %v3886 = vpack.c.b16 %v3728, %v3726
      %v3887 = vpack.c.b16 %v3729, %v3727
      %v3888 = vpack.c.b16 %v3732, %v3730
      %v3889 = vpack.c.b16 %v3733, %v3731
      %v3890 = vpack.c.b16 %v3736, %v3734
      %v3891 = vpack.c.b16 %v3737, %v3735
      %v3892 = vpack.c.b16 %v3740, %v3738
      %v3893 = vpack.c.b16 %v3741, %v3739
      %v3894 = vpack.c.b16 %v3744, %v3742
      %v3895 = vpack.c.b16 %v3745, %v3743
      %v3896 = vpack.c.b16 %v3748, %v3746
      %v3897 = vpack.c.b16 %v3749, %v3747
      %v3898 = vpack.c.b16 %v3752, %v3750
      %v3899 = vpack.c.b16 %v3753, %v3751
      %v3900 = vpack.c.b16 %v3756, %v3754
      %v3901 = vpack.c.b16 %v3757, %v3755
      %v3902 = vpack.c.b16 %v3760, %v3758
      %v3903 = vpack.c.b16 %v3761, %v3759
      %v3904 = vpack.c.b16 %v3764, %v3762
      %v3905 = vpack.c.b16 %v3765, %v3763
      %v3906 = vpack.c.b16 %v3768, %v3766
      %v3907 = vpack.c.b16 %v3769, %v3767
      %v3908 = vpack.c.b16 %v3772, %v3770
      %v3909 = vpack.c.b16 %v3773, %v3771
      %v3910 = vpack.c.b16 %v3776, %v3774
      %v3911 = vpack.c.b16 %v3777, %v3775
      %v3912 = vpack.c.b16 %v3780, %v3778
      %v3913 = vpack.c.b16 %v3781, %v3779
      %v3914 = vpack.c.b16 %v3784, %v3782
      %v3915 = vpack.c.b16 %v3785, %v3783
      %v3916 = vpack.c.b16 %v3788, %v3786
      %v3917 = vpack.c.b16 %v3789, %v3787
      %v3918 = vpack.c.b16 %v3792, %v3790
      %v3919 = vpack.c.b16 %v3793, %v3791
      %v3920 = vpack.c.b16 %v3796, %v3794
      %v3921 = vpack.c.b16 %v3797, %v3795
      %v3922 = vpack.c.b16 %v3800, %v3798
      %v3923 = vpack.c.b16 %v3801, %v3799
      %v3924 = vpack.c.b16 %v3804, %v3802
      %v3925 = vpack.c.b16 %v3805, %v3803
      %v3926 = vpack.c.b16 %v3808, %v3806
      %v3927 = vpack.c.b16 %v3809, %v3807
      %v3928 = vpack.c.b16 %v3812, %v3810
      %v3929 = vpack.c.b16 %v3813, %v3811
      %v3930 = vpack.c.b16 %v3816, %v3814
      %v3931 = vpack.c.b16 %v3817, %v3815
      %v3932 = vpack.c.b16 %v3820, %v3818
      %v3933 = vpack.c.b16 %v3821, %v3819
      %v3934 = vpack.c.b16 %v3824, %v3822
      %v3935 = vpack.c.b16 %v3825, %v3823
      %v3936 = vpack.c.b16 %v3828, %v3826
      %v3937 = vpack.c.b16 %v3829, %v3827
      %v4047 = vsel %vm300, %v3280, 0
      %v4050 = vsel %vm300, %v3287, 0
      %v4053 = vsel %vm300, %v3294, 0
      %v4056 = vsel %vm300, %v3301, 0
      %v4059 = vsel %vm300, %v3308, 0
      %v4062 = vsel %vm300, %v3315, 0
      %v4065 = vsel %vm300, %v3322, 0
      %v4068 = vsel %vm300, %v3329, 0
      %v4071 = vsel %vm300, %v3336, 0
      %v4074 = vsel %vm300, %v3343, 0
      %v4077 = vsel %vm300, %v3350, 0
      %v4080 = vsel %vm300, %v3357, 0
      %v4083 = vsel %vm300, %v3364, 0
      %v4086 = vsel %vm300, %v3371, 0
      %v4089 = vsel %vm300, %v3378, 0
      %v4092 = vsel %vm300, %v3385, 0
      %4094 = vmatprep.subr.bf16.mxu0 %v3831
      %4095 = vmatpush1.bf16.msra.mxu0 %v3830
      %4096 = vmatprep.subr.bf16.mxu0 %v3833
      %4097 = vmatpush1.bf16.msra.mxu0 %v3832
      %4098 = vmatprep.subr.bf16.mxu0 %v3835
      %4099 = vmatpush1.bf16.msra.mxu0 %v3834
      %4100 = vmatprep.subr.bf16.mxu0 %v3837
      %4101 = vmatpush1.bf16.msra.mxu0 %v3836
      %4102 = vmatprep.subr.bf16.mxu0 %v3839
      %4103 = vmatpush1.bf16.msra.mxu0 %v3838
      %4104 = vmatprep.subr.bf16.mxu0 %v3841
      %4105 = vmatpush1.bf16.msra.mxu0 %v3840
      %4106 = vmatprep.subr.bf16.mxu0 %v3843
      %4107 = vmatpush1.bf16.msra.mxu0 %v3842
      %4108 = vmatprep.subr.bf16.mxu0 %v3845
      %4109 = vmatpush1.bf16.msra.mxu0 %v3844
      %4110 = vmatprep.subr.bf16.mxu0 %v3847
      %4111 = vmatpush1.bf16.msra.mxu0 %v3846
      %4112 = vmatprep.subr.bf16.mxu0 %v3849
      %4113 = vmatpush1.bf16.msra.mxu0 %v3848
      %4114 = vmatprep.subr.bf16.mxu0 %v3851
      %4115 = vmatpush1.bf16.msra.mxu0 %v3850
      %4116 = vmatprep.subr.bf16.mxu0 %v3853
      %4117 = vmatpush1.bf16.msra.mxu0 %v3852
      %4118 = vmatprep.subr.bf16.mxu0 %v3855
      %4119 = vmatpush1.bf16.msra.mxu0 %v3854
      %4120 = vmatprep.subr.bf16.mxu0 %v3857
      %4121 = vmatpush1.bf16.msra.mxu0 %v3856
      %4122 = vmatprep.subr.bf16.mxu0 %v3859
      %4123 = vmatpush1.bf16.msra.mxu0 %v3858
      %4124 = vmatprep.subr.bf16.mxu0 %v3861
      %4125 = vmatpush1.bf16.msra.mxu0 %v3860
      %4126 = vmatprep.mubr.bf16.mxu0 %v3275
      %4127 = vmatmul.mubr.bf16.gmra.mrb[0].mxu0 %v3274
      %v4128 = vpop.f32.mrb[0].mxu0
      %v4129 = vadd.f32 %v3499, %v4128
      %v4130 = vpop.f32.mrb[0].mxu0
      %v4131 = vadd.f32 %v3503, %v4130
      %v4132 = vpop.f32.mrb[0].mxu0
      %v4133 = vadd.f32 %v3499, %v4132
      %v4134 = vpop.f32.mrb[0].mxu0
      %v4135 = vadd.f32 %v3503, %v4134
      %4136 = vmatprep.mubr.bf16.mxu0 %v3282
      %4137 = vmatmul.mubr.bf16.gmra.mrb[0].mxu0 %v3281
      %v4138 = vpop.f32.mrb[0].mxu0
      %v4139 = vadd.f32 %v3499, %v4138
      %v4140 = vpop.f32.mrb[0].mxu0
      %v4141 = vadd.f32 %v3503, %v4140
      %v4142 = vpop.f32.mrb[0].mxu0
      %v4143 = vadd.f32 %v3499, %v4142
      %v4144 = vpop.f32.mrb[0].mxu0
      %v4145 = vadd.f32 %v3503, %v4144
      %4146 = vmatprep.mubr.bf16.mxu0 %v3289
      %4147 = vmatmul.mubr.bf16.gmra.mrb[0].mxu0 %v3288
      %v4148 = vpop.f32.mrb[0].mxu0
      %v4149 = vadd.f32 %v3499, %v4148
      %v4150 = vpop.f32.mrb[0].mxu0
      %v4151 = vadd.f32 %v3503, %v4150
      %v4152 = vpop.f32.mrb[0].mxu0
      %v4153 = vadd.f32 %v3499, %v4152
      %v4154 = vpop.f32.mrb[0].mxu0
      %v4155 = vadd.f32 %v3503, %v4154
      %4156 = vmatprep.mubr.bf16.mxu0 %v3296
      %4157 = vmatmul.mubr.bf16.gmra.mrb[0].mxu0 %v3295
      %v4158 = vpop.f32.mrb[0].mxu0
      %v4159 = vadd.f32 %v3499, %v4158
      %v4160 = vpop.f32.mrb[0].mxu0
      %v4161 = vadd.f32 %v3503, %v4160
      %v4162 = vpop.f32.mrb[0].mxu0
      %v4163 = vadd.f32 %v3499, %v4162
      %v4164 = vpop.f32.mrb[0].mxu0
      %v4165 = vadd.f32 %v3503, %v4164
      %4166 = vmatprep.mubr.bf16.mxu0 %v3303
      %4167 = vmatmul.mubr.bf16.gmra.mrb[0].mxu0 %v3302
      %v4168 = vpop.f32.mrb[0].mxu0
      %v4169 = vadd.f32 %v3499, %v4168
      %v4170 = vpop.f32.mrb[0].mxu0
      %v4171 = vadd.f32 %v3503, %v4170
      %v4172 = vpop.f32.mrb[0].mxu0
      %v4173 = vadd.f32 %v3499, %v4172
      %v4174 = vpop.f32.mrb[0].mxu0
      %v4175 = vadd.f32 %v3503, %v4174
      %4176 = vmatprep.mubr.bf16.mxu0 %v3310
      %4177 = vmatmul.mubr.bf16.gmra.mrb[0].mxu0 %v3309
      %v4178 = vpop.f32.mrb[0].mxu0
      %v4179 = vadd.f32 %v3499, %v4178
      %v4180 = vpop.f32.mrb[0].mxu0
      %v4181 = vadd.f32 %v3503, %v4180
      %v4182 = vpop.f32.mrb[0].mxu0
      %v4183 = vadd.f32 %v3499, %v4182
      %v4184 = vpop.f32.mrb[0].mxu0
      %v4185 = vadd.f32 %v3503, %v4184
      %4186 = vmatprep.mubr.bf16.mxu0 %v3317
      %4187 = vmatmul.mubr.bf16.gmra.mrb[0].mxu0 %v3316
      %v4188 = vpop.f32.mrb[0].mxu0
      %v4189 = vadd.f32 %v3499, %v4188
      %v4190 = vpop.f32.mrb[0].mxu0
      %v4191 = vadd.f32 %v3503, %v4190
      %v4192 = vpop.f32.mrb[0].mxu0
      %v4193 = vadd.f32 %v3499, %v4192
      %v4194 = vpop.f32.mrb[0].mxu0
      %v4195 = vadd.f32 %v3503, %v4194
      %4196 = vmatprep.mubr.bf16.mxu0 %v3324
      %4197 = vmatmul.mubr.bf16.gmra.mrb[0].mxu0 %v3323
      %v4198 = vpop.f32.mrb[0].mxu0
      %v4199 = vadd.f32 %v3499, %v4198
      %v4200 = vpop.f32.mrb[0].mxu0
      %v4201 = vadd.f32 %v3503, %v4200
      %v4202 = vpop.f32.mrb[0].mxu0
      %v4203 = vadd.f32 %v3499, %v4202
      %v4204 = vpop.f32.mrb[0].mxu0
      %v4205 = vadd.f32 %v3503, %v4204
      %4206 = vmatprep.mubr.bf16.mxu0 %v3331
      %4207 = vmatmul.mubr.bf16.gmra.mrb[0].mxu0 %v3330
      %v4208 = vpop.f32.mrb[0].mxu0
      %v4209 = vadd.f32 %v3499, %v4208
      %v4210 = vpop.f32.mrb[0].mxu0
      %v4211 = vadd.f32 %v3503, %v4210
      %v4212 = vpop.f32.mrb[0].mxu0
      %v4213 = vadd.f32 %v3499, %v4212
      %v4214 = vpop.f32.mrb[0].mxu0
      %v4215 = vadd.f32 %v3503, %v4214
      %4216 = vmatprep.mubr.bf16.mxu0 %v3338
      %4217 = vmatmul.mubr.bf16.gmra.mrb[0].mxu0 %v3337
      %v4218 = vpop.f32.mrb[0].mxu0
      %v4219 = vadd.f32 %v3499, %v4218
      %v4220 = vpop.f32.mrb[0].mxu0
      %v4221 = vadd.f32 %v3503, %v4220
      %v4222 = vpop.f32.mrb[0].mxu0
      %v4223 = vadd.f32 %v3499, %v4222
      %v4224 = vpop.f32.mrb[0].mxu0
      %v4225 = vadd.f32 %v3503, %v4224
      %4226 = vmatprep.mubr.bf16.mxu0 %v3345
      %4227 = vmatmul.mubr.bf16.gmra.mrb[0].mxu0 %v3344
      %v4228 = vpop.f32.mrb[0].mxu0
      %v4229 = vadd.f32 %v3499, %v4228
      %v4230 = vpop.f32.mrb[0].mxu0
      %v4231 = vadd.f32 %v3503, %v4230
      %v4232 = vpop.f32.mrb[0].mxu0
      %v4233 = vadd.f32 %v3499, %v4232
      %v4234 = vpop.f32.mrb[0].mxu0
      %v4235 = vadd.f32 %v3503, %v4234
      %4236 = vmatprep.mubr.bf16.mxu0 %v3352
      %4237 = vmatmul.mubr.bf16.gmra.mrb[0].mxu0 %v3351
      %v4238 = vpop.f32.mrb[0].mxu0
      %v4239 = vadd.f32 %v3499, %v4238
      %v4240 = vpop.f32.mrb[0].mxu0
      %v4241 = vadd.f32 %v3503, %v4240
      %v4242 = vpop.f32.mrb[0].mxu0
      %v4243 = vadd.f32 %v3499, %v4242
      %v4244 = vpop.f32.mrb[0].mxu0
      %v4245 = vadd.f32 %v3503, %v4244
      %4246 = vmatprep.mubr.bf16.mxu0 %v3359
      %4247 = vmatmul.mubr.bf16.gmra.mrb[0].mxu0 %v3358
      %v4248 = vpop.f32.mrb[0].mxu0
      %v4249 = vadd.f32 %v3499, %v4248
      %v4250 = vpop.f32.mrb[0].mxu0
      %v4251 = vadd.f32 %v3503, %v4250
      %v4252 = vpop.f32.mrb[0].mxu0
      %v4253 = vadd.f32 %v3499, %v4252
      %v4254 = vpop.f32.mrb[0].mxu0
      %v4255 = vadd.f32 %v3503, %v4254
      %4256 = vmatprep.mubr.bf16.mxu0 %v3366
      %4257 = vmatmul.mubr.bf16.gmra.mrb[0].mxu0 %v3365
      %v4258 = vpop.f32.mrb[0].mxu0
      %v4259 = vadd.f32 %v3499, %v4258
      %v4260 = vpop.f32.mrb[0].mxu0
      %v4261 = vadd.f32 %v3503, %v4260
      %v4262 = vpop.f32.mrb[0].mxu0
      %v4263 = vadd.f32 %v3499, %v4262
      %v4264 = vpop.f32.mrb[0].mxu0
      %v4265 = vadd.f32 %v3503, %v4264
      %4266 = vmatprep.mubr.bf16.mxu0 %v3373
      %4267 = vmatmul.mubr.bf16.gmra.mrb[0].mxu0 %v3372
      %v4268 = vpop.f32.mrb[0].mxu0
      %v4269 = vadd.f32 %v3499, %v4268
      %v4270 = vpop.f32.mrb[0].mxu0
      %v4271 = vadd.f32 %v3503, %v4270
      %v4272 = vpop.f32.mrb[0].mxu0
      %v4273 = vadd.f32 %v3499, %v4272
      %v4274 = vpop.f32.mrb[0].mxu0
      %v4275 = vadd.f32 %v3503, %v4274
      %4276 = vmatprep.mubr.bf16.mxu0 %v3380
      %4277 = vmatmul.mubr.bf16.gmra.mrb[0].mxu0 %v3379
      %v4278 = vpop.f32.mrb[0].mxu0
      %v4279 = vadd.f32 %v3499, %v4278
      %v4280 = vpop.f32.mrb[0].mxu0
      %v4281 = vadd.f32 %v3503, %v4280
      %v4282 = vpop.f32.mrb[0].mxu0
      %v4283 = vadd.f32 %v3499, %v4282
      %v4284 = vpop.f32.mrb[0].mxu0
      %v4285 = vadd.f32 %v3503, %v4284
      %4286 = vdwg.mxu0
      %4287 = vmatprep.subr.bf16.mxu0 %v3863
      %4288 = vmatpush1.bf16.msra.mxu0 %v3862
      %4289 = vmatprep.subr.bf16.mxu0 %v3865
      %4290 = vmatpush1.bf16.msra.mxu0 %v3864
      %4291 = vmatprep.subr.bf16.mxu0 %v3867
      %4292 = vmatpush1.bf16.msra.mxu0 %v3866
      %4293 = vmatprep.subr.bf16.mxu0 %v3869
      %4294 = vmatpush1.bf16.msra.mxu0 %v3868
      %4295 = vmatprep.subr.bf16.mxu0 %v3871
      %4296 = vmatpush1.bf16.msra.mxu0 %v3870
      %4297 = vmatprep.subr.bf16.mxu0 %v3873
      %4298 = vmatpush1.bf16.msra.mxu0 %v3872
      %4299 = vmatprep.subr.bf16.mxu0 %v3875
      %4300 = vmatpush1.bf16.msra.mxu0 %v3874
      %4301 = vmatprep.subr.bf16.mxu0 %v3877
      %4302 = vmatpush1.bf16.msra.mxu0 %v3876
      %4303 = vmatprep.subr.bf16.mxu0 %v3879
      %4304 = vmatpush1.bf16.msra.mxu0 %v3878
      %4305 = vmatprep.subr.bf16.mxu0 %v3881
      %4306 = vmatpush1.bf16.msra.mxu0 %v3880
      %4307 = vmatprep.subr.bf16.mxu0 %v3883
      %4308 = vmatpush1.bf16.msra.mxu0 %v3882
      %4309 = vmatprep.subr.bf16.mxu0 %v3885
      %4310 = vmatpush1.bf16.msra.mxu0 %v3884
      %4311 = vmatprep.subr.bf16.mxu0 %v3887
      %4312 = vmatpush1.bf16.msra.mxu0 %v3886
      %4313 = vmatprep.subr.bf16.mxu0 %v3889
      %4314 = vmatpush1.bf16.msra.mxu0 %v3888
      %4315 = vmatprep.subr.bf16.mxu0 %v3891
      %4316 = vmatpush1.bf16.msra.mxu0 %v3890
      %4317 = vmatprep.subr.bf16.mxu0 %v3893
      %4318 = vmatpush1.bf16.msra.mxu0 %v3892
      %4319 = vmatprep.mubr.bf16.mxu0 %v3277
      %4320 = vmatmul.mubr.bf16.gmra.mrb[0].mxu0 %v3276
      %v4321 = vpop.f32.mrb[0].mxu0
      %v4322 = vadd.f32 %v4129, %v4321
      %v4323 = vpop.f32.mrb[0].mxu0
      %v4324 = vadd.f32 %v4131, %v4323
      %v4325 = vpop.f32.mrb[0].mxu0
      %v4326 = vadd.f32 %v4133, %v4325
      %v4327 = vpop.f32.mrb[0].mxu0
      %v4328 = vadd.f32 %v4135, %v4327
      %4329 = vmatprep.mubr.bf16.mxu0 %v3284
      %4330 = vmatmul.mubr.bf16.gmra.mrb[0].mxu0 %v3283
      %v4331 = vpop.f32.mrb[0].mxu0
      %v4332 = vadd.f32 %v4139, %v4331
      %v4333 = vpop.f32.mrb[0].mxu0
      %v4334 = vadd.f32 %v4141, %v4333
      %v4335 = vpop.f32.mrb[0].mxu0
      %v4336 = vadd.f32 %v4143, %v4335
      %v4337 = vpop.f32.mrb[0].mxu0
      %v4338 = vadd.f32 %v4145, %v4337
      %4339 = vmatprep.mubr.bf16.mxu0 %v3291
      %4340 = vmatmul.mubr.bf16.gmra.mrb[0].mxu0 %v3290
      %v4341 = vpop.f32.mrb[0].mxu0
      %v4342 = vadd.f32 %v4149, %v4341
      %v4343 = vpop.f32.mrb[0].mxu0
      %v4344 = vadd.f32 %v4151, %v4343
      %v4345 = vpop.f32.mrb[0].mxu0
      %v4346 = vadd.f32 %v4153, %v4345
      %v4347 = vpop.f32.mrb[0].mxu0
      %v4348 = vadd.f32 %v4155, %v4347
      %4349 = vmatprep.mubr.bf16.mxu0 %v3298
      %4350 = vmatmul.mubr.bf16.gmra.mrb[0].mxu0 %v3297
      %v4351 = vpop.f32.mrb[0].mxu0
      %v4352 = vadd.f32 %v4159, %v4351
      %v4353 = vpop.f32.mrb[0].mxu0
      %v4354 = vadd.f32 %v4161, %v4353
      %v4355 = vpop.f32.mrb[0].mxu0
      %v4356 = vadd.f32 %v4163, %v4355
      %v4357 = vpop.f32.mrb[0].mxu0
      %v4358 = vadd.f32 %v4165, %v4357
      %4359 = vmatprep.mubr.bf16.mxu0 %v3305
      %4360 = vmatmul.mubr.bf16.gmra.mrb[0].mxu0 %v3304
      %v4361 = vpop.f32.mrb[0].mxu0
      %v4362 = vadd.f32 %v4169, %v4361
      %v4363 = vpop.f32.mrb[0].mxu0
      %v4364 = vadd.f32 %v4171, %v4363
      %v4365 = vpop.f32.mrb[0].mxu0
      %v4366 = vadd.f32 %v4173, %v4365
      %v4367 = vpop.f32.mrb[0].mxu0
      %v4368 = vadd.f32 %v4175, %v4367
      %4369 = vmatprep.mubr.bf16.mxu0 %v3312
      %4370 = vmatmul.mubr.bf16.gmra.mrb[0].mxu0 %v3311
      %v4371 = vpop.f32.mrb[0].mxu0
      %v4372 = vadd.f32 %v4179, %v4371
      %v4373 = vpop.f32.mrb[0].mxu0
      %v4374 = vadd.f32 %v4181, %v4373
      %v4375 = vpop.f32.mrb[0].mxu0
      %v4376 = vadd.f32 %v4183, %v4375
      %v4377 = vpop.f32.mrb[0].mxu0
      %v4378 = vadd.f32 %v4185, %v4377
      %4379 = vmatprep.mubr.bf16.mxu0 %v3319
      %4380 = vmatmul.mubr.bf16.gmra.mrb[0].mxu0 %v3318
      %v4381 = vpop.f32.mrb[0].mxu0
      %v4382 = vadd.f32 %v4189, %v4381
      %v4383 = vpop.f32.mrb[0].mxu0
      %v4384 = vadd.f32 %v4191, %v4383
      %v4385 = vpop.f32.mrb[0].mxu0
      %v4386 = vadd.f32 %v4193, %v4385
      %v4387 = vpop.f32.mrb[0].mxu0
      %v4388 = vadd.f32 %v4195, %v4387
      %4389 = vmatprep.mubr.bf16.mxu0 %v3326
      %4390 = vmatmul.mubr.bf16.gmra.mrb[0].mxu0 %v3325
      %v4391 = vpop.f32.mrb[0].mxu0
      %v4392 = vadd.f32 %v4199, %v4391
      %v4393 = vpop.f32.mrb[0].mxu0
      %v4394 = vadd.f32 %v4201, %v4393
      %v4395 = vpop.f32.mrb[0].mxu0
      %v4396 = vadd.f32 %v4203, %v4395
      %v4397 = vpop.f32.mrb[0].mxu0
      %v4398 = vadd.f32 %v4205, %v4397
      %4399 = vmatprep.mubr.bf16.mxu0 %v3333
      %4400 = vmatmul.mubr.bf16.gmra.mrb[0].mxu0 %v3332
      %v4401 = vpop.f32.mrb[0].mxu0
      %v4402 = vadd.f32 %v4209, %v4401
      %v4403 = vpop.f32.mrb[0].mxu0
      %v4404 = vadd.f32 %v4211, %v4403
      %v4405 = vpop.f32.mrb[0].mxu0
      %v4406 = vadd.f32 %v4213, %v4405
      %v4407 = vpop.f32.mrb[0].mxu0
      %v4408 = vadd.f32 %v4215, %v4407
      %4409 = vmatprep.mubr.bf16.mxu0 %v3340
      %4410 = vmatmul.mubr.bf16.gmra.mrb[0].mxu0 %v3339
      %v4411 = vpop.f32.mrb[0].mxu0
      %v4412 = vadd.f32 %v4219, %v4411
      %v4413 = vpop.f32.mrb[0].mxu0
      %v4414 = vadd.f32 %v4221, %v4413
      %v4415 = vpop.f32.mrb[0].mxu0
      %v4416 = vadd.f32 %v4223, %v4415
      %v4417 = vpop.f32.mrb[0].mxu0
      %v4418 = vadd.f32 %v4225, %v4417
      %4419 = vmatprep.mubr.bf16.mxu0 %v3347
      %4420 = vmatmul.mubr.bf16.gmra.mrb[0].mxu0 %v3346
      %v4421 = vpop.f32.mrb[0].mxu0
      %v4422 = vadd.f32 %v4229, %v4421
      %v4423 = vpop.f32.mrb[0].mxu0
      %v4424 = vadd.f32 %v4231, %v4423
      %v4425 = vpop.f32.mrb[0].mxu0
      %v4426 = vadd.f32 %v4233, %v4425
      %v4427 = vpop.f32.mrb[0].mxu0
      %v4428 = vadd.f32 %v4235, %v4427
      %4429 = vmatprep.mubr.bf16.mxu0 %v3354
      %4430 = vmatmul.mubr.bf16.gmra.mrb[0].mxu0 %v3353
      %v4431 = vpop.f32.mrb[0].mxu0
      %v4432 = vadd.f32 %v4239, %v4431
      %v4433 = vpop.f32.mrb[0].mxu0
      %v4434 = vadd.f32 %v4241, %v4433
      %v4435 = vpop.f32.mrb[0].mxu0
      %v4436 = vadd.f32 %v4243, %v4435
      %v4437 = vpop.f32.mrb[0].mxu0
      %v4438 = vadd.f32 %v4245, %v4437
      %4439 = vmatprep.mubr.bf16.mxu0 %v3361
      %4440 = vmatmul.mubr.bf16.gmra.mrb[0].mxu0 %v3360
      %v4441 = vpop.f32.mrb[0].mxu0
      %v4442 = vadd.f32 %v4249, %v4441
      %v4443 = vpop.f32.mrb[0].mxu0
      %v4444 = vadd.f32 %v4251, %v4443
      %v4445 = vpop.f32.mrb[0].mxu0
      %v4446 = vadd.f32 %v4253, %v4445
      %v4447 = vpop.f32.mrb[0].mxu0
      %v4448 = vadd.f32 %v4255, %v4447
      %4449 = vmatprep.mubr.bf16.mxu0 %v3368
      %4450 = vmatmul.mubr.bf16.gmra.mrb[0].mxu0 %v3367
      %v4451 = vpop.f32.mrb[0].mxu0
      %v4452 = vadd.f32 %v4259, %v4451
      %v4453 = vpop.f32.mrb[0].mxu0
      %v4454 = vadd.f32 %v4261, %v4453
      %v4455 = vpop.f32.mrb[0].mxu0
      %v4456 = vadd.f32 %v4263, %v4455
      %v4457 = vpop.f32.mrb[0].mxu0
      %v4458 = vadd.f32 %v4265, %v4457
      %4459 = vmatprep.mubr.bf16.mxu0 %v3375
      %4460 = vmatmul.mubr.bf16.gmra.mrb[0].mxu0 %v3374
      %v4461 = vpop.f32.mrb[0].mxu0
      %v4462 = vadd.f32 %v4269, %v4461
      %v4463 = vpop.f32.mrb[0].mxu0
      %v4464 = vadd.f32 %v4271, %v4463
      %v4465 = vpop.f32.mrb[0].mxu0
      %v4466 = vadd.f32 %v4273, %v4465
      %v4467 = vpop.f32.mrb[0].mxu0
      %v4468 = vadd.f32 %v4275, %v4467
      %4469 = vmatprep.mubr.bf16.mxu0 %v3382
      %4470 = vmatmul.mubr.bf16.gmra.mrb[0].mxu0 %v3381
      %v4471 = vpop.f32.mrb[0].mxu0
      %v4472 = vadd.f32 %v4279, %v4471
      %v4473 = vpop.f32.mrb[0].mxu0
      %v4474 = vadd.f32 %v4281, %v4473
      %v4475 = vpop.f32.mrb[0].mxu0
      %v4476 = vadd.f32 %v4283, %v4475
      %v4477 = vpop.f32.mrb[0].mxu0
      %v4478 = vadd.f32 %v4285, %v4477
      %4479 = vdwg.mxu0
      %4480 = vmatprep.subr.bf16.mxu0 %v3895
      %4481 = vmatpush1.bf16.msra.mxu0 %v3894
      %4482 = vmatprep.subr.bf16.mxu0 %v3897
      %4483 = vmatpush1.bf16.msra.mxu0 %v3896
      %4484 = vmatprep.subr.bf16.mxu0 %v3899
      %4485 = vmatpush1.bf16.msra.mxu0 %v3898
      %4486 = vmatprep.subr.bf16.mxu0 %v3901
      %4487 = vmatpush1.bf16.msra.mxu0 %v3900
      %4488 = vmatprep.subr.bf16.mxu0 %v3903
      %4489 = vmatpush1.bf16.msra.mxu0 %v3902
      %4490 = vmatprep.subr.bf16.mxu0 %v3905
      %4491 = vmatpush1.bf16.msra.mxu0 %v3904
      %4492 = vmatprep.subr.bf16.mxu0 %v3907
      %4493 = vmatpush1.bf16.msra.mxu0 %v3906
      %4494 = vmatprep.subr.bf16.mxu0 %v3909
      %4495 = vmatpush1.bf16.msra.mxu0 %v3908
      %4496 = vmatprep.subr.bf16.mxu0 %v3911
      %4497 = vmatpush1.bf16.msra.mxu0 %v3910
      %4498 = vmatprep.subr.bf16.mxu0 %v3913
      %4499 = vmatpush1.bf16.msra.mxu0 %v3912
      %4500 = vmatprep.subr.bf16.mxu0 %v3915
      %4501 = vmatpush1.bf16.msra.mxu0 %v3914
      %4502 = vmatprep.subr.bf16.mxu0 %v3917
      %4503 = vmatpush1.bf16.msra.mxu0 %v3916
      %4504 = vmatprep.subr.bf16.mxu0 %v3919
      %4505 = vmatpush1.bf16.msra.mxu0 %v3918
      %4506 = vmatprep.subr.bf16.mxu0 %v3921
      %4507 = vmatpush1.bf16.msra.mxu0 %v3920
      %4508 = vmatprep.subr.bf16.mxu0 %v3923
      %4509 = vmatpush1.bf16.msra.mxu0 %v3922
      %4510 = vmatprep.subr.bf16.mxu0 %v3925
      %4511 = vmatpush1.bf16.msra.mxu0 %v3924
      %4512 = vmatprep.mubr.bf16.mxu0 %v3279
      %4513 = vmatmul.mubr.bf16.gmra.mrb[0].mxu0 %v3278
      %v4514 = vpop.f32.mrb[0].mxu0
      %v4515 = vadd.f32 %v4322, %v4514
      %v4516 = vpop.f32.mrb[0].mxu0
      %v4517 = vadd.f32 %v4324, %v4516
      %v4518 = vpop.f32.mrb[0].mxu0
      %v4519 = vadd.f32 %v4326, %v4518
      %v4520 = vpop.f32.mrb[0].mxu0
      %v4521 = vadd.f32 %v4328, %v4520
      %4522 = vmatprep.mubr.bf16.mxu0 %v3286
      %4523 = vmatmul.mubr.bf16.gmra.mrb[0].mxu0 %v3285
      %v4524 = vpop.f32.mrb[0].mxu0
      %v4525 = vadd.f32 %v4332, %v4524
      %v4526 = vpop.f32.mrb[0].mxu0
      %v4527 = vadd.f32 %v4334, %v4526
      %v4528 = vpop.f32.mrb[0].mxu0
      %v4529 = vadd.f32 %v4336, %v4528
      %v4530 = vpop.f32.mrb[0].mxu0
      %v4531 = vadd.f32 %v4338, %v4530
      %4532 = vmatprep.mubr.bf16.mxu0 %v3293
      %4533 = vmatmul.mubr.bf16.gmra.mrb[0].mxu0 %v3292
      %v4534 = vpop.f32.mrb[0].mxu0
      %v4535 = vadd.f32 %v4342, %v4534
      %v4536 = vpop.f32.mrb[0].mxu0
      %v4537 = vadd.f32 %v4344, %v4536
      %v4538 = vpop.f32.mrb[0].mxu0
      %v4539 = vadd.f32 %v4346, %v4538
      %v4540 = vpop.f32.mrb[0].mxu0
      %v4541 = vadd.f32 %v4348, %v4540
      %4542 = vmatprep.mubr.bf16.mxu0 %v3300
      %4543 = vmatmul.mubr.bf16.gmra.mrb[0].mxu0 %v3299
      %v4544 = vpop.f32.mrb[0].mxu0
      %v4545 = vadd.f32 %v4352, %v4544
      %v4546 = vpop.f32.mrb[0].mxu0
      %v4547 = vadd.f32 %v4354, %v4546
      %v4548 = vpop.f32.mrb[0].mxu0
      %v4549 = vadd.f32 %v4356, %v4548
      %v4550 = vpop.f32.mrb[0].mxu0
      %v4551 = vadd.f32 %v4358, %v4550
      %4552 = vmatprep.mubr.bf16.mxu0 %v3307
      %4553 = vmatmul.mubr.bf16.gmra.mrb[0].mxu0 %v3306
      %v4554 = vpop.f32.mrb[0].mxu0
      %v4555 = vadd.f32 %v4362, %v4554
      %v4556 = vpop.f32.mrb[0].mxu0
      %v4557 = vadd.f32 %v4364, %v4556
      %v4558 = vpop.f32.mrb[0].mxu0
      %v4559 = vadd.f32 %v4366, %v4558
      %v4560 = vpop.f32.mrb[0].mxu0
      %v4561 = vadd.f32 %v4368, %v4560
      %4562 = vmatprep.mubr.bf16.mxu0 %v3314
      %4563 = vmatmul.mubr.bf16.gmra.mrb[0].mxu0 %v3313
      %v4564 = vpop.f32.mrb[0].mxu0
      %v4565 = vadd.f32 %v4372, %v4564
      %v4566 = vpop.f32.mrb[0].mxu0
      %v4567 = vadd.f32 %v4374, %v4566
      %v4568 = vpop.f32.mrb[0].mxu0
      %v4569 = vadd.f32 %v4376, %v4568
      %v4570 = vpop.f32.mrb[0].mxu0
      %v4571 = vadd.f32 %v4378, %v4570
      %4572 = vmatprep.mubr.bf16.mxu0 %v3321
      %4573 = vmatmul.mubr.bf16.gmra.mrb[0].mxu0 %v3320
      %v4574 = vpop.f32.mrb[0].mxu0
      %v4575 = vadd.f32 %v4382, %v4574
      %v4576 = vpop.f32.mrb[0].mxu0
      %v4577 = vadd.f32 %v4384, %v4576
      %v4578 = vpop.f32.mrb[0].mxu0
      %v4579 = vadd.f32 %v4386, %v4578
      %v4580 = vpop.f32.mrb[0].mxu0
      %v4581 = vadd.f32 %v4388, %v4580
      %4582 = vmatprep.mubr.bf16.mxu0 %v3328
      %4583 = vmatmul.mubr.bf16.gmra.mrb[0].mxu0 %v3327
      %v4584 = vpop.f32.mrb[0].mxu0
      %v4585 = vadd.f32 %v4392, %v4584
      %v4586 = vpop.f32.mrb[0].mxu0
      %v4587 = vadd.f32 %v4394, %v4586
      %v4588 = vpop.f32.mrb[0].mxu0
      %v4589 = vadd.f32 %v4396, %v4588
      %v4590 = vpop.f32.mrb[0].mxu0
      %v4591 = vadd.f32 %v4398, %v4590
      %4592 = vmatprep.mubr.bf16.mxu0 %v3335
      %4593 = vmatmul.mubr.bf16.gmra.mrb[0].mxu0 %v3334
      %v4594 = vpop.f32.mrb[0].mxu0
      %v4595 = vadd.f32 %v4402, %v4594
      %v4596 = vpop.f32.mrb[0].mxu0
      %v4597 = vadd.f32 %v4404, %v4596
      %v4598 = vpop.f32.mrb[0].mxu0
      %v4599 = vadd.f32 %v4406, %v4598
      %v4600 = vpop.f32.mrb[0].mxu0
      %v4601 = vadd.f32 %v4408, %v4600
      %4602 = vmatprep.mubr.bf16.mxu0 %v3342
      %4603 = vmatmul.mubr.bf16.gmra.mrb[0].mxu0 %v3341
      %v4604 = vpop.f32.mrb[0].mxu0
      %v4605 = vadd.f32 %v4412, %v4604
      %v4606 = vpop.f32.mrb[0].mxu0
      %v4607 = vadd.f32 %v4414, %v4606
      %v4608 = vpop.f32.mrb[0].mxu0
      %v4609 = vadd.f32 %v4416, %v4608
      %v4610 = vpop.f32.mrb[0].mxu0
      %v4611 = vadd.f32 %v4418, %v4610
      %4612 = vmatprep.mubr.bf16.mxu0 %v3349
      %4613 = vmatmul.mubr.bf16.gmra.mrb[0].mxu0 %v3348
      %v4614 = vpop.f32.mrb[0].mxu0
      %v4615 = vadd.f32 %v4422, %v4614
      %v4616 = vpop.f32.mrb[0].mxu0
      %v4617 = vadd.f32 %v4424, %v4616
      %v4618 = vpop.f32.mrb[0].mxu0
      %v4619 = vadd.f32 %v4426, %v4618
      %v4620 = vpop.f32.mrb[0].mxu0
      %v4621 = vadd.f32 %v4428, %v4620
      %4622 = vmatprep.mubr.bf16.mxu0 %v3356
      %4623 = vmatmul.mubr.bf16.gmra.mrb[0].mxu0 %v3355
      %v4624 = vpop.f32.mrb[0].mxu0
      %v4625 = vadd.f32 %v4432, %v4624
      %v4626 = vpop.f32.mrb[0].mxu0
      %v4627 = vadd.f32 %v4434, %v4626
      %v4628 = vpop.f32.mrb[0].mxu0
      %v4629 = vadd.f32 %v4436, %v4628
      %v4630 = vpop.f32.mrb[0].mxu0
      %v4631 = vadd.f32 %v4438, %v4630
      %4632 = vmatprep.mubr.bf16.mxu0 %v3363
      %4633 = vmatmul.mubr.bf16.gmra.mrb[0].mxu0 %v3362
      %v4634 = vpop.f32.mrb[0].mxu0
      %v4635 = vadd.f32 %v4442, %v4634
      %v4636 = vpop.f32.mrb[0].mxu0
      %v4637 = vadd.f32 %v4444, %v4636
      %v4638 = vpop.f32.mrb[0].mxu0
      %v4639 = vadd.f32 %v4446, %v4638
      %v4640 = vpop.f32.mrb[0].mxu0
      %v4641 = vadd.f32 %v4448, %v4640
      %4642 = vmatprep.mubr.bf16.mxu0 %v3370
      %4643 = vmatmul.mubr.bf16.gmra.mrb[0].mxu0 %v3369
      %v4644 = vpop.f32.mrb[0].mxu0
      %v4645 = vadd.f32 %v4452, %v4644
      %v4646 = vpop.f32.mrb[0].mxu0
      %v4647 = vadd.f32 %v4454, %v4646
      %v4648 = vpop.f32.mrb[0].mxu0
      %v4649 = vadd.f32 %v4456, %v4648
      %v4650 = vpop.f32.mrb[0].mxu0
      %v4651 = vadd.f32 %v4458, %v4650
      %4652 = vmatprep.mubr.bf16.mxu0 %v3377
      %4653 = vmatmul.mubr.bf16.gmra.mrb[0].mxu0 %v3376
      %v4654 = vpop.f32.mrb[0].mxu0
      %v4655 = vadd.f32 %v4462, %v4654
      %v4656 = vpop.f32.mrb[0].mxu0
      %v4657 = vadd.f32 %v4464, %v4656
      %v4658 = vpop.f32.mrb[0].mxu0
      %v4659 = vadd.f32 %v4466, %v4658
      %v4660 = vpop.f32.mrb[0].mxu0
      %v4661 = vadd.f32 %v4468, %v4660
      %4662 = vmatprep.mubr.bf16.mxu0 %v3384
      %4663 = vmatmul.mubr.bf16.gmra.mrb[0].mxu0 %v3383
      %v4664 = vpop.f32.mrb[0].mxu0
      %v4665 = vadd.f32 %v4472, %v4664
      %v4666 = vpop.f32.mrb[0].mxu0
      %v4667 = vadd.f32 %v4474, %v4666
      %v4668 = vpop.f32.mrb[0].mxu0
      %v4669 = vadd.f32 %v4476, %v4668
      %v4670 = vpop.f32.mrb[0].mxu0
      %v4671 = vadd.f32 %v4478, %v4670
      %4672 = vdwg.mxu0
      %4673 = vmatprep.subr.bf16.mxu0 %v3927
      %4674 = vmatpush1.bf16.msra.mxu0 %v3926
      %4675 = vmatprep.subr.bf16.mxu0 %v3929
      %4676 = vmatpush1.bf16.msra.mxu0 %v3928
      %4677 = vmatprep.subr.bf16.mxu0 %v3931
      %4678 = vmatpush1.bf16.msra.mxu0 %v3930
      %4679 = vmatprep.subr.bf16.mxu0 %v3933
      %4680 = vmatpush1.bf16.msra.mxu0 %v3932
      %4681 = vmatprep.subr.bf16.mxu0 %v3935
      %4682 = vmatpush1.bf16.msra.mxu0 %v3934
      %4683 = vmatprep.subr.bf16.mxu0 %v3937
      %4684 = vmatpush1.bf16.msra.mxu0 %v3936
      %4685 = vmatprep.subr.bf16.mxu0 0
      %4686 = vmatpush1.bf16.msra.mxu0 0
      %4687 = vmatprep.subr.bf16.mxu0 0
      %4688 = vmatpush1.bf16.msra.mxu0 0
      %4689 = vmatprep.subr.bf16.mxu0 0
      %4690 = vmatpush1.bf16.msra.mxu0 0
      %4691 = vmatprep.subr.bf16.mxu0 0
      %4692 = vmatpush1.bf16.msra.mxu0 0
      %4693 = vmatprep.subr.bf16.mxu0 0
      %4694 = vmatpush1.bf16.msra.mxu0 0
      %4695 = vmatprep.subr.bf16.mxu0 0
      %4696 = vmatpush1.bf16.msra.mxu0 0
      %4697 = vmatprep.subr.bf16.mxu0 0
      %4698 = vmatpush1.bf16.msra.mxu0 0
      %4699 = vmatprep.subr.bf16.mxu0 0
      %4700 = vmatpush1.bf16.msra.mxu0 0
      %4701 = vmatprep.subr.bf16.mxu0 0
      %4702 = vmatpush1.bf16.msra.mxu0 0
      %4703 = vmatprep.subr.bf16.mxu0 0
      %4704 = vmatpush1.bf16.msra.mxu0 0
      %4705 = vmatprep.mubr.bf16.mxu0 0
      %4706 = vmatmul.mubr.bf16.gmra.mrb[0].mxu0 %v4047
      %v4707 = vpop.f32.mrb[0].mxu0
      %v4708 = vadd.f32 %v4515, %v4707
      %v4709 = vpop.f32.mrb[0].mxu0
      %v4710 = vadd.f32 %v4517, %v4709
      %v4711 = vpop.f32.mrb[0].mxu0
      %v4712 = vadd.f32 %v4519, %v4711
      %v4713 = vpop.f32.mrb[0].mxu0
      %v4714 = vadd.f32 %v4521, %v4713
      %4715 = vmatprep.mubr.bf16.mxu0 0
      %4716 = vmatmul.mubr.bf16.gmra.mrb[0].mxu0 %v4050
      %v4717 = vpop.f32.mrb[0].mxu0
      %v4718 = vadd.f32 %v4525, %v4717
      %v4719 = vpop.f32.mrb[0].mxu0
      %v4720 = vadd.f32 %v4527, %v4719
      %v4721 = vpop.f32.mrb[0].mxu0
      %v4722 = vadd.f32 %v4529, %v4721
      %v4723 = vpop.f32.mrb[0].mxu0
      %v4724 = vadd.f32 %v4531, %v4723
      %4725 = vmatprep.mubr.bf16.mxu0 0
      %4726 = vmatmul.mubr.bf16.gmra.mrb[0].mxu0 %v4053
      %v4727 = vpop.f32.mrb[0].mxu0
      %v4728 = vadd.f32 %v4535, %v4727
      %v4729 = vpop.f32.mrb[0].mxu0
      %v4730 = vadd.f32 %v4537, %v4729
      %v4731 = vpop.f32.mrb[0].mxu0
      %v4732 = vadd.f32 %v4539, %v4731
      %v4733 = vpop.f32.mrb[0].mxu0
      %v4734 = vadd.f32 %v4541, %v4733
      %4735 = vmatprep.mubr.bf16.mxu0 0
      %4736 = vmatmul.mubr.bf16.gmra.mrb[0].mxu0 %v4056
      %v4737 = vpop.f32.mrb[0].mxu0
      %v4738 = vadd.f32 %v4545, %v4737
      %v4739 = vpop.f32.mrb[0].mxu0
      %v4740 = vadd.f32 %v4547, %v4739
      %v4741 = vpop.f32.mrb[0].mxu0
      %v4742 = vadd.f32 %v4549, %v4741
      %v4743 = vpop.f32.mrb[0].mxu0
      %v4744 = vadd.f32 %v4551, %v4743
      %4745 = vmatprep.mubr.bf16.mxu0 0
      %4746 = vmatmul.mubr.bf16.gmra.mrb[0].mxu0 %v4059
      %v4747 = vpop.f32.mrb[0].mxu0
      %v4748 = vadd.f32 %v4555, %v4747
      %v4749 = vpop.f32.mrb[0].mxu0
      %v4750 = vadd.f32 %v4557, %v4749
      %v4751 = vpop.f32.mrb[0].mxu0
      %v4752 = vadd.f32 %v4559, %v4751
      %v4753 = vpop.f32.mrb[0].mxu0
      %v4754 = vadd.f32 %v4561, %v4753
      %4755 = vmatprep.mubr.bf16.mxu0 0
      %4756 = vmatmul.mubr.bf16.gmra.mrb[0].mxu0 %v4062
      %v4757 = vpop.f32.mrb[0].mxu0
      %v4758 = vadd.f32 %v4565, %v4757
      %v4759 = vpop.f32.mrb[0].mxu0
      %v4760 = vadd.f32 %v4567, %v4759
      %v4761 = vpop.f32.mrb[0].mxu0
      %v4762 = vadd.f32 %v4569, %v4761
      %v4763 = vpop.f32.mrb[0].mxu0
      %v4764 = vadd.f32 %v4571, %v4763
      %4765 = vmatprep.mubr.bf16.mxu0 0
      %4766 = vmatmul.mubr.bf16.gmra.mrb[0].mxu0 %v4065
      %v4767 = vpop.f32.mrb[0].mxu0
      %v4768 = vadd.f32 %v4575, %v4767
      %v4769 = vpop.f32.mrb[0].mxu0
      %v4770 = vadd.f32 %v4577, %v4769
      %v4771 = vpop.f32.mrb[0].mxu0
      %v4772 = vadd.f32 %v4579, %v4771
      %v4773 = vpop.f32.mrb[0].mxu0
      %v4774 = vadd.f32 %v4581, %v4773
      %4775 = vmatprep.mubr.bf16.mxu0 0
      %4776 = vmatmul.mubr.bf16.gmra.mrb[0].mxu0 %v4068
      %v4777 = vpop.f32.mrb[0].mxu0
      %v4778 = vadd.f32 %v4585, %v4777
      %v4779 = vpop.f32.mrb[0].mxu0
      %v4780 = vadd.f32 %v4587, %v4779
      %v4781 = vpop.f32.mrb[0].mxu0
      %v4782 = vadd.f32 %v4589, %v4781
      %v4783 = vpop.f32.mrb[0].mxu0
      %v4784 = vadd.f32 %v4591, %v4783
      %4785 = vmatprep.mubr.bf16.mxu0 0
      %4786 = vmatmul.mubr.bf16.gmra.mrb[0].mxu0 %v4071
      %v4787 = vpop.f32.mrb[0].mxu0
      %v4788 = vadd.f32 %v4595, %v4787
      %v4789 = vpop.f32.mrb[0].mxu0
      %v4790 = vadd.f32 %v4597, %v4789
      %v4791 = vpop.f32.mrb[0].mxu0
      %v4792 = vadd.f32 %v4599, %v4791
      %v4793 = vpop.f32.mrb[0].mxu0
      %v4794 = vadd.f32 %v4601, %v4793
      %4795 = vmatprep.mubr.bf16.mxu0 0
      %4796 = vmatmul.mubr.bf16.gmra.mrb[0].mxu0 %v4074
      %v4797 = vpop.f32.mrb[0].mxu0
      %v4798 = vadd.f32 %v4605, %v4797
      %v4799 = vpop.f32.mrb[0].mxu0
      %v4800 = vadd.f32 %v4607, %v4799
      %v4801 = vpop.f32.mrb[0].mxu0
      %v4802 = vadd.f32 %v4609, %v4801
      %v4803 = vpop.f32.mrb[0].mxu0
      %v4804 = vadd.f32 %v4611, %v4803
      %4805 = vmatprep.mubr.bf16.mxu0 0
      %4806 = vmatmul.mubr.bf16.gmra.mrb[0].mxu0 %v4077
      %v4807 = vpop.f32.mrb[0].mxu0
      %v4808 = vadd.f32 %v4615, %v4807
      %v4809 = vpop.f32.mrb[0].mxu0
      %v4810 = vadd.f32 %v4617, %v4809
      %v4811 = vpop.f32.mrb[0].mxu0
      %v4812 = vadd.f32 %v4619, %v4811
      %v4813 = vpop.f32.mrb[0].mxu0
      %v4814 = vadd.f32 %v4621, %v4813
      %4815 = vmatprep.mubr.bf16.mxu0 0
      %4816 = vmatmul.mubr.bf16.gmra.mrb[0].mxu0 %v4080
      %v4817 = vpop.f32.mrb[0].mxu0
      %v4818 = vadd.f32 %v4625, %v4817
      %v4819 = vpop.f32.mrb[0].mxu0
      %v4820 = vadd.f32 %v4627, %v4819
      %v4821 = vpop.f32.mrb[0].mxu0
      %v4822 = vadd.f32 %v4629, %v4821
      %v4823 = vpop.f32.mrb[0].mxu0
      %v4824 = vadd.f32 %v4631, %v4823
      %4825 = vmatprep.mubr.bf16.mxu0 0
      %4826 = vmatmul.mubr.bf16.gmra.mrb[0].mxu0 %v4083
      %v4827 = vpop.f32.mrb[0].mxu0
      %v4828 = vadd.f32 %v4635, %v4827
      %v4829 = vpop.f32.mrb[0].mxu0
      %v4830 = vadd.f32 %v4637, %v4829
      %v4831 = vpop.f32.mrb[0].mxu0
      %v4832 = vadd.f32 %v4639, %v4831
      %v4833 = vpop.f32.mrb[0].mxu0
      %v4834 = vadd.f32 %v4641, %v4833
      %4835 = vmatprep.mubr.bf16.mxu0 0
      %4836 = vmatmul.mubr.bf16.gmra.mrb[0].mxu0 %v4086
      %v4837 = vpop.f32.mrb[0].mxu0
      %v4838 = vadd.f32 %v4645, %v4837
      %v4839 = vpop.f32.mrb[0].mxu0
      %v4840 = vadd.f32 %v4647, %v4839
      %v4841 = vpop.f32.mrb[0].mxu0
      %v4842 = vadd.f32 %v4649, %v4841
      %v4843 = vpop.f32.mrb[0].mxu0
      %v4844 = vadd.f32 %v4651, %v4843
      %4845 = vmatprep.mubr.bf16.mxu0 0
      %4846 = vmatmul.mubr.bf16.gmra.mrb[0].mxu0 %v4089
      %v4847 = vpop.f32.mrb[0].mxu0
      %v4848 = vadd.f32 %v4655, %v4847
      %v4849 = vpop.f32.mrb[0].mxu0
      %v4850 = vadd.f32 %v4657, %v4849
      %v4851 = vpop.f32.mrb[0].mxu0
      %v4852 = vadd.f32 %v4659, %v4851
      %v4853 = vpop.f32.mrb[0].mxu0
      %v4854 = vadd.f32 %v4661, %v4853
      %4855 = vmatprep.mubr.bf16.mxu0 0
      %4856 = vmatmul.mubr.bf16.gmra.mrb[0].mxu0 %v4092
      %v4857 = vpop.f32.mrb[0].mxu0
      %v4858 = vadd.f32 %v4665, %v4857
      %v4859 = vpop.f32.mrb[0].mxu0
      %v4860 = vadd.f32 %v4667, %v4859
      %v4861 = vpop.f32.mrb[0].mxu0
      %v4862 = vadd.f32 %v4669, %v4861
      %v4863 = vpop.f32.mrb[0].mxu0
      %v4864 = vadd.f32 %v4671, %v4863
      %4865 = vdwg.mxu0
      %vm4866 = vcmp.ge.f32.partialorder %v4708, 0.0
      %vm4867 = vcmp.ge.f32.partialorder %v4710, 0.0
      %vm4868 = vcmp.ge.f32.partialorder %v4712, 0.0
      %vm4869 = vcmp.ge.f32.partialorder %v4714, 0.0
      %vm4870 = vcmp.ge.f32.partialorder %v4718, 0.0
      %vm4871 = vcmp.ge.f32.partialorder %v4720, 0.0
      %vm4872 = vcmp.ge.f32.partialorder %v4722, 0.0
      %vm4873 = vcmp.ge.f32.partialorder %v4724, 0.0
      %vm4874 = vcmp.ge.f32.partialorder %v4728, 0.0
      %vm4875 = vcmp.ge.f32.partialorder %v4730, 0.0
      %vm4876 = vcmp.ge.f32.partialorder %v4732, 0.0
      %vm4877 = vcmp.ge.f32.partialorder %v4734, 0.0
      %vm4878 = vcmp.ge.f32.partialorder %v4738, 0.0
      %vm4879 = vcmp.ge.f32.partialorder %v4740, 0.0
      %vm4880 = vcmp.ge.f32.partialorder %v4742, 0.0
      %vm4881 = vcmp.ge.f32.partialorder %v4744, 0.0
      %vm4882 = vcmp.ge.f32.partialorder %v4748, 0.0
      %vm4883 = vcmp.ge.f32.partialorder %v4750, 0.0
      %vm4884 = vcmp.ge.f32.partialorder %v4752, 0.0
      %vm4885 = vcmp.ge.f32.partialorder %v4754, 0.0
      %vm4886 = vcmp.ge.f32.partialorder %v4758, 0.0
      %vm4887 = vcmp.ge.f32.partialorder %v4760, 0.0
      %vm4888 = vcmp.ge.f32.partialorder %v4762, 0.0
      %vm4889 = vcmp.ge.f32.partialorder %v4764, 0.0
      %vm4890 = vcmp.ge.f32.partialorder %v4768, 0.0
      %vm4891 = vcmp.ge.f32.partialorder %v4770, 0.0
      %vm4892 = vcmp.ge.f32.partialorder %v4772, 0.0
      %vm4893 = vcmp.ge.f32.partialorder %v4774, 0.0
      %vm4894 = vcmp.ge.f32.partialorder %v4778, 0.0
      %vm4895 = vcmp.ge.f32.partialorder %v4780, 0.0
      %vm4896 = vcmp.ge.f32.partialorder %v4782, 0.0
      %vm4897 = vcmp.ge.f32.partialorder %v4784, 0.0
      %vm4898 = vcmp.ge.f32.partialorder %v4788, 0.0
      %vm4899 = vcmp.ge.f32.partialorder %v4790, 0.0
      %vm4900 = vcmp.ge.f32.partialorder %v4792, 0.0
      %vm4901 = vcmp.ge.f32.partialorder %v4794, 0.0
      %vm4902 = vcmp.ge.f32.partialorder %v4798, 0.0
      %vm4903 = vcmp.ge.f32.partialorder %v4800, 0.0
      %vm4904 = vcmp.ge.f32.partialorder %v4802, 0.0
      %vm4905 = vcmp.ge.f32.partialorder %v4804, 0.0
      %vm4906 = vcmp.ge.f32.partialorder %v4808, 0.0
      %vm4907 = vcmp.ge.f32.partialorder %v4810, 0.0
      %vm4908 = vcmp.ge.f32.partialorder %v4812, 0.0
      %vm4909 = vcmp.ge.f32.partialorder %v4814, 0.0
      %vm4910 = vcmp.ge.f32.partialorder %v4818, 0.0
      %vm4911 = vcmp.ge.f32.partialorder %v4820, 0.0
      %vm4912 = vcmp.ge.f32.partialorder %v4822, 0.0
      %vm4913 = vcmp.ge.f32.partialorder %v4824, 0.0
      %vm4914 = vcmp.ge.f32.partialorder %v4828, 0.0
      %vm4915 = vcmp.ge.f32.partialorder %v4830, 0.0
      %vm4916 = vcmp.ge.f32.partialorder %v4832, 0.0
      %vm4917 = vcmp.ge.f32.partialorder %v4834, 0.0
      %vm4918 = vcmp.ge.f32.partialorder %v4838, 0.0
      %vm4919 = vcmp.ge.f32.partialorder %v4840, 0.0
      %vm4920 = vcmp.ge.f32.partialorder %v4842, 0.0
      %vm4921 = vcmp.ge.f32.partialorder %v4844, 0.0
      %vm4922 = vcmp.ge.f32.partialorder %v4848, 0.0
      %vm4923 = vcmp.ge.f32.partialorder %v4850, 0.0
      %vm4924 = vcmp.ge.f32.partialorder %v4852, 0.0
      %vm4925 = vcmp.ge.f32.partialorder %v4854, 0.0
      %vm4926 = vcmp.ge.f32.partialorder %v4858, 0.0
      %vm4927 = vcmp.ge.f32.partialorder %v4860, 0.0
      %vm4928 = vcmp.ge.f32.partialorder %v4862, 0.0
      %vm4929 = vcmp.ge.f32.partialorder %v4864, 0.0
      %v4930 = vmul.f32 %v4708, 0.1
      %v4931 = vmul.f32 %v4710, 0.1
      %v4932 = vmul.f32 %v4712, 0.1
      %v4933 = vmul.f32 %v4714, 0.1
      %v4934 = vmul.f32 %v4718, 0.1
      %v4935 = vmul.f32 %v4720, 0.1
      %v4936 = vmul.f32 %v4722, 0.1
      %v4937 = vmul.f32 %v4724, 0.1
      %v4938 = vmul.f32 %v4728, 0.1
      %v4939 = vmul.f32 %v4730, 0.1
      %v4940 = vmul.f32 %v4732, 0.1
      %v4941 = vmul.f32 %v4734, 0.1
      %v4942 = vmul.f32 %v4738, 0.1
      %v4943 = vmul.f32 %v4740, 0.1
      %v4944 = vmul.f32 %v4742, 0.1
      %v4945 = vmul.f32 %v4744, 0.1
      %v4946 = vmul.f32 %v4748, 0.1
      %v4947 = vmul.f32 %v4750, 0.1
      %v4948 = vmul.f32 %v4752, 0.1
      %v4949 = vmul.f32 %v4754, 0.1
      %v4950 = vmul.f32 %v4758, 0.1
      %v4951 = vmul.f32 %v4760, 0.1
      %v4952 = vmul.f32 %v4762, 0.1
      %v4953 = vmul.f32 %v4764, 0.1
      %v4954 = vmul.f32 %v4768, 0.1
      %v4955 = vmul.f32 %v4770, 0.1
      %v4956 = vmul.f32 %v4772, 0.1
      %v4957 = vmul.f32 %v4774, 0.1
      %v4958 = vmul.f32 %v4778, 0.1
      %v4959 = vmul.f32 %v4780, 0.1
      %v4960 = vmul.f32 %v4782, 0.1
      %v4961 = vmul.f32 %v4784, 0.1
      %v4962 = vmul.f32 %v4788, 0.1
      %v4963 = vmul.f32 %v4790, 0.1
      %v4964 = vmul.f32 %v4792, 0.1
      %v4965 = vmul.f32 %v4794, 0.1
      %v4966 = vmul.f32 %v4798, 0.1
      %v4967 = vmul.f32 %v4800, 0.1
      %v4968 = vmul.f32 %v4802, 0.1
      %v4969 = vmul.f32 %v4804, 0.1
      %v4970 = vmul.f32 %v4808, 0.1
      %v4971 = vmul.f32 %v4810, 0.1
      %v4972 = vmul.f32 %v4812, 0.1
      %v4973 = vmul.f32 %v4814, 0.1
      %v4974 = vmul.f32 %v4818, 0.1
      %v4975 = vmul.f32 %v4820, 0.1
      %v4976 = vmul.f32 %v4822, 0.1
      %v4977 = vmul.f32 %v4824, 0.1
      %v4978 = vmul.f32 %v4828, 0.1
      %v4979 = vmul.f32 %v4830, 0.1
      %v4980 = vmul.f32 %v4832, 0.1
      %v4981 = vmul.f32 %v4834, 0.1
      %v4982 = vmul.f32 %v4838, 0.1
      %v4983 = vmul.f32 %v4840, 0.1
      %v4984 = vmul.f32 %v4842, 0.1
      %v4985 = vmul.f32 %v4844, 0.1
      %v4986 = vmul.f32 %v4848, 0.1
      %v4987 = vmul.f32 %v4850, 0.1
      %v4988 = vmul.f32 %v4852, 0.1
      %v4989 = vmul.f32 %v4854, 0.1
      %v4990 = vmul.f32 %v4858, 0.1
      %v4991 = vmul.f32 %v4860, 0.1
      %v4992 = vmul.f32 %v4862, 0.1
      %v4993 = vmul.f32 %v4864, 0.1
      %v4994 = vsel %vm4866, %v4708, %v4930
      %v4995 = vsel %vm4867, %v4710, %v4931
      %v4996 = vsel %vm4868, %v4712, %v4932
      %v4997 = vsel %vm4869, %v4714, %v4933
      %v4998 = vsel %vm4870, %v4718, %v4934
      %v4999 = vsel %vm4871, %v4720, %v4935
      %v5000 = vsel %vm4872, %v4722, %v4936
      %v5001 = vsel %vm4873, %v4724, %v4937
      %v5002 = vsel %vm4874, %v4728, %v4938
      %v5003 = vsel %vm4875, %v4730, %v4939
      %v5004 = vsel %vm4876, %v4732, %v4940
      %v5005 = vsel %vm4877, %v4734, %v4941
      %v5006 = vsel %vm4878, %v4738, %v4942
      %v5007 = vsel %vm4879, %v4740, %v4943
      %v5008 = vsel %vm4880, %v4742, %v4944
      %v5009 = vsel %vm4881, %v4744, %v4945
      %v5010 = vsel %vm4882, %v4748, %v4946
      %v5011 = vsel %vm4883, %v4750, %v4947
      %v5012 = vsel %vm4884, %v4752, %v4948
      %v5013 = vsel %vm4885, %v4754, %v4949
      %v5014 = vsel %vm4886, %v4758, %v4950
      %v5015 = vsel %vm4887, %v4760, %v4951
      %v5016 = vsel %vm4888, %v4762, %v4952
      %v5017 = vsel %vm4889, %v4764, %v4953
      %v5018 = vsel %vm4890, %v4768, %v4954
      %v5019 = vsel %vm4891, %v4770, %v4955
      %v5020 = vsel %vm4892, %v4772, %v4956
      %v5021 = vsel %vm4893, %v4774, %v4957
      %v5022 = vsel %vm4894, %v4778, %v4958
      %v5023 = vsel %vm4895, %v4780, %v4959
      %v5024 = vsel %vm4896, %v4782, %v4960
      %v5025 = vsel %vm4897, %v4784, %v4961
      %v5026 = vsel %vm4898, %v4788, %v4962
      %v5027 = vsel %vm4899, %v4790, %v4963
      %v5028 = vsel %vm4900, %v4792, %v4964
      %v5029 = vsel %vm4901, %v4794, %v4965
      %v5030 = vsel %vm4902, %v4798, %v4966
      %v5031 = vsel %vm4903, %v4800, %v4967
      %v5032 = vsel %vm4904, %v4802, %v4968
      %v5033 = vsel %vm4905, %v4804, %v4969
      %v5034 = vsel %vm4906, %v4808, %v4970
      %v5035 = vsel %vm4907, %v4810, %v4971
      %v5036 = vsel %vm4908, %v4812, %v4972
      %v5037 = vsel %vm4909, %v4814, %v4973
      %v5038 = vsel %vm4910, %v4818, %v4974
      %v5039 = vsel %vm4911, %v4820, %v4975
      %v5040 = vsel %vm4912, %v4822, %v4976
      %v5041 = vsel %vm4913, %v4824, %v4977
      %v5042 = vsel %vm4914, %v4828, %v4978
      %v5043 = vsel %vm4915, %v4830, %v4979
      %v5044 = vsel %vm4916, %v4832, %v4980
      %v5045 = vsel %vm4917, %v4834, %v4981
      %v5046 = vsel %vm4918, %v4838, %v4982
      %v5047 = vsel %vm4919, %v4840, %v4983
      %v5048 = vsel %vm4920, %v4842, %v4984
      %v5049 = vsel %vm4921, %v4844, %v4985
      %v5050 = vsel %vm4922, %v4848, %v4986
      %v5051 = vsel %vm4923, %v4850, %v4987
      %v5052 = vsel %vm4924, %v4852, %v4988
      %v5053 = vsel %vm4925, %v4854, %v4989
      %v5054 = vsel %vm4926, %v4858, %v4990
      %v5055 = vsel %vm4927, %v4860, %v4991
      %v5056 = vsel %vm4928, %v4862, %v4992
      %v5057 = vsel %vm4929, %v4864, %v4993
      %5058 = vst [vmem:[%s170] sm:$0xff] %v4994
      %5059 = vst.msk [vmem:[%s170 + $0x8] sm:$0xff] %vm850, %v4995
      %5060 = vst [vmem:[%s170 + $0x10] sm:$0xff] %v4996
      %5061 = vst.msk [vmem:[%s170 + $0x18] sm:$0xff] %vm850, %v4997
      %5062 = vst [vmem:[%s170 + $0x20] sm:$0xff] %v4998
      %5063 = vst.msk [vmem:[%s170 + $0x28] sm:$0xff] %vm850, %v4999
      %5064 = vst [vmem:[%s170 + $0x30] sm:$0xff] %v5000
      %5065 = vst.msk [vmem:[%s170 + $0x38] sm:$0xff] %vm850, %v5001
      %5066 = vst [vmem:[%s170 + $0x40] sm:$0xff] %v5002
      %5067 = vst.msk [vmem:[%s170 + $0x48] sm:$0xff] %vm850, %v5003
      %5068 = vst [vmem:[%s170 + $0x50] sm:$0xff] %v5004
      %5069 = vst.msk [vmem:[%s170 + $0x58] sm:$0xff] %vm850, %v5005
      %5070 = vst [vmem:[%s170 + $0x60] sm:$0xff] %v5006
      %5071 = vst.msk [vmem:[%s170 + $0x68] sm:$0xff] %vm850, %v5007
      %5072 = vst [vmem:[%s170 + $0x70] sm:$0xff] %v5008
      %5073 = vst.msk [vmem:[%s170 + $0x78] sm:$0xff] %vm850, %v5009
      %5074 = vst [vmem:[%s170 + $0x80] sm:$0xff] %v5010
      %5075 = vst.msk [vmem:[%s170 + $0x88] sm:$0xff] %vm850, %v5011
      %5076 = vst [vmem:[%s170 + $0x90] sm:$0xff] %v5012
      %5077 = vst.msk [vmem:[%s170 + $0x98] sm:$0xff] %vm850, %v5013
      %5078 = vst [vmem:[%s170 + $0xa0] sm:$0xff] %v5014
      %5079 = vst.msk [vmem:[%s170 + $0xa8] sm:$0xff] %vm850, %v5015
      %5080 = vst [vmem:[%s170 + $0xb0] sm:$0xff] %v5016
      %5081 = vst.msk [vmem:[%s170 + $0xb8] sm:$0xff] %vm850, %v5017
      %5082 = vst [vmem:[%s170 + $0xc0] sm:$0xff] %v5018
      %5083 = vst.msk [vmem:[%s170 + $0xc8] sm:$0xff] %vm850, %v5019
      %5084 = vst [vmem:[%s170 + $0xd0] sm:$0xff] %v5020
      %5085 = vst.msk [vmem:[%s170 + $0xd8] sm:$0xff] %vm850, %v5021
      %5086 = vst [vmem:[%s170 + $0xe0] sm:$0xff] %v5022
      %5087 = vst.msk [vmem:[%s170 + $0xe8] sm:$0xff] %vm850, %v5023
      %5088 = vst [vmem:[%s170 + $0xf0] sm:$0xff] %v5024
      %5089 = vst.msk [vmem:[%s170 + $0xf8] sm:$0xff] %vm850, %v5025
      %5090 = vst [vmem:[%s170 + $0x100] sm:$0xff] %v5026
      %5091 = vst.msk [vmem:[%s170 + $0x108] sm:$0xff] %vm850, %v5027
      %5092 = vst [vmem:[%s170 + $0x110] sm:$0xff] %v5028
      %5093 = vst.msk [vmem:[%s170 + $0x118] sm:$0xff] %vm850, %v5029
      %5094 = vst [vmem:[%s170 + $0x120] sm:$0xff] %v5030
      %5095 = vst.msk [vmem:[%s170 + $0x128] sm:$0xff] %vm850, %v5031
      %5096 = vst [vmem:[%s170 + $0x130] sm:$0xff] %v5032
      %5097 = vst.msk [vmem:[%s170 + $0x138] sm:$0xff] %vm850, %v5033
      %5098 = vst [vmem:[%s170 + $0x140] sm:$0xff] %v5034
      %5099 = vst.msk [vmem:[%s170 + $0x148] sm:$0xff] %vm850, %v5035
      %5100 = vst [vmem:[%s170 + $0x150] sm:$0xff] %v5036
      %5101 = vst.msk [vmem:[%s170 + $0x158] sm:$0xff] %vm850, %v5037
      %5102 = vst [vmem:[%s170 + $0x160] sm:$0xff] %v5038
      %5103 = vst.msk [vmem:[%s170 + $0x168] sm:$0xff] %vm850, %v5039
      %5104 = vst [vmem:[%s170 + $0x170] sm:$0xff] %v5040
      %5105 = vst.msk [vmem:[%s170 + $0x178] sm:$0xff] %vm850, %v5041
      %5106 = vst [vmem:[%s170 + $0x180] sm:$0xff] %v5042
      %5107 = vst.msk [vmem:[%s170 + $0x188] sm:$0xff] %vm850, %v5043
      %5108 = vst [vmem:[%s170 + $0x190] sm:$0xff] %v5044
      %5109 = vst.msk [vmem:[%s170 + $0x198] sm:$0xff] %vm850, %v5045
      %5110 = vst [vmem:[%s170 + $0x1a0] sm:$0xff] %v5046
      %5111 = vst.msk [vmem:[%s170 + $0x1a8] sm:$0xff] %vm850, %v5047
      %5112 = vst [vmem:[%s170 + $0x1b0] sm:$0xff] %v5048
      %5113 = vst.msk [vmem:[%s170 + $0x1b8] sm:$0xff] %vm850, %v5049
      %5114 = vst [vmem:[%s170 + $0x1c0] sm:$0xff] %v5050
      %5115 = vst.msk [vmem:[%s170 + $0x1c8] sm:$0xff] %vm850, %v5051
      %5116 = vst [vmem:[%s170 + $0x1d0] sm:$0xff] %v5052
      %5117 = vst.msk [vmem:[%s170 + $0x1d8] sm:$0xff] %vm850, %v5053
      %5118 = vst [vmem:[%s170 + $0x1e0] sm:$0xff] %v5054
      %5119 = vst.msk [vmem:[%s170 + $0x1e8] sm:$0xff] %vm850, %v5055
      %5120 = vst [vmem:[%s170 + $0x1f0] sm:$0xff] %v5056
      %5121 = vst.msk [vmem:[%s170 + $0x1f8] sm:$0xff] %vm850, %v5057
      %p5122 = scmp.lt.s32.totalorder %s14, 1
      %s5123 = scalar_select %p5122, %s14, 1
      %s5124 = smul.addr %s5123, 64
      %s5125 = smul.addr %s5124, 8
      %s5126 = scalar_lea.vmem %s3, %s5125
      // Predicated region
      $region33: #{tpu_custom_call.1} parent=31 // pred_check
        %p5127 = pneg %p100
      $region34: #{tpu_custom_call.1} parent=31 // pred_check_branch
        %5129 = sbr.rel (%p5127) target = $region36
      $region35: #{tpu_custom_call.1} parent=31 // pred_region
        _
      $region36: #{tpu_custom_call.1} parent=31 // pred_fallthru
        _
    $region32: #{tpu_custom_call.1} parent=5 // pred_fallthru
      _
    %p5130 = scmp.le.s32.totalorder 2, %s9
    // Predicated region
    $region37: #{tpu_custom_call.1} parent=5 // pred_check
      %p5131 = pneg %p5130
    $region38: #{tpu_custom_call.1} parent=5 // pred_check_branch
      %5133 = sbr.rel (%p5131) target = $region40
    $region39: #{tpu_custom_call.1} parent=5 // pred_region
      %s5134 = ssub.s32 %s9, 2
      // Predicated region
      $region41: #{tpu_custom_call.1} parent=39 // pred_check
        %p5135 = pneg %p106
      $region42: #{tpu_custom_call.1} parent=39 // pred_check_branch
        %5137 = sbr.rel (%p5135) target = $region44
      $region43: #{tpu_custom_call.1} parent=39 // pred_region
        %p5138 = scmp.lt.s32.totalorder %s15, 1
        %s5139 = scalar_select %p5138, %s15, 1
        %s5140 = smul.addr %s5139, 64
        %s5141 = smul.addr %s5140, 8
        %s5142 = scalar_lea.vmem %s3, %s5141
      $region44: #{tpu_custom_call.1} parent=39 // pred_fallthru
        _
    $region40: #{tpu_custom_call.1} parent=5 // pred_fallthru
      _
  $region6: #{tpu_custom_call.1} parent=0 // loop_footer
    %s13 = sadd.s32 1, %s9
  $region7: #{tpu_custom_call.1} parent=0 // loop_footer_branch
    %8 = sbr.rel target = $region3
  $region8: #{tpu_custom_call.1} parent=0 // loop_exit
    _

</llo_original>
